<compile_context>
chip_gen: v7x
topology: tpu7x:2x2x1
jax: 0.10.0
libtpu: 0.0.40
codegen_flags: <defaults>
</compile_context>

<pallas_src>
import numpy as np

import jax
import jax.numpy as jnp
from jax.experimental import pallas as pl
from jax.experimental.pallas import tpu as pltpu


_OUT_PAD = 128  # lane-dense fc4 output width (sliced back in the wrapper)


# ----------------------------------------------------------------------------
# Fused kernel: n_layers LSTM layers + 4-layer MLP head, single invocation.
# Row layout of x / y / out inside the kernel: time-major, row = t*B_pad + b.
# ----------------------------------------------------------------------------
def _make_fused_kernel(n_layers, S, B_pad, H):
    def kernel(*refs):
        idx = 0
        x_ref = refs[idx]; idx += 1
        lstm_w = []
        for _ in range(n_layers):
            lstm_w.append(refs[idx:idx + 3]); idx += 3      # (Wih^T, Whh^T, bias)
        h0_ref, c0_ref = refs[idx], refs[idx + 1]; idx += 2
        fc_w = []
        for _ in range(4):
            fc_w.append(refs[idx:idx + 2]); idx += 2        # (W^T, bias)
        out_ref, hN_ref, cN_ref = refs[idx], refs[idx + 1], refs[idx + 2]; idx += 3
        xw_sc, y_sc = refs[idx], refs[idx + 1]              # VMEM scratch

        layer_in = x_ref[...]                               # (S*B_pad, I)
        for l in range(n_layers):
            wih_ref, whh_ref, b_ref = lstm_w[l]

            # Hoisted input projection: one matmul for the whole sequence.
            xw_sc[...] = (jnp.dot(layer_in, wih_ref[...],
                                  preferred_element_type=jnp.float32)
                          + b_ref[...])                     # (S*B_pad, 4H)

            whh = whh_ref[...]                              # (H, 4H) held in vregs
            h = h0_ref[l]                                   # (B_pad, H)
            c = c0_ref[l]

            # Time recurrence fully in-kernel.  S is small and static, so a
            # Python unroll gives static, sublane-aligned scratch slices and
            # keeps h/c in vregs (no per-step VMEM state round-trip).
            for t in range(S):
                rows = pl.ds(t * B_pad, B_pad)
                gates = xw_sc[rows, :] + jnp.dot(
                    h, whh, preferred_element_type=jnp.float32)   # (B_pad, 4H)
                # Gate columns are permuted to [i | f | o | g]:
                sig = jax.nn.sigmoid(gates[:, :3 * H])       # one contiguous slab
                i_g = sig[:, 0:H]
                f_g = sig[:, H:2 * H]
                o_g = sig[:, 2 * H:3 * H]
                g_g = jnp.tanh(gates[:, 3 * H:4 * H])
                c = f_g * c + i_g * g_g
                h = o_g * jnp.tanh(c)
                y_sc[rows, :] = h

            hN_ref[l] = h                                   # written once per layer
            cN_ref[l] = c
            layer_in = y_sc[...]                            # (S*B_pad, H)

        # MLP head: fc1+ReLU -> fc2+ReLU -> fc3+ReLU -> fc4 (lane-padded output).
        act = layer_in
        for k, (w_ref, bb_ref) in enumerate(fc_w):
            act = jnp.dot(act, w_ref[...],
                          preferred_element_type=jnp.float32) + bb_ref[...]
            if k < 3:
                act = jnp.maximum(act, 0.0)
        out_ref[...] = act.astype(out_ref.dtype)

    return kernel


# ----------------------------------------------------------------------------
# Full model forward (matches LSTM.forward in the PyTorch module).
# ----------------------------------------------------------------------------
@jax.jit
def lstm_model_forward(params, x, hidden, cell_state):
    """x: (B, S, input_size) batch_first; hidden/cell_state: (n_layers, B, H).
    Returns (out[(B*S, output_size)], (h_n, c_n))."""
    B, S, I = x.shape
    n_layers = len(params["lstm"])
    H = params["lstm"][0]["w_hh"].shape[1]
    out_dim = params["fc"][3]["w"].shape[0]
    B_pad = ((B + 7) // 8) * 8                              # fill sublane groups

    # Time-major, batch-padded, flattened input: row index = t*B_pad + b.
    x_tm = jnp.transpose(x, (1, 0, 2))
    x_tm = jnp.pad(x_tm, ((0, 0), (0, B_pad - B), (0, 0)))
    x_flat = x_tm.reshape(S * B_pad, I)
    h0 = jnp.pad(hidden, ((0, 0), (0, B_pad - B), (0, 0)))
    c0 = jnp.pad(cell_state, ((0, 0), (0, B_pad - B), (0, 0)))

    # Gate-column permutation: PyTorch [i, f, g, o] -> kernel [i, f, o, g].
    perm = np.concatenate([np.arange(0, 2 * H),
                           np.arange(3 * H, 4 * H),
                           np.arange(2 * H, 3 * H)])

    args = [x_flat]
    for p in params["lstm"]:
        w_ih = p["w_ih"][perm]                              # (4H, in) reordered
        w_hh = p["w_hh"][perm]                              # (4H, H)  reordered
        b = (p["b_ih"] + p["b_hh"])[perm].reshape(1, 4 * H)
        args += [jnp.transpose(w_ih), jnp.transpose(w_hh), b]
    args += [h0, c0]
    for k, p in enumerate(params["fc"]):
        w_t = jnp.transpose(p["w"])                         # (in, out)
        b = p["b"].reshape(1, -1)
        if k == 3:                                          # pad fc4 out to 128 lanes
            w_t = jnp.pad(w_t, ((0, 0), (0, _OUT_PAD - w_t.shape[1])))
            b = jnp.pad(b, ((0, 0), (0, _OUT_PAD - b.shape[1])))
        args += [w_t, b]

    kernel = _make_fused_kernel(n_layers, S, B_pad, H)
    vmem = pl.BlockSpec(memory_space=pltpu.MemorySpace.VMEM)
    out_padded, hN, cN = pl.pallas_call(
        kernel,
        out_shape=(
            jax.ShapeDtypeStruct((S * B_pad, _OUT_PAD), jnp.float32),
            jax.ShapeDtypeStruct((n_layers, B_pad, H), jnp.float32),
            jax.ShapeDtypeStruct((n_layers, B_pad, H), jnp.float32),
        ),
        in_specs=[vmem] * len(args),
        out_specs=(vmem, vmem, vmem),
        scratch_shapes=[
            pltpu.VMEM((S * B_pad, 4 * H), jnp.float32),    # hoisted gate pre-acts
            pltpu.VMEM((S * B_pad, H), jnp.float32),        # per-layer sequence output
        ],
    )(*args)

    # Restore PyTorch out.view(-1, H) row order (b*S + s) and strip padding.
    out = jnp.transpose(out_padded.reshape(S, B_pad, _OUT_PAD), (1, 0, 2))
    out = out[:B, :, :out_dim].reshape(B * S, out_dim)
    return out, (hN[:, :B, :], cN[:, :B, :])


# ----------------------------------------------------------------------------
# Deterministic parameter init (PyTorch-style uniform(-1/sqrt(fan), 1/sqrt(fan)))
# ----------------------------------------------------------------------------
def init_params(key, input_size, output_size, hidden_dim, n_layers):
    params = {"lstm": [], "fc": []}
    H = hidden_dim
    k_lstm = 1.0 / jnp.sqrt(H)
    for l in range(n_layers):
        in_dim = input_size if l == 0 else H
        key, k1, k2, k3, k4 = jax.random.split(key, 5)
        params["lstm"].append({
            "w_ih": jax.random.uniform(k1, (4 * H, in_dim), jnp.float32, -k_lstm, k_lstm),
            "w_hh": jax.random.uniform(k2, (4 * H, H), jnp.float32, -k_lstm, k_lstm),
            "b_ih": jax.random.uniform(k3, (4 * H,), jnp.float32, -k_lstm, k_lstm),
            "b_hh": jax.random.uniform(k4, (4 * H,), jnp.float32, -k_lstm, k_lstm),
        })
    fc_dims = [(H, 32), (32, 16), (16, 8), (8, output_size)]
    for (fi, fo) in fc_dims:
        key, k1, k2 = jax.random.split(key, 3)
        kk = 1.0 / jnp.sqrt(fi)
        params["fc"].append({
            "w": jax.random.uniform(k1, (fo, fi), jnp.float32, -kk, kk),
            "b": jax.random.uniform(k2, (fo,), jnp.float32, -kk, kk),
        })
    return params


# ----------------------------------------------------------------------------
# Pure-JAX reference (sanity check only; uses original PyTorch gate order)
# ----------------------------------------------------------------------------
def reference_forward(params, x, hidden, cell_state):
    B, S, _ = x.shape
    layer_in = jnp.transpose(x, (1, 0, 2))
    h_out, c_out = [], []
    for l, p in enumerate(params["lstm"]):
        H = p["w_hh"].shape[1]
        h, c = hidden[l], cell_state[l]
        ys = []
        for t in range(S):
            g = layer_in[t] @ p["w_ih"].T + h @ p["w_hh"].T + p["b_ih"] + p["b_hh"]
            i_g = jax.nn.sigmoid(g[:, 0 * H:1 * H])
            f_g = jax.nn.sigmoid(g[:, 1 * H:2 * H])
            g_g = jnp.tanh(g[:, 2 * H:3 * H])
            o_g = jax.nn.sigmoid(g[:, 3 * H:4 * H])
            c = f_g * c + i_g * g_g
            h = o_g * jnp.tanh(c)
            ys.append(h)
        layer_in = jnp.stack(ys, axis=0)
        h_out.append(h)
        c_out.append(c)
    out = jnp.transpose(layer_in, (1, 0, 2)).reshape(B * S, -1)
    for i, p in enumerate(params["fc"]):
        out = out @ p["w"].T + p["b"]
        if i < 3:
            out = jnp.maximum(out, 0.0)
    return out, (jnp.stack(h_out, 0), jnp.stack(c_out, 0))


if __name__ == "__main__":
    input_size, output_size, hidden_dim, n_layers = 8, 4, 32, 2
    batch, seq = 2, 8

    key = jax.random.PRNGKey(0)
    kp, kx, kh, kc = jax.random.split(key, 4)
    params = init_params(kp, input_size, output_size, hidden_dim, n_layers)

    x = jax.random.normal(kx, (batch, seq, input_size), jnp.float32)
    hidden = jax.random.normal(kh, (n_layers, batch, hidden_dim), jnp.float32)
    cell = jax.random.normal(kc, (n_layers, batch, hidden_dim), jnp.float32)

    out, (h_n, c_n) = lstm_model_forward(params, x, hidden, cell)
    jax.block_until_ready((out, h_n, c_n))

    # sanity check against pure-JAX reference
    out_ref, (h_ref, c_ref) = reference_forward(params, x, hidden, cell)
    assert out.shape == (batch * seq, output_size)
    assert h_n.shape == (n_layers, batch, hidden_dim)
    assert c_n.shape == (n_layers, batch, hidden_dim)
    assert jnp.allclose(out, out_ref, rtol=1e-2, atol=1e-2)
    assert jnp.allclose(h_n, h_ref, rtol=1e-2, atol=1e-2)
    assert jnp.allclose(c_n, c_ref, rtol=1e-2, atol=1e-2)

    print("KERNEL_OK")
</pallas_src>

<mosaic_0001>
module attributes {stable_mosaic.version = 11 : i64} {
  func.func @kernel(%arg0: memref<64x8xf32, #tpu.memory_space<vmem>>, %arg1: memref<8x128xf32, #tpu.memory_space<vmem>>, %arg2: memref<32x128xf32, #tpu.memory_space<vmem>>, %arg3: memref<1x128xf32, #tpu.memory_space<vmem>>, %arg4: memref<32x128xf32, #tpu.memory_space<vmem>>, %arg5: memref<32x128xf32, #tpu.memory_space<vmem>>, %arg6: memref<1x128xf32, #tpu.memory_space<vmem>>, %arg7: memref<2x8x32xf32, #tpu.memory_space<vmem>>, %arg8: memref<2x8x32xf32, #tpu.memory_space<vmem>>, %arg9: memref<32x32xf32, #tpu.memory_space<vmem>>, %arg10: memref<1x32xf32, #tpu.memory_space<vmem>>, %arg11: memref<32x16xf32, #tpu.memory_space<vmem>>, %arg12: memref<1x16xf32, #tpu.memory_space<vmem>>, %arg13: memref<16x8xf32, #tpu.memory_space<vmem>>, %arg14: memref<1x8xf32, #tpu.memory_space<vmem>>, %arg15: memref<8x128xf32, #tpu.memory_space<vmem>>, %arg16: memref<1x128xf32, #tpu.memory_space<vmem>>, %arg17: memref<64x128xf32, #tpu.memory_space<vmem>>, %arg18: memref<2x8x32xf32, #tpu.memory_space<vmem>>, %arg19: memref<2x8x32xf32, #tpu.memory_space<vmem>>, %arg20: memref<64x128xf32, #tpu.memory_space<vmem>>, %arg21: memref<64x32xf32, #tpu.memory_space<vmem>>) attributes {dimension_semantics = [], scalar_prefetch = 0 : i64, scratch_operands = 2 : i64, tpu.core_type = #tpu.core_type<tc>} {
    %c0 = arith.constant 0 : index
    %c0_0 = arith.constant 0 : index
    %0 = vector.load %arg0[%c0, %c0_0] : memref<64x8xf32, #tpu.memory_space<vmem>>, vector<64x8xf32>
    %c0_1 = arith.constant 0 : index
    %c0_2 = arith.constant 0 : index
    %1 = vector.load %arg1[%c0_1, %c0_2] : memref<8x128xf32, #tpu.memory_space<vmem>>, vector<8x128xf32>
    %cst = arith.constant dense<0.000000e+00> : vector<64x128xf32>
    %2 = tpu.matmul %0, %1, %cst {dimension_numbers = #tpu.dot_dimension_numbers<[1], [0], [0], [1], [0, 0, 1, 1], [], []>} : vector<64x8xf32>, vector<8x128xf32>, vector<64x128xf32> -> vector<64x128xf32>
    %c0_3 = arith.constant 0 : index
    %c0_4 = arith.constant 0 : index
    %3 = vector.load %arg3[%c0_3, %c0_4] : memref<1x128xf32, #tpu.memory_space<vmem>>, vector<1x128xf32>
    %4 = vector.broadcast %3 : vector<1x128xf32> to vector<64x128xf32>
    %5 = arith.addf %2, %4 : vector<64x128xf32>
    %c0_5 = arith.constant 0 : index
    %c0_6 = arith.constant 0 : index
    %6 = vector.load %arg20[%c0_5, %c0_6] : memref<64x128xf32, #tpu.memory_space<vmem>>, vector<64x128xf32>
    tpu.vector_store %arg20[%c0_5, %c0_6], %5 {strides = array<i32>} : memref<64x128xf32, #tpu.memory_space<vmem>>, vector<64x128xf32>,
    %c0_7 = arith.constant 0 : index
    %c0_8 = arith.constant 0 : index
    %7 = vector.load %arg2[%c0_7, %c0_8] : memref<32x128xf32, #tpu.memory_space<vmem>>, vector<32x128xf32>
    %c0_9 = arith.constant 0 : index
    %c0_10 = arith.constant 0 : index
    %c0_11 = arith.constant 0 : index
    %8 = vector.load %arg7[%c0_9, %c0_10, %c0_11] : memref<2x8x32xf32, #tpu.memory_space<vmem>>, vector<1x8x32xf32>
    %9 = vector.shape_cast %8 : vector<1x8x32xf32> to vector<8x32xf32>
    %c0_12 = arith.constant 0 : index
    %c0_13 = arith.constant 0 : index
    %c0_14 = arith.constant 0 : index
    %10 = vector.load %arg8[%c0_12, %c0_13, %c0_14] : memref<2x8x32xf32, #tpu.memory_space<vmem>>, vector<1x8x32xf32>
    %11 = vector.shape_cast %10 : vector<1x8x32xf32> to vector<8x32xf32>
    %c0_15 = arith.constant 0 : index
    %c0_16 = arith.constant 0 : index
    %12 = vector.load %arg20[%c0_15, %c0_16] : memref<64x128xf32, #tpu.memory_space<vmem>>, vector<8x128xf32>
    %cst_17 = arith.constant dense<0.000000e+00> : vector<8x128xf32>
    %13 = tpu.matmul %9, %7, %cst_17 {dimension_numbers = #tpu.dot_dimension_numbers<[1], [0], [0], [1], [0, 0, 1, 1], [], []>} : vector<8x32xf32>, vector<32x128xf32>, vector<8x128xf32> -> vector<8x128xf32>
    %14 = arith.addf %12, %13 : vector<8x128xf32>
    %15 = vector.extract_strided_slice %14 {offsets = [0, 0], sizes = [8, 96], strides = [1, 1]} : vector<8x128xf32> to vector<8x96xf32>
    %16 = arith.negf %15 : vector<8x96xf32>
    %17 = math.exp %16 : vector<8x96xf32>
    %cst_18 = arith.constant 1.000000e+00 : f32
    %18 = vector.broadcast %cst_18 : f32 to vector<8x96xf32>
    %19 = arith.addf %18, %17 : vector<8x96xf32>
    %20 = arith.divf %18, %19 : vector<8x96xf32>
    %21 = vector.extract_strided_slice %20 {offsets = [0, 0], sizes = [8, 32], strides = [1, 1]} : vector<8x96xf32> to vector<8x32xf32>
    %22 = vector.extract_strided_slice %20 {offsets = [0, 32], sizes = [8, 32], strides = [1, 1]} : vector<8x96xf32> to vector<8x32xf32>
    %23 = vector.extract_strided_slice %20 {offsets = [0, 64], sizes = [8, 32], strides = [1, 1]} : vector<8x96xf32> to vector<8x32xf32>
    %24 = vector.extract_strided_slice %14 {offsets = [0, 96], sizes = [8, 32], strides = [1, 1]} : vector<8x128xf32> to vector<8x32xf32>
    %25 = math.tanh %24 : vector<8x32xf32>
    %26 = arith.mulf %22, %11 : vector<8x32xf32>
    %27 = arith.mulf %21, %25 : vector<8x32xf32>
    %28 = arith.addf %26, %27 : vector<8x32xf32>
    %29 = math.tanh %28 : vector<8x32xf32>
    %30 = arith.mulf %23, %29 : vector<8x32xf32>
    %c0_19 = arith.constant 0 : index
    %c0_20 = arith.constant 0 : index
    %31 = vector.load %arg21[%c0_19, %c0_20] : memref<64x32xf32, #tpu.memory_space<vmem>>, vector<8x32xf32>
    tpu.vector_store %arg21[%c0_19, %c0_20], %30 {strides = array<i32>} : memref<64x32xf32, #tpu.memory_space<vmem>>, vector<8x32xf32>,
    %c8 = arith.constant 8 : index
    %c0_21 = arith.constant 0 : index
    %32 = vector.load %arg20[%c8, %c0_21] : memref<64x128xf32, #tpu.memory_space<vmem>>, vector<8x128xf32>
    %cst_22 = arith.constant dense<0.000000e+00> : vector<8x128xf32>
    %33 = tpu.matmul %30, %7, %cst_22 {dimension_numbers = #tpu.dot_dimension_numbers<[1], [0], [0], [1], [0, 0, 1, 1], [], []>} : vector<8x32xf32>, vector<32x128xf32>, vector<8x128xf32> -> vector<8x128xf32>
    %34 = arith.addf %32, %33 : vector<8x128xf32>
    %35 = vector.extract_strided_slice %34 {offsets = [0, 0], sizes = [8, 96], strides = [1, 1]} : vector<8x128xf32> to vector<8x96xf32>
    %36 = arith.negf %35 : vector<8x96xf32>
    %37 = math.exp %36 : vector<8x96xf32>
    %cst_23 = arith.constant 1.000000e+00 : f32
    %38 = vector.broadcast %cst_23 : f32 to vector<8x96xf32>
    %39 = arith.addf %38, %37 : vector<8x96xf32>
    %40 = arith.divf %38, %39 : vector<8x96xf32>
    %41 = vector.extract_strided_slice %40 {offsets = [0, 0], sizes = [8, 32], strides = [1, 1]} : vector<8x96xf32> to vector<8x32xf32>
    %42 = vector.extract_strided_slice %40 {offsets = [0, 32], sizes = [8, 32], strides = [1, 1]} : vector<8x96xf32> to vector<8x32xf32>
    %43 = vector.extract_strided_slice %40 {offsets = [0, 64], sizes = [8, 32], strides = [1, 1]} : vector<8x96xf32> to vector<8x32xf32>
    %44 = vector.extract_strided_slice %34 {offsets = [0, 96], sizes = [8, 32], strides = [1, 1]} : vector<8x128xf32> to vector<8x32xf32>
    %45 = math.tanh %44 : vector<8x32xf32>
    %46 = arith.mulf %42, %28 : vector<8x32xf32>
    %47 = arith.mulf %41, %45 : vector<8x32xf32>
    %48 = arith.addf %46, %47 : vector<8x32xf32>
    %49 = math.tanh %48 : vector<8x32xf32>
    %50 = arith.mulf %43, %49 : vector<8x32xf32>
    %c8_24 = arith.constant 8 : index
    %c0_25 = arith.constant 0 : index
    %51 = vector.load %arg21[%c8_24, %c0_25] : memref<64x32xf32, #tpu.memory_space<vmem>>, vector<8x32xf32>
    tpu.vector_store %arg21[%c8_24, %c0_25], %50 {strides = array<i32>} : memref<64x32xf32, #tpu.memory_space<vmem>>, vector<8x32xf32>,
    %c16 = arith.constant 16 : index
    %c0_26 = arith.constant 0 : index
    %52 = vector.load %arg20[%c16, %c0_26] : memref<64x128xf32, #tpu.memory_space<vmem>>, vector<8x128xf32>
    %cst_27 = arith.constant dense<0.000000e+00> : vector<8x128xf32>
    %53 = tpu.matmul %50, %7, %cst_27 {dimension_numbers = #tpu.dot_dimension_numbers<[1], [0], [0], [1], [0, 0, 1, 1], [], []>} : vector<8x32xf32>, vector<32x128xf32>, vector<8x128xf32> -> vector<8x128xf32>
    %54 = arith.addf %52, %53 : vector<8x128xf32>
    %55 = vector.extract_strided_slice %54 {offsets = [0, 0], sizes = [8, 96], strides = [1, 1]} : vector<8x128xf32> to vector<8x96xf32>
    %56 = arith.negf %55 : vector<8x96xf32>
    %57 = math.exp %56 : vector<8x96xf32>
    %cst_28 = arith.constant 1.000000e+00 : f32
    %58 = vector.broadcast %cst_28 : f32 to vector<8x96xf32>
    %59 = arith.addf %58, %57 : vector<8x96xf32>
    %60 = arith.divf %58, %59 : vector<8x96xf32>
    %61 = vector.extract_strided_slice %60 {offsets = [0, 0], sizes = [8, 32], strides = [1, 1]} : vector<8x96xf32> to vector<8x32xf32>
    %62 = vector.extract_strided_slice %60 {offsets = [0, 32], sizes = [8, 32], strides = [1, 1]} : vector<8x96xf32> to vector<8x32xf32>
    %63 = vector.extract_strided_slice %60 {offsets = [0, 64], sizes = [8, 32], strides = [1, 1]} : vector<8x96xf32> to vector<8x32xf32>
    %64 = vector.extract_strided_slice %54 {offsets = [0, 96], sizes = [8, 32], strides = [1, 1]} : vector<8x128xf32> to vector<8x32xf32>
    %65 = math.tanh %64 : vector<8x32xf32>
    %66 = arith.mulf %62, %48 : vector<8x32xf32>
    %67 = arith.mulf %61, %65 : vector<8x32xf32>
    %68 = arith.addf %66, %67 : vector<8x32xf32>
    %69 = math.tanh %68 : vector<8x32xf32>
    %70 = arith.mulf %63, %69 : vector<8x32xf32>
    %c16_29 = arith.constant 16 : index
    %c0_30 = arith.constant 0 : index
    %71 = vector.load %arg21[%c16_29, %c0_30] : memref<64x32xf32, #tpu.memory_space<vmem>>, vector<8x32xf32>
    tpu.vector_store %arg21[%c16_29, %c0_30], %70 {strides = array<i32>} : memref<64x32xf32, #tpu.memory_space<vmem>>, vector<8x32xf32>,
    %c24 = arith.constant 24 : index
    %c0_31 = arith.constant 0 : index
    %72 = vector.load %arg20[%c24, %c0_31] : memref<64x128xf32, #tpu.memory_space<vmem>>, vector<8x128xf32>
    %cst_32 = arith.constant dense<0.000000e+00> : vector<8x128xf32>
    %73 = tpu.matmul %70, %7, %cst_32 {dimension_numbers = #tpu.dot_dimension_numbers<[1], [0], [0], [1], [0, 0, 1, 1], [], []>} : vector<8x32xf32>, vector<32x128xf32>, vector<8x128xf32> -> vector<8x128xf32>
    %74 = arith.addf %72, %73 : vector<8x128xf32>
    %75 = vector.extract_strided_slice %74 {offsets = [0, 0], sizes = [8, 96], strides = [1, 1]} : vector<8x128xf32> to vector<8x96xf32>
    %76 = arith.negf %75 : vector<8x96xf32>
    %77 = math.exp %76 : vector<8x96xf32>
    %cst_33 = arith.constant 1.000000e+00 : f32
    %78 = vector.broadcast %cst_33 : f32 to vector<8x96xf32>
    %79 = arith.addf %78, %77 : vector<8x96xf32>
    %80 = arith.divf %78, %79 : vector<8x96xf32>
    %81 = vector.extract_strided_slice %80 {offsets = [0, 0], sizes = [8, 32], strides = [1, 1]} : vector<8x96xf32> to vector<8x32xf32>
    %82 = vector.extract_strided_slice %80 {offsets = [0, 32], sizes = [8, 32], strides = [1, 1]} : vector<8x96xf32> to vector<8x32xf32>
    %83 = vector.extract_strided_slice %80 {offsets = [0, 64], sizes = [8, 32], strides = [1, 1]} : vector<8x96xf32> to vector<8x32xf32>
    %84 = vector.extract_strided_slice %74 {offsets = [0, 96], sizes = [8, 32], strides = [1, 1]} : vector<8x128xf32> to vector<8x32xf32>
    %85 = math.tanh %84 : vector<8x32xf32>
    %86 = arith.mulf %82, %68 : vector<8x32xf32>
    %87 = arith.mulf %81, %85 : vector<8x32xf32>
    %88 = arith.addf %86, %87 : vector<8x32xf32>
    %89 = math.tanh %88 : vector<8x32xf32>
    %90 = arith.mulf %83, %89 : vector<8x32xf32>
    %c24_34 = arith.constant 24 : index
    %c0_35 = arith.constant 0 : index
    %91 = vector.load %arg21[%c24_34, %c0_35] : memref<64x32xf32, #tpu.memory_space<vmem>>, vector<8x32xf32>
    tpu.vector_store %arg21[%c24_34, %c0_35], %90 {strides = array<i32>} : memref<64x32xf32, #tpu.memory_space<vmem>>, vector<8x32xf32>,
    %c32 = arith.constant 32 : index
    %c0_36 = arith.constant 0 : index
    %92 = vector.load %arg20[%c32, %c0_36] : memref<64x128xf32, #tpu.memory_space<vmem>>, vector<8x128xf32>
    %cst_37 = arith.constant dense<0.000000e+00> : vector<8x128xf32>
    %93 = tpu.matmul %90, %7, %cst_37 {dimension_numbers = #tpu.dot_dimension_numbers<[1], [0], [0], [1], [0, 0, 1, 1], [], []>} : vector<8x32xf32>, vector<32x128xf32>, vector<8x128xf32> -> vector<8x128xf32>
    %94 = arith.addf %92, %93 : vector<8x128xf32>
    %95 = vector.extract_strided_slice %94 {offsets = [0, 0], sizes = [8, 96], strides = [1, 1]} : vector<8x128xf32> to vector<8x96xf32>
    %96 = arith.negf %95 : vector<8x96xf32>
    %97 = math.exp %96 : vector<8x96xf32>
    %cst_38 = arith.constant 1.000000e+00 : f32
    %98 = vector.broadcast %cst_38 : f32 to vector<8x96xf32>
    %99 = arith.addf %98, %97 : vector<8x96xf32>
    %100 = arith.divf %98, %99 : vector<8x96xf32>
    %101 = vector.extract_strided_slice %100 {offsets = [0, 0], sizes = [8, 32], strides = [1, 1]} : vector<8x96xf32> to vector<8x32xf32>
    %102 = vector.extract_strided_slice %100 {offsets = [0, 32], sizes = [8, 32], strides = [1, 1]} : vector<8x96xf32> to vector<8x32xf32>
    %103 = vector.extract_strided_slice %100 {offsets = [0, 64], sizes = [8, 32], strides = [1, 1]} : vector<8x96xf32> to vector<8x32xf32>
    %104 = vector.extract_strided_slice %94 {offsets = [0, 96], sizes = [8, 32], strides = [1, 1]} : vector<8x128xf32> to vector<8x32xf32>
    %105 = math.tanh %104 : vector<8x32xf32>
    %106 = arith.mulf %102, %88 : vector<8x32xf32>
    %107 = arith.mulf %101, %105 : vector<8x32xf32>
    %108 = arith.addf %106, %107 : vector<8x32xf32>
    %109 = math.tanh %108 : vector<8x32xf32>
    %110 = arith.mulf %103, %109 : vector<8x32xf32>
    %c32_39 = arith.constant 32 : index
    %c0_40 = arith.constant 0 : index
    %111 = vector.load %arg21[%c32_39, %c0_40] : memref<64x32xf32, #tpu.memory_space<vmem>>, vector<8x32xf32>
    tpu.vector_store %arg21[%c32_39, %c0_40], %110 {strides = array<i32>} : memref<64x32xf32, #tpu.memory_space<vmem>>, vector<8x32xf32>,
    %c40 = arith.constant 40 : index
    %c0_41 = arith.constant 0 : index
    %112 = vector.load %arg20[%c40, %c0_41] : memref<64x128xf32, #tpu.memory_space<vmem>>, vector<8x128xf32>
    %cst_42 = arith.constant dense<0.000000e+00> : vector<8x128xf32>
    %113 = tpu.matmul %110, %7, %cst_42 {dimension_numbers = #tpu.dot_dimension_numbers<[1], [0], [0], [1], [0, 0, 1, 1], [], []>} : vector<8x32xf32>, vector<32x128xf32>, vector<8x128xf32> -> vector<8x128xf32>
    %114 = arith.addf %112, %113 : vector<8x128xf32>
    %115 = vector.extract_strided_slice %114 {offsets = [0, 0], sizes = [8, 96], strides = [1, 1]} : vector<8x128xf32> to vector<8x96xf32>
    %116 = arith.negf %115 : vector<8x96xf32>
    %117 = math.exp %116 : vector<8x96xf32>
    %cst_43 = arith.constant 1.000000e+00 : f32
    %118 = vector.broadcast %cst_43 : f32 to vector<8x96xf32>
    %119 = arith.addf %118, %117 : vector<8x96xf32>
    %120 = arith.divf %118, %119 : vector<8x96xf32>
    %121 = vector.extract_strided_slice %120 {offsets = [0, 0], sizes = [8, 32], strides = [1, 1]} : vector<8x96xf32> to vector<8x32xf32>
    %122 = vector.extract_strided_slice %120 {offsets = [0, 32], sizes = [8, 32], strides = [1, 1]} : vector<8x96xf32> to vector<8x32xf32>
    %123 = vector.extract_strided_slice %120 {offsets = [0, 64], sizes = [8, 32], strides = [1, 1]} : vector<8x96xf32> to vector<8x32xf32>
    %124 = vector.extract_strided_slice %114 {offsets = [0, 96], sizes = [8, 32], strides = [1, 1]} : vector<8x128xf32> to vector<8x32xf32>
    %125 = math.tanh %124 : vector<8x32xf32>
    %126 = arith.mulf %122, %108 : vector<8x32xf32>
    %127 = arith.mulf %121, %125 : vector<8x32xf32>
    %128 = arith.addf %126, %127 : vector<8x32xf32>
    %129 = math.tanh %128 : vector<8x32xf32>
    %130 = arith.mulf %123, %129 : vector<8x32xf32>
    %c40_44 = arith.constant 40 : index
    %c0_45 = arith.constant 0 : index
    %131 = vector.load %arg21[%c40_44, %c0_45] : memref<64x32xf32, #tpu.memory_space<vmem>>, vector<8x32xf32>
    tpu.vector_store %arg21[%c40_44, %c0_45], %130 {strides = array<i32>} : memref<64x32xf32, #tpu.memory_space<vmem>>, vector<8x32xf32>,
    %c48 = arith.constant 48 : index
    %c0_46 = arith.constant 0 : index
    %132 = vector.load %arg20[%c48, %c0_46] : memref<64x128xf32, #tpu.memory_space<vmem>>, vector<8x128xf32>
    %cst_47 = arith.constant dense<0.000000e+00> : vector<8x128xf32>
    %133 = tpu.matmul %130, %7, %cst_47 {dimension_numbers = #tpu.dot_dimension_numbers<[1], [0], [0], [1], [0, 0, 1, 1], [], []>} : vector<8x32xf32>, vector<32x128xf32>, vector<8x128xf32> -> vector<8x128xf32>
    %134 = arith.addf %132, %133 : vector<8x128xf32>
    %135 = vector.extract_strided_slice %134 {offsets = [0, 0], sizes = [8, 96], strides = [1, 1]} : vector<8x128xf32> to vector<8x96xf32>
    %136 = arith.negf %135 : vector<8x96xf32>
    %137 = math.exp %136 : vector<8x96xf32>
    %cst_48 = arith.constant 1.000000e+00 : f32
    %138 = vector.broadcast %cst_48 : f32 to vector<8x96xf32>
    %139 = arith.addf %138, %137 : vector<8x96xf32>
    %140 = arith.divf %138, %139 : vector<8x96xf32>
    %141 = vector.extract_strided_slice %140 {offsets = [0, 0], sizes = [8, 32], strides = [1, 1]} : vector<8x96xf32> to vector<8x32xf32>
    %142 = vector.extract_strided_slice %140 {offsets = [0, 32], sizes = [8, 32], strides = [1, 1]} : vector<8x96xf32> to vector<8x32xf32>
    %143 = vector.extract_strided_slice %140 {offsets = [0, 64], sizes = [8, 32], strides = [1, 1]} : vector<8x96xf32> to vector<8x32xf32>
    %144 = vector.extract_strided_slice %134 {offsets = [0, 96], sizes = [8, 32], strides = [1, 1]} : vector<8x128xf32> to vector<8x32xf32>
    %145 = math.tanh %144 : vector<8x32xf32>
    %146 = arith.mulf %142, %128 : vector<8x32xf32>
    %147 = arith.mulf %141, %145 : vector<8x32xf32>
    %148 = arith.addf %146, %147 : vector<8x32xf32>
    %149 = math.tanh %148 : vector<8x32xf32>
    %150 = arith.mulf %143, %149 : vector<8x32xf32>
    %c48_49 = arith.constant 48 : index
    %c0_50 = arith.constant 0 : index
    %151 = vector.load %arg21[%c48_49, %c0_50] : memref<64x32xf32, #tpu.memory_space<vmem>>, vector<8x32xf32>
    tpu.vector_store %arg21[%c48_49, %c0_50], %150 {strides = array<i32>} : memref<64x32xf32, #tpu.memory_space<vmem>>, vector<8x32xf32>,
    %c56 = arith.constant 56 : index
    %c0_51 = arith.constant 0 : index
    %152 = vector.load %arg20[%c56, %c0_51] : memref<64x128xf32, #tpu.memory_space<vmem>>, vector<8x128xf32>
    %cst_52 = arith.constant dense<0.000000e+00> : vector<8x128xf32>
    %153 = tpu.matmul %150, %7, %cst_52 {dimension_numbers = #tpu.dot_dimension_numbers<[1], [0], [0], [1], [0, 0, 1, 1], [], []>} : vector<8x32xf32>, vector<32x128xf32>, vector<8x128xf32> -> vector<8x128xf32>
    %154 = arith.addf %152, %153 : vector<8x128xf32>
    %155 = vector.extract_strided_slice %154 {offsets = [0, 0], sizes = [8, 96], strides = [1, 1]} : vector<8x128xf32> to vector<8x96xf32>
    %156 = arith.negf %155 : vector<8x96xf32>
    %157 = math.exp %156 : vector<8x96xf32>
    %cst_53 = arith.constant 1.000000e+00 : f32
    %158 = vector.broadcast %cst_53 : f32 to vector<8x96xf32>
    %159 = arith.addf %158, %157 : vector<8x96xf32>
    %160 = arith.divf %158, %159 : vector<8x96xf32>
    %161 = vector.extract_strided_slice %160 {offsets = [0, 0], sizes = [8, 32], strides = [1, 1]} : vector<8x96xf32> to vector<8x32xf32>
    %162 = vector.extract_strided_slice %160 {offsets = [0, 32], sizes = [8, 32], strides = [1, 1]} : vector<8x96xf32> to vector<8x32xf32>
    %163 = vector.extract_strided_slice %160 {offsets = [0, 64], sizes = [8, 32], strides = [1, 1]} : vector<8x96xf32> to vector<8x32xf32>
    %164 = vector.extract_strided_slice %154 {offsets = [0, 96], sizes = [8, 32], strides = [1, 1]} : vector<8x128xf32> to vector<8x32xf32>
    %165 = math.tanh %164 : vector<8x32xf32>
    %166 = arith.mulf %162, %148 : vector<8x32xf32>
    %167 = arith.mulf %161, %165 : vector<8x32xf32>
    %168 = arith.addf %166, %167 : vector<8x32xf32>
    %169 = math.tanh %168 : vector<8x32xf32>
    %170 = arith.mulf %163, %169 : vector<8x32xf32>
    %c56_54 = arith.constant 56 : index
    %c0_55 = arith.constant 0 : index
    %171 = vector.load %arg21[%c56_54, %c0_55] : memref<64x32xf32, #tpu.memory_space<vmem>>, vector<8x32xf32>
    tpu.vector_store %arg21[%c56_54, %c0_55], %170 {strides = array<i32>} : memref<64x32xf32, #tpu.memory_space<vmem>>, vector<8x32xf32>,
    %c0_56 = arith.constant 0 : index
    %c0_57 = arith.constant 0 : index
    %c0_58 = arith.constant 0 : index
    %172 = vector.load %arg18[%c0_56, %c0_57, %c0_58] : memref<2x8x32xf32, #tpu.memory_space<vmem>>, vector<1x8x32xf32>
    %173 = vector.shape_cast %172 : vector<1x8x32xf32> to vector<8x32xf32>
    %174 = vector.shape_cast %170 : vector<8x32xf32> to vector<1x8x32xf32>
    tpu.vector_store %arg18[%c0_56, %c0_57, %c0_58], %174 {strides = array<i32>} : memref<2x8x32xf32, #tpu.memory_space<vmem>>, vector<1x8x32xf32>,
    %c0_59 = arith.constant 0 : index
    %c0_60 = arith.constant 0 : index
    %c0_61 = arith.constant 0 : index
    %175 = vector.load %arg19[%c0_59, %c0_60, %c0_61] : memref<2x8x32xf32, #tpu.memory_space<vmem>>, vector<1x8x32xf32>
    %176 = vector.shape_cast %175 : vector<1x8x32xf32> to vector<8x32xf32>
    %177 = vector.shape_cast %168 : vector<8x32xf32> to vector<1x8x32xf32>
    tpu.vector_store %arg19[%c0_59, %c0_60, %c0_61], %177 {strides = array<i32>} : memref<2x8x32xf32, #tpu.memory_space<vmem>>, vector<1x8x32xf32>,
    %c0_62 = arith.constant 0 : index
    %c0_63 = arith.constant 0 : index
    %178 = vector.load %arg21[%c0_62, %c0_63] : memref<64x32xf32, #tpu.memory_space<vmem>>, vector<64x32xf32>
    %c0_64 = arith.constant 0 : index
    %c0_65 = arith.constant 0 : index
    %179 = vector.load %arg4[%c0_64, %c0_65] : memref<32x128xf32, #tpu.memory_space<vmem>>, vector<32x128xf32>
    %cst_66 = arith.constant dense<0.000000e+00> : vector<64x128xf32>
    %180 = tpu.matmul %178, %179, %cst_66 {dimension_numbers = #tpu.dot_dimension_numbers<[1], [0], [0], [1], [0, 0, 1, 1], [], []>} : vector<64x32xf32>, vector<32x128xf32>, vector<64x128xf32> -> vector<64x128xf32>
    %c0_67 = arith.constant 0 : index
    %c0_68 = arith.constant 0 : index
    %181 = vector.load %arg6[%c0_67, %c0_68] : memref<1x128xf32, #tpu.memory_space<vmem>>, vector<1x128xf32>
    %182 = vector.broadcast %181 : vector<1x128xf32> to vector<64x128xf32>
    %183 = arith.addf %180, %182 : vector<64x128xf32>
    %c0_69 = arith.constant 0 : index
    %c0_70 = arith.constant 0 : index
    %184 = vector.load %arg20[%c0_69, %c0_70] : memref<64x128xf32, #tpu.memory_space<vmem>>, vector<64x128xf32>
    tpu.vector_store %arg20[%c0_69, %c0_70], %183 {strides = array<i32>} : memref<64x128xf32, #tpu.memory_space<vmem>>, vector<64x128xf32>,
    %c0_71 = arith.constant 0 : index
    %c0_72 = arith.constant 0 : index
    %185 = vector.load %arg5[%c0_71, %c0_72] : memref<32x128xf32, #tpu.memory_space<vmem>>, vector<32x128xf32>
    %c1 = arith.constant 1 : index
    %c0_73 = arith.constant 0 : index
    %c0_74 = arith.constant 0 : index
    %186 = vector.load %arg7[%c1, %c0_73, %c0_74] : memref<2x8x32xf32, #tpu.memory_space<vmem>>, vector<1x8x32xf32>
    %187 = vector.shape_cast %186 : vector<1x8x32xf32> to vector<8x32xf32>
    %c1_75 = arith.constant 1 : index
    %c0_76 = arith.constant 0 : index
    %c0_77 = arith.constant 0 : index
    %188 = vector.load %arg8[%c1_75, %c0_76, %c0_77] : memref<2x8x32xf32, #tpu.memory_space<vmem>>, vector<1x8x32xf32>
    %189 = vector.shape_cast %188 : vector<1x8x32xf32> to vector<8x32xf32>
    %c0_78 = arith.constant 0 : index
    %c0_79 = arith.constant 0 : index
    %190 = vector.load %arg20[%c0_78, %c0_79] : memref<64x128xf32, #tpu.memory_space<vmem>>, vector<8x128xf32>
    %cst_80 = arith.constant dense<0.000000e+00> : vector<8x128xf32>
    %191 = tpu.matmul %187, %185, %cst_80 {dimension_numbers = #tpu.dot_dimension_numbers<[1], [0], [0], [1], [0, 0, 1, 1], [], []>} : vector<8x32xf32>, vector<32x128xf32>, vector<8x128xf32> -> vector<8x128xf32>
    %192 = arith.addf %190, %191 : vector<8x128xf32>
    %193 = vector.extract_strided_slice %192 {offsets = [0, 0], sizes = [8, 96], strides = [1, 1]} : vector<8x128xf32> to vector<8x96xf32>
    %194 = arith.negf %193 : vector<8x96xf32>
    %195 = math.exp %194 : vector<8x96xf32>
    %cst_81 = arith.constant 1.000000e+00 : f32
    %196 = vector.broadcast %cst_81 : f32 to vector<8x96xf32>
    %197 = arith.addf %196, %195 : vector<8x96xf32>
    %198 = arith.divf %196, %197 : vector<8x96xf32>
    %199 = vector.extract_strided_slice %198 {offsets = [0, 0], sizes = [8, 32], strides = [1, 1]} : vector<8x96xf32> to vector<8x32xf32>
    %200 = vector.extract_strided_slice %198 {offsets = [0, 32], sizes = [8, 32], strides = [1, 1]} : vector<8x96xf32> to vector<8x32xf32>
    %201 = vector.extract_strided_slice %198 {offsets = [0, 64], sizes = [8, 32], strides = [1, 1]} : vector<8x96xf32> to vector<8x32xf32>
    %202 = vector.extract_strided_slice %192 {offsets = [0, 96], sizes = [8, 32], strides = [1, 1]} : vector<8x128xf32> to vector<8x32xf32>
    %203 = math.tanh %202 : vector<8x32xf32>
    %204 = arith.mulf %200, %189 : vector<8x32xf32>
    %205 = arith.mulf %199, %203 : vector<8x32xf32>
    %206 = arith.addf %204, %205 : vector<8x32xf32>
    %207 = math.tanh %206 : vector<8x32xf32>
    %208 = arith.mulf %201, %207 : vector<8x32xf32>
    %c0_82 = arith.constant 0 : index
    %c0_83 = arith.constant 0 : index
    %209 = vector.load %arg21[%c0_82, %c0_83] : memref<64x32xf32, #tpu.memory_space<vmem>>, vector<8x32xf32>
    tpu.vector_store %arg21[%c0_82, %c0_83], %208 {strides = array<i32>} : memref<64x32xf32, #tpu.memory_space<vmem>>, vector<8x32xf32>,
    %c8_84 = arith.constant 8 : index
    %c0_85 = arith.constant 0 : index
    %210 = vector.load %arg20[%c8_84, %c0_85] : memref<64x128xf32, #tpu.memory_space<vmem>>, vector<8x128xf32>
    %cst_86 = arith.constant dense<0.000000e+00> : vector<8x128xf32>
    %211 = tpu.matmul %208, %185, %cst_86 {dimension_numbers = #tpu.dot_dimension_numbers<[1], [0], [0], [1], [0, 0, 1, 1], [], []>} : vector<8x32xf32>, vector<32x128xf32>, vector<8x128xf32> -> vector<8x128xf32>
    %212 = arith.addf %210, %211 : vector<8x128xf32>
    %213 = vector.extract_strided_slice %212 {offsets = [0, 0], sizes = [8, 96], strides = [1, 1]} : vector<8x128xf32> to vector<8x96xf32>
    %214 = arith.negf %213 : vector<8x96xf32>
    %215 = math.exp %214 : vector<8x96xf32>
    %cst_87 = arith.constant 1.000000e+00 : f32
    %216 = vector.broadcast %cst_87 : f32 to vector<8x96xf32>
    %217 = arith.addf %216, %215 : vector<8x96xf32>
    %218 = arith.divf %216, %217 : vector<8x96xf32>
    %219 = vector.extract_strided_slice %218 {offsets = [0, 0], sizes = [8, 32], strides = [1, 1]} : vector<8x96xf32> to vector<8x32xf32>
    %220 = vector.extract_strided_slice %218 {offsets = [0, 32], sizes = [8, 32], strides = [1, 1]} : vector<8x96xf32> to vector<8x32xf32>
    %221 = vector.extract_strided_slice %218 {offsets = [0, 64], sizes = [8, 32], strides = [1, 1]} : vector<8x96xf32> to vector<8x32xf32>
    %222 = vector.extract_strided_slice %212 {offsets = [0, 96], sizes = [8, 32], strides = [1, 1]} : vector<8x128xf32> to vector<8x32xf32>
    %223 = math.tanh %222 : vector<8x32xf32>
    %224 = arith.mulf %220, %206 : vector<8x32xf32>
    %225 = arith.mulf %219, %223 : vector<8x32xf32>
    %226 = arith.addf %224, %225 : vector<8x32xf32>
    %227 = math.tanh %226 : vector<8x32xf32>
    %228 = arith.mulf %221, %227 : vector<8x32xf32>
    %c8_88 = arith.constant 8 : index
    %c0_89 = arith.constant 0 : index
    %229 = vector.load %arg21[%c8_88, %c0_89] : memref<64x32xf32, #tpu.memory_space<vmem>>, vector<8x32xf32>
    tpu.vector_store %arg21[%c8_88, %c0_89], %228 {strides = array<i32>} : memref<64x32xf32, #tpu.memory_space<vmem>>, vector<8x32xf32>,
    %c16_90 = arith.constant 16 : index
    %c0_91 = arith.constant 0 : index
    %230 = vector.load %arg20[%c16_90, %c0_91] : memref<64x128xf32, #tpu.memory_space<vmem>>, vector<8x128xf32>
    %cst_92 = arith.constant dense<0.000000e+00> : vector<8x128xf32>
    %231 = tpu.matmul %228, %185, %cst_92 {dimension_numbers = #tpu.dot_dimension_numbers<[1], [0], [0], [1], [0, 0, 1, 1], [], []>} : vector<8x32xf32>, vector<32x128xf32>, vector<8x128xf32> -> vector<8x128xf32>
    %232 = arith.addf %230, %231 : vector<8x128xf32>
    %233 = vector.extract_strided_slice %232 {offsets = [0, 0], sizes = [8, 96], strides = [1, 1]} : vector<8x128xf32> to vector<8x96xf32>
    %234 = arith.negf %233 : vector<8x96xf32>
    %235 = math.exp %234 : vector<8x96xf32>
    %cst_93 = arith.constant 1.000000e+00 : f32
    %236 = vector.broadcast %cst_93 : f32 to vector<8x96xf32>
    %237 = arith.addf %236, %235 : vector<8x96xf32>
    %238 = arith.divf %236, %237 : vector<8x96xf32>
    %239 = vector.extract_strided_slice %238 {offsets = [0, 0], sizes = [8, 32], strides = [1, 1]} : vector<8x96xf32> to vector<8x32xf32>
    %240 = vector.extract_strided_slice %238 {offsets = [0, 32], sizes = [8, 32], strides = [1, 1]} : vector<8x96xf32> to vector<8x32xf32>
    %241 = vector.extract_strided_slice %238 {offsets = [0, 64], sizes = [8, 32], strides = [1, 1]} : vector<8x96xf32> to vector<8x32xf32>
    %242 = vector.extract_strided_slice %232 {offsets = [0, 96], sizes = [8, 32], strides = [1, 1]} : vector<8x128xf32> to vector<8x32xf32>
    %243 = math.tanh %242 : vector<8x32xf32>
    %244 = arith.mulf %240, %226 : vector<8x32xf32>
    %245 = arith.mulf %239, %243 : vector<8x32xf32>
    %246 = arith.addf %244, %245 : vector<8x32xf32>
    %247 = math.tanh %246 : vector<8x32xf32>
    %248 = arith.mulf %241, %247 : vector<8x32xf32>
    %c16_94 = arith.constant 16 : index
    %c0_95 = arith.constant 0 : index
    %249 = vector.load %arg21[%c16_94, %c0_95] : memref<64x32xf32, #tpu.memory_space<vmem>>, vector<8x32xf32>
    tpu.vector_store %arg21[%c16_94, %c0_95], %248 {strides = array<i32>} : memref<64x32xf32, #tpu.memory_space<vmem>>, vector<8x32xf32>,
    %c24_96 = arith.constant 24 : index
    %c0_97 = arith.constant 0 : index
    %250 = vector.load %arg20[%c24_96, %c0_97] : memref<64x128xf32, #tpu.memory_space<vmem>>, vector<8x128xf32>
    %cst_98 = arith.constant dense<0.000000e+00> : vector<8x128xf32>
    %251 = tpu.matmul %248, %185, %cst_98 {dimension_numbers = #tpu.dot_dimension_numbers<[1], [0], [0], [1], [0, 0, 1, 1], [], []>} : vector<8x32xf32>, vector<32x128xf32>, vector<8x128xf32> -> vector<8x128xf32>
    %252 = arith.addf %250, %251 : vector<8x128xf32>
    %253 = vector.extract_strided_slice %252 {offsets = [0, 0], sizes = [8, 96], strides = [1, 1]} : vector<8x128xf32> to vector<8x96xf32>
    %254 = arith.negf %253 : vector<8x96xf32>
    %255 = math.exp %254 : vector<8x96xf32>
    %cst_99 = arith.constant 1.000000e+00 : f32
    %256 = vector.broadcast %cst_99 : f32 to vector<8x96xf32>
    %257 = arith.addf %256, %255 : vector<8x96xf32>
    %258 = arith.divf %256, %257 : vector<8x96xf32>
    %259 = vector.extract_strided_slice %258 {offsets = [0, 0], sizes = [8, 32], strides = [1, 1]} : vector<8x96xf32> to vector<8x32xf32>
    %260 = vector.extract_strided_slice %258 {offsets = [0, 32], sizes = [8, 32], strides = [1, 1]} : vector<8x96xf32> to vector<8x32xf32>
    %261 = vector.extract_strided_slice %258 {offsets = [0, 64], sizes = [8, 32], strides = [1, 1]} : vector<8x96xf32> to vector<8x32xf32>
    %262 = vector.extract_strided_slice %252 {offsets = [0, 96], sizes = [8, 32], strides = [1, 1]} : vector<8x128xf32> to vector<8x32xf32>
    %263 = math.tanh %262 : vector<8x32xf32>
    %264 = arith.mulf %260, %246 : vector<8x32xf32>
    %265 = arith.mulf %259, %263 : vector<8x32xf32>
    %266 = arith.addf %264, %265 : vector<8x32xf32>
    %267 = math.tanh %266 : vector<8x32xf32>
    %268 = arith.mulf %261, %267 : vector<8x32xf32>
    %c24_100 = arith.constant 24 : index
    %c0_101 = arith.constant 0 : index
    %269 = vector.load %arg21[%c24_100, %c0_101] : memref<64x32xf32, #tpu.memory_space<vmem>>, vector<8x32xf32>
    tpu.vector_store %arg21[%c24_100, %c0_101], %268 {strides = array<i32>} : memref<64x32xf32, #tpu.memory_space<vmem>>, vector<8x32xf32>,
    %c32_102 = arith.constant 32 : index
    %c0_103 = arith.constant 0 : index
    %270 = vector.load %arg20[%c32_102, %c0_103] : memref<64x128xf32, #tpu.memory_space<vmem>>, vector<8x128xf32>
    %cst_104 = arith.constant dense<0.000000e+00> : vector<8x128xf32>
    %271 = tpu.matmul %268, %185, %cst_104 {dimension_numbers = #tpu.dot_dimension_numbers<[1], [0], [0], [1], [0, 0, 1, 1], [], []>} : vector<8x32xf32>, vector<32x128xf32>, vector<8x128xf32> -> vector<8x128xf32>
    %272 = arith.addf %270, %271 : vector<8x128xf32>
    %273 = vector.extract_strided_slice %272 {offsets = [0, 0], sizes = [8, 96], strides = [1, 1]} : vector<8x128xf32> to vector<8x96xf32>
    %274 = arith.negf %273 : vector<8x96xf32>
    %275 = math.exp %274 : vector<8x96xf32>
    %cst_105 = arith.constant 1.000000e+00 : f32
    %276 = vector.broadcast %cst_105 : f32 to vector<8x96xf32>
    %277 = arith.addf %276, %275 : vector<8x96xf32>
    %278 = arith.divf %276, %277 : vector<8x96xf32>
    %279 = vector.extract_strided_slice %278 {offsets = [0, 0], sizes = [8, 32], strides = [1, 1]} : vector<8x96xf32> to vector<8x32xf32>
    %280 = vector.extract_strided_slice %278 {offsets = [0, 32], sizes = [8, 32], strides = [1, 1]} : vector<8x96xf32> to vector<8x32xf32>
    %281 = vector.extract_strided_slice %278 {offsets = [0, 64], sizes = [8, 32], strides = [1, 1]} : vector<8x96xf32> to vector<8x32xf32>
    %282 = vector.extract_strided_slice %272 {offsets = [0, 96], sizes = [8, 32], strides = [1, 1]} : vector<8x128xf32> to vector<8x32xf32>
    %283 = math.tanh %282 : vector<8x32xf32>
    %284 = arith.mulf %280, %266 : vector<8x32xf32>
    %285 = arith.mulf %279, %283 : vector<8x32xf32>
    %286 = arith.addf %284, %285 : vector<8x32xf32>
    %287 = math.tanh %286 : vector<8x32xf32>
    %288 = arith.mulf %281, %287 : vector<8x32xf32>
    %c32_106 = arith.constant 32 : index
    %c0_107 = arith.constant 0 : index
    %289 = vector.load %arg21[%c32_106, %c0_107] : memref<64x32xf32, #tpu.memory_space<vmem>>, vector<8x32xf32>
    tpu.vector_store %arg21[%c32_106, %c0_107], %288 {strides = array<i32>} : memref<64x32xf32, #tpu.memory_space<vmem>>, vector<8x32xf32>,
    %c40_108 = arith.constant 40 : index
    %c0_109 = arith.constant 0 : index
    %290 = vector.load %arg20[%c40_108, %c0_109] : memref<64x128xf32, #tpu.memory_space<vmem>>, vector<8x128xf32>
    %cst_110 = arith.constant dense<0.000000e+00> : vector<8x128xf32>
    %291 = tpu.matmul %288, %185, %cst_110 {dimension_numbers = #tpu.dot_dimension_numbers<[1], [0], [0], [1], [0, 0, 1, 1], [], []>} : vector<8x32xf32>, vector<32x128xf32>, vector<8x128xf32> -> vector<8x128xf32>
    %292 = arith.addf %290, %291 : vector<8x128xf32>
    %293 = vector.extract_strided_slice %292 {offsets = [0, 0], sizes = [8, 96], strides = [1, 1]} : vector<8x128xf32> to vector<8x96xf32>
    %294 = arith.negf %293 : vector<8x96xf32>
    %295 = math.exp %294 : vector<8x96xf32>
    %cst_111 = arith.constant 1.000000e+00 : f32
    %296 = vector.broadcast %cst_111 : f32 to vector<8x96xf32>
    %297 = arith.addf %296, %295 : vector<8x96xf32>
    %298 = arith.divf %296, %297 : vector<8x96xf32>
    %299 = vector.extract_strided_slice %298 {offsets = [0, 0], sizes = [8, 32], strides = [1, 1]} : vector<8x96xf32> to vector<8x32xf32>
    %300 = vector.extract_strided_slice %298 {offsets = [0, 32], sizes = [8, 32], strides = [1, 1]} : vector<8x96xf32> to vector<8x32xf32>
    %301 = vector.extract_strided_slice %298 {offsets = [0, 64], sizes = [8, 32], strides = [1, 1]} : vector<8x96xf32> to vector<8x32xf32>
    %302 = vector.extract_strided_slice %292 {offsets = [0, 96], sizes = [8, 32], strides = [1, 1]} : vector<8x128xf32> to vector<8x32xf32>
    %303 = math.tanh %302 : vector<8x32xf32>
    %304 = arith.mulf %300, %286 : vector<8x32xf32>
    %305 = arith.mulf %299, %303 : vector<8x32xf32>
    %306 = arith.addf %304, %305 : vector<8x32xf32>
    %307 = math.tanh %306 : vector<8x32xf32>
    %308 = arith.mulf %301, %307 : vector<8x32xf32>
    %c40_112 = arith.constant 40 : index
    %c0_113 = arith.constant 0 : index
    %309 = vector.load %arg21[%c40_112, %c0_113] : memref<64x32xf32, #tpu.memory_space<vmem>>, vector<8x32xf32>
    tpu.vector_store %arg21[%c40_112, %c0_113], %308 {strides = array<i32>} : memref<64x32xf32, #tpu.memory_space<vmem>>, vector<8x32xf32>,
    %c48_114 = arith.constant 48 : index
    %c0_115 = arith.constant 0 : index
    %310 = vector.load %arg20[%c48_114, %c0_115] : memref<64x128xf32, #tpu.memory_space<vmem>>, vector<8x128xf32>
    %cst_116 = arith.constant dense<0.000000e+00> : vector<8x128xf32>
    %311 = tpu.matmul %308, %185, %cst_116 {dimension_numbers = #tpu.dot_dimension_numbers<[1], [0], [0], [1], [0, 0, 1, 1], [], []>} : vector<8x32xf32>, vector<32x128xf32>, vector<8x128xf32> -> vector<8x128xf32>
    %312 = arith.addf %310, %311 : vector<8x128xf32>
    %313 = vector.extract_strided_slice %312 {offsets = [0, 0], sizes = [8, 96], strides = [1, 1]} : vector<8x128xf32> to vector<8x96xf32>
    %314 = arith.negf %313 : vector<8x96xf32>
    %315 = math.exp %314 : vector<8x96xf32>
    %cst_117 = arith.constant 1.000000e+00 : f32
    %316 = vector.broadcast %cst_117 : f32 to vector<8x96xf32>
    %317 = arith.addf %316, %315 : vector<8x96xf32>
    %318 = arith.divf %316, %317 : vector<8x96xf32>
    %319 = vector.extract_strided_slice %318 {offsets = [0, 0], sizes = [8, 32], strides = [1, 1]} : vector<8x96xf32> to vector<8x32xf32>
    %320 = vector.extract_strided_slice %318 {offsets = [0, 32], sizes = [8, 32], strides = [1, 1]} : vector<8x96xf32> to vector<8x32xf32>
    %321 = vector.extract_strided_slice %318 {offsets = [0, 64], sizes = [8, 32], strides = [1, 1]} : vector<8x96xf32> to vector<8x32xf32>
    %322 = vector.extract_strided_slice %312 {offsets = [0, 96], sizes = [8, 32], strides = [1, 1]} : vector<8x128xf32> to vector<8x32xf32>
    %323 = math.tanh %322 : vector<8x32xf32>
    %324 = arith.mulf %320, %306 : vector<8x32xf32>
    %325 = arith.mulf %319, %323 : vector<8x32xf32>
    %326 = arith.addf %324, %325 : vector<8x32xf32>
    %327 = math.tanh %326 : vector<8x32xf32>
    %328 = arith.mulf %321, %327 : vector<8x32xf32>
    %c48_118 = arith.constant 48 : index
    %c0_119 = arith.constant 0 : index
    %329 = vector.load %arg21[%c48_118, %c0_119] : memref<64x32xf32, #tpu.memory_space<vmem>>, vector<8x32xf32>
    tpu.vector_store %arg21[%c48_118, %c0_119], %328 {strides = array<i32>} : memref<64x32xf32, #tpu.memory_space<vmem>>, vector<8x32xf32>,
    %c56_120 = arith.constant 56 : index
    %c0_121 = arith.constant 0 : index
    %330 = vector.load %arg20[%c56_120, %c0_121] : memref<64x128xf32, #tpu.memory_space<vmem>>, vector<8x128xf32>
    %cst_122 = arith.constant dense<0.000000e+00> : vector<8x128xf32>
    %331 = tpu.matmul %328, %185, %cst_122 {dimension_numbers = #tpu.dot_dimension_numbers<[1], [0], [0], [1], [0, 0, 1, 1], [], []>} : vector<8x32xf32>, vector<32x128xf32>, vector<8x128xf32> -> vector<8x128xf32>
    %332 = arith.addf %330, %331 : vector<8x128xf32>
    %333 = vector.extract_strided_slice %332 {offsets = [0, 0], sizes = [8, 96], strides = [1, 1]} : vector<8x128xf32> to vector<8x96xf32>
    %334 = arith.negf %333 : vector<8x96xf32>
    %335 = math.exp %334 : vector<8x96xf32>
    %cst_123 = arith.constant 1.000000e+00 : f32
    %336 = vector.broadcast %cst_123 : f32 to vector<8x96xf32>
    %337 = arith.addf %336, %335 : vector<8x96xf32>
    %338 = arith.divf %336, %337 : vector<8x96xf32>
    %339 = vector.extract_strided_slice %338 {offsets = [0, 0], sizes = [8, 32], strides = [1, 1]} : vector<8x96xf32> to vector<8x32xf32>
    %340 = vector.extract_strided_slice %338 {offsets = [0, 32], sizes = [8, 32], strides = [1, 1]} : vector<8x96xf32> to vector<8x32xf32>
    %341 = vector.extract_strided_slice %338 {offsets = [0, 64], sizes = [8, 32], strides = [1, 1]} : vector<8x96xf32> to vector<8x32xf32>
    %342 = vector.extract_strided_slice %332 {offsets = [0, 96], sizes = [8, 32], strides = [1, 1]} : vector<8x128xf32> to vector<8x32xf32>
    %343 = math.tanh %342 : vector<8x32xf32>
    %344 = arith.mulf %340, %326 : vector<8x32xf32>
    %345 = arith.mulf %339, %343 : vector<8x32xf32>
    %346 = arith.addf %344, %345 : vector<8x32xf32>
    %347 = math.tanh %346 : vector<8x32xf32>
    %348 = arith.mulf %341, %347 : vector<8x32xf32>
    %c56_124 = arith.constant 56 : index
    %c0_125 = arith.constant 0 : index
    %349 = vector.load %arg21[%c56_124, %c0_125] : memref<64x32xf32, #tpu.memory_space<vmem>>, vector<8x32xf32>
    tpu.vector_store %arg21[%c56_124, %c0_125], %348 {strides = array<i32>} : memref<64x32xf32, #tpu.memory_space<vmem>>, vector<8x32xf32>,
    %c1_126 = arith.constant 1 : index
    %c0_127 = arith.constant 0 : index
    %c0_128 = arith.constant 0 : index
    %350 = vector.load %arg18[%c1_126, %c0_127, %c0_128] : memref<2x8x32xf32, #tpu.memory_space<vmem>>, vector<1x8x32xf32>
    %351 = vector.shape_cast %350 : vector<1x8x32xf32> to vector<8x32xf32>
    %352 = vector.shape_cast %348 : vector<8x32xf32> to vector<1x8x32xf32>
    tpu.vector_store %arg18[%c1_126, %c0_127, %c0_128], %352 {strides = array<i32>} : memref<2x8x32xf32, #tpu.memory_space<vmem>>, vector<1x8x32xf32>,
    %c1_129 = arith.constant 1 : index
    %c0_130 = arith.constant 0 : index
    %c0_131 = arith.constant 0 : index
    %353 = vector.load %arg19[%c1_129, %c0_130, %c0_131] : memref<2x8x32xf32, #tpu.memory_space<vmem>>, vector<1x8x32xf32>
    %354 = vector.shape_cast %353 : vector<1x8x32xf32> to vector<8x32xf32>
    %355 = vector.shape_cast %346 : vector<8x32xf32> to vector<1x8x32xf32>
    tpu.vector_store %arg19[%c1_129, %c0_130, %c0_131], %355 {strides = array<i32>} : memref<2x8x32xf32, #tpu.memory_space<vmem>>, vector<1x8x32xf32>,
    %c0_132 = arith.constant 0 : index
    %c0_133 = arith.constant 0 : index
    %356 = vector.load %arg21[%c0_132, %c0_133] : memref<64x32xf32, #tpu.memory_space<vmem>>, vector<64x32xf32>
    %c0_134 = arith.constant 0 : index
    %c0_135 = arith.constant 0 : index
    %357 = vector.load %arg9[%c0_134, %c0_135] : memref<32x32xf32, #tpu.memory_space<vmem>>, vector<32x32xf32>
    %cst_136 = arith.constant dense<0.000000e+00> : vector<64x32xf32>
    %358 = tpu.matmul %356, %357, %cst_136 {dimension_numbers = #tpu.dot_dimension_numbers<[1], [0], [0], [1], [0, 0, 1, 1], [], []>} : vector<64x32xf32>, vector<32x32xf32>, vector<64x32xf32> -> vector<64x32xf32>
    %c0_137 = arith.constant 0 : index
    %c0_138 = arith.constant 0 : index
    %359 = vector.load %arg10[%c0_137, %c0_138] : memref<1x32xf32, #tpu.memory_space<vmem>>, vector<1x32xf32>
    %360 = vector.broadcast %359 : vector<1x32xf32> to vector<64x32xf32>
    %361 = arith.addf %358, %360 : vector<64x32xf32>
    %cst_139 = arith.constant 0.000000e+00 : f32
    %362 = vector.broadcast %cst_139 : f32 to vector<64x32xf32>
    %363 = arith.maximumf %361, %362 : vector<64x32xf32>
    %c0_140 = arith.constant 0 : index
    %c0_141 = arith.constant 0 : index
    %364 = vector.load %arg11[%c0_140, %c0_141] : memref<32x16xf32, #tpu.memory_space<vmem>>, vector<32x16xf32>
    %cst_142 = arith.constant dense<0.000000e+00> : vector<64x16xf32>
    %365 = tpu.matmul %363, %364, %cst_142 {dimension_numbers = #tpu.dot_dimension_numbers<[1], [0], [0], [1], [0, 0, 1, 1], [], []>} : vector<64x32xf32>, vector<32x16xf32>, vector<64x16xf32> -> vector<64x16xf32>
    %c0_143 = arith.constant 0 : index
    %c0_144 = arith.constant 0 : index
    %366 = vector.load %arg12[%c0_143, %c0_144] : memref<1x16xf32, #tpu.memory_space<vmem>>, vector<1x16xf32>
    %367 = vector.broadcast %366 : vector<1x16xf32> to vector<64x16xf32>
    %368 = arith.addf %365, %367 : vector<64x16xf32>
    %cst_145 = arith.constant 0.000000e+00 : f32
    %369 = vector.broadcast %cst_145 : f32 to vector<64x16xf32>
    %370 = arith.maximumf %368, %369 : vector<64x16xf32>
    %c0_146 = arith.constant 0 : index
    %c0_147 = arith.constant 0 : index
    %371 = vector.load %arg13[%c0_146, %c0_147] : memref<16x8xf32, #tpu.memory_space<vmem>>, vector<16x8xf32>
    %cst_148 = arith.constant dense<0.000000e+00> : vector<64x8xf32>
    %372 = tpu.matmul %370, %371, %cst_148 {dimension_numbers = #tpu.dot_dimension_numbers<[1], [0], [0], [1], [0, 0, 1, 1], [], []>} : vector<64x16xf32>, vector<16x8xf32>, vector<64x8xf32> -> vector<64x8xf32>
    %c0_149 = arith.constant 0 : index
    %c0_150 = arith.constant 0 : index
    %373 = vector.load %arg14[%c0_149, %c0_150] : memref<1x8xf32, #tpu.memory_space<vmem>>, vector<1x8xf32>
    %374 = vector.broadcast %373 : vector<1x8xf32> to vector<64x8xf32>
    %375 = arith.addf %372, %374 : vector<64x8xf32>
    %cst_151 = arith.constant 0.000000e+00 : f32
    %376 = vector.broadcast %cst_151 : f32 to vector<64x8xf32>
    %377 = arith.maximumf %375, %376 : vector<64x8xf32>
    %c0_152 = arith.constant 0 : index
    %c0_153 = arith.constant 0 : index
    %378 = vector.load %arg15[%c0_152, %c0_153] : memref<8x128xf32, #tpu.memory_space<vmem>>, vector<8x128xf32>
    %cst_154 = arith.constant dense<0.000000e+00> : vector<64x128xf32>
    %379 = tpu.matmul %377, %378, %cst_154 {dimension_numbers = #tpu.dot_dimension_numbers<[1], [0], [0], [1], [0, 0, 1, 1], [], []>} : vector<64x8xf32>, vector<8x128xf32>, vector<64x128xf32> -> vector<64x128xf32>
    %c0_155 = arith.constant 0 : index
    %c0_156 = arith.constant 0 : index
    %380 = vector.load %arg16[%c0_155, %c0_156] : memref<1x128xf32, #tpu.memory_space<vmem>>, vector<1x128xf32>
    %381 = vector.broadcast %380 : vector<1x128xf32> to vector<64x128xf32>
    %382 = arith.addf %379, %381 : vector<64x128xf32>
    %c0_157 = arith.constant 0 : index
    %c0_158 = arith.constant 0 : index
    %383 = vector.load %arg17[%c0_157, %c0_158] : memref<64x128xf32, #tpu.memory_space<vmem>>, vector<64x128xf32>
    tpu.vector_store %arg17[%c0_157, %c0_158], %382 {strides = array<i32>} : memref<64x128xf32, #tpu.memory_space<vmem>>, vector<64x128xf32>,
    return
  }
}

</mosaic_0001>

<llo_original>
// kernel: lstm_model_forward.1
$region0: #{lstm_model_forward.1}
  #allocation0 [shape = 'u32[]', space=smem, size = 0x4, offset = 0x4, fixed_abs, tag = 'smem constant byte address 0x4 - core index']
  #allocation1 [shape = 'u32[144,128]{1,0:T(1,128)}', space=vmem, size = 0x12000, scoped, tag = 'internal scratch']
  #allocation2 [shape = 'f32[64,128]{1,0:T(8,128)}', space=vmem, size = 0x8000, scoped, tag = 'scratch operand']
  #allocation3 [shape = 'f32[64,32]{1,0:T(8,128)}', space=vmem, size = 0x8000, scoped, tag = 'scratch operand']
  %s0 = inlined_call_operand.vmem [shape: f32[64,8], index: 0, kind: input, shape index: {}]
  %s1 = inlined_call_operand.vmem [shape: f32[8,128], index: 1, kind: input, shape index: {}]
  %s2 = inlined_call_operand.vmem [shape: f32[32,128], index: 2, kind: input, shape index: {}]
  %s3 = inlined_call_operand.vmem [shape: f32[1,128], index: 3, kind: input, shape index: {}]
  %s4 = inlined_call_operand.vmem [shape: f32[32,128], index: 4, kind: input, shape index: {}]
  %s5 = inlined_call_operand.vmem [shape: f32[32,128], index: 5, kind: input, shape index: {}]
  %s6 = inlined_call_operand.vmem [shape: f32[1,128], index: 6, kind: input, shape index: {}]
  %s7 = inlined_call_operand.vmem [shape: f32[2,8,32], index: 7, kind: input, shape index: {}]
  %s8 = inlined_call_operand.vmem [shape: f32[2,8,32], index: 8, kind: input, shape index: {}]
  %s9 = inlined_call_operand.vmem [shape: f32[32,32], index: 9, kind: input, shape index: {}]
  %s10 = inlined_call_operand.vmem [shape: f32[1,32], index: 10, kind: input, shape index: {}]
  %s11 = inlined_call_operand.vmem [shape: f32[32,16], index: 11, kind: input, shape index: {}]
  %s12 = inlined_call_operand.vmem [shape: f32[1,16], index: 12, kind: input, shape index: {}]
  %s13 = inlined_call_operand.vmem [shape: f32[16,8], index: 13, kind: input, shape index: {}]
  %s14 = inlined_call_operand.vmem [shape: f32[1,8], index: 14, kind: input, shape index: {}]
  %s15 = inlined_call_operand.vmem [shape: f32[8,128], index: 15, kind: input, shape index: {}]
  %s16 = inlined_call_operand.vmem [shape: f32[1,128], index: 16, kind: input, shape index: {}]
  %s17 = inlined_call_operand.vmem [shape: f32[64,128], index: 17, kind: output, shape index: {0}]
  %s18 = inlined_call_operand.vmem [shape: f32[2,8,32], index: 18, kind: output, shape index: {1}]
  %s19 = inlined_call_operand.vmem [shape: f32[2,8,32], index: 19, kind: output, shape index: {2}]
  %20 = xla_tuple %s17, %s18, %s19
  %s21 = sld [smem:[#allocation0]]
  $region94: #{lstm_model_forward.1} parent=0
    _
  %s23 = ssub.s32 1, %s21
  %s24 = scalar_select 0, %s23, %s21
  // Predicated region
  $region2: #{lstm_model_forward.1} parent=0 // pred_check
    _
  $region3: #{lstm_model_forward.1} parent=0 // pred_check_branch
    %26 = sbr.rel (0) target = $region5
  $region4: #{lstm_model_forward.1} parent=0 // pred_region
    _
  $region5: #{lstm_model_forward.1} parent=0 // pred_fallthru
    _
  // Predicated region
  $region6: #{lstm_model_forward.1} parent=0 // pred_check
    _
  $region7: #{lstm_model_forward.1} parent=0 // pred_check_branch
    %28 = sbr.rel (0) target = $region9
  $region8: #{lstm_model_forward.1} parent=0 // pred_region
    _
  $region9: #{lstm_model_forward.1} parent=0 // pred_fallthru
    _
  // Predicated region
  $region10: #{lstm_model_forward.1} parent=0 // pred_check
    _
  $region11: #{lstm_model_forward.1} parent=0 // pred_check_branch
    %30 = sbr.rel (0) target = $region13
  $region12: #{lstm_model_forward.1} parent=0 // pred_region
    _
  $region13: #{lstm_model_forward.1} parent=0 // pred_fallthru
    _
  // Predicated region
  $region14: #{lstm_model_forward.1} parent=0 // pred_check
    _
  $region15: #{lstm_model_forward.1} parent=0 // pred_check_branch
    %32 = sbr.rel (0) target = $region17
  $region16: #{lstm_model_forward.1} parent=0 // pred_region
    _
  $region17: #{lstm_model_forward.1} parent=0 // pred_fallthru
    _
  // Predicated region
  $region18: #{lstm_model_forward.1} parent=0 // pred_check
    _
  $region19: #{lstm_model_forward.1} parent=0 // pred_check_branch
    %34 = sbr.rel (0) target = $region21
  $region20: #{lstm_model_forward.1} parent=0 // pred_region
    _
  $region21: #{lstm_model_forward.1} parent=0 // pred_fallthru
    _
  // Predicated region
  $region22: #{lstm_model_forward.1} parent=0 // pred_check
    _
  $region23: #{lstm_model_forward.1} parent=0 // pred_check_branch
    %36 = sbr.rel (0) target = $region25
  $region24: #{lstm_model_forward.1} parent=0 // pred_region
    _
  $region25: #{lstm_model_forward.1} parent=0 // pred_fallthru
    _
  // Predicated region
  $region26: #{lstm_model_forward.1} parent=0 // pred_check
    _
  $region27: #{lstm_model_forward.1} parent=0 // pred_check_branch
    %38 = sbr.rel (0) target = $region29
  $region28: #{lstm_model_forward.1} parent=0 // pred_region
    _
  $region29: #{lstm_model_forward.1} parent=0 // pred_fallthru
    _
  // Predicated region
  $region30: #{lstm_model_forward.1} parent=0 // pred_check
    _
  $region31: #{lstm_model_forward.1} parent=0 // pred_check_branch
    %40 = sbr.rel (0) target = $region33
  $region32: #{lstm_model_forward.1} parent=0 // pred_region
    _
  $region33: #{lstm_model_forward.1} parent=0 // pred_fallthru
    _
  // Predicated region
  $region34: #{lstm_model_forward.1} parent=0 // pred_check
    _
  $region35: #{lstm_model_forward.1} parent=0 // pred_check_branch
    %42 = sbr.rel (0) target = $region37
  $region36: #{lstm_model_forward.1} parent=0 // pred_region
    _
  $region37: #{lstm_model_forward.1} parent=0 // pred_fallthru
    _
  // Predicated region
  $region38: #{lstm_model_forward.1} parent=0 // pred_check
    _
  $region39: #{lstm_model_forward.1} parent=0 // pred_check_branch
    %44 = sbr.rel (0) target = $region41
  $region40: #{lstm_model_forward.1} parent=0 // pred_region
    _
  $region41: #{lstm_model_forward.1} parent=0 // pred_fallthru
    _
  // Predicated region
  $region42: #{lstm_model_forward.1} parent=0 // pred_check
    _
  $region43: #{lstm_model_forward.1} parent=0 // pred_check_branch
    %46 = sbr.rel (0) target = $region45
  $region44: #{lstm_model_forward.1} parent=0 // pred_region
    _
  $region45: #{lstm_model_forward.1} parent=0 // pred_fallthru
    _
  // Predicated region
  $region46: #{lstm_model_forward.1} parent=0 // pred_check
    _
  $region47: #{lstm_model_forward.1} parent=0 // pred_check_branch
    %48 = sbr.rel (0) target = $region49
  $region48: #{lstm_model_forward.1} parent=0 // pred_region
    _
  $region49: #{lstm_model_forward.1} parent=0 // pred_fallthru
    _
  // Predicated region
  $region50: #{lstm_model_forward.1} parent=0 // pred_check
    _
  $region51: #{lstm_model_forward.1} parent=0 // pred_check_branch
    %50 = sbr.rel (0) target = $region53
  $region52: #{lstm_model_forward.1} parent=0 // pred_region
    _
  $region53: #{lstm_model_forward.1} parent=0 // pred_fallthru
    _
  // Predicated region
  $region54: #{lstm_model_forward.1} parent=0 // pred_check
    _
  $region55: #{lstm_model_forward.1} parent=0 // pred_check_branch
    %52 = sbr.rel (0) target = $region57
  $region56: #{lstm_model_forward.1} parent=0 // pred_region
    _
  $region57: #{lstm_model_forward.1} parent=0 // pred_fallthru
    _
  // Predicated region
  $region58: #{lstm_model_forward.1} parent=0 // pred_check
    _
  $region59: #{lstm_model_forward.1} parent=0 // pred_check_branch
    %54 = sbr.rel (0) target = $region61
  $region60: #{lstm_model_forward.1} parent=0 // pred_region
    _
  $region61: #{lstm_model_forward.1} parent=0 // pred_fallthru
    _
  // Predicated region
  $region62: #{lstm_model_forward.1} parent=0 // pred_check
    _
  $region63: #{lstm_model_forward.1} parent=0 // pred_check_branch
    %56 = sbr.rel (0) target = $region65
  $region64: #{lstm_model_forward.1} parent=0 // pred_region
    _
  $region65: #{lstm_model_forward.1} parent=0 // pred_fallthru
    _
  // Predicated region
  $region66: #{lstm_model_forward.1} parent=0 // pred_check
    _
  $region67: #{lstm_model_forward.1} parent=0 // pred_check_branch
    %58 = sbr.rel (0) target = $region69
  $region68: #{lstm_model_forward.1} parent=0 // pred_region
    _
  $region69: #{lstm_model_forward.1} parent=0 // pred_fallthru
    _
  %v59 = vld [vmem:[%s0] sm:$0xff]
  %v60 = vld [vmem:[%s0 + $0x8] sm:$0xff]
  %v61 = vld [vmem:[%s0 + $0x10] sm:$0xff]
  %v62 = vld [vmem:[%s0 + $0x18] sm:$0xff]
  %v63 = vld [vmem:[%s0 + $0x20] sm:$0xff]
  %v64 = vld [vmem:[%s0 + $0x28] sm:$0xff]
  %v65 = vld [vmem:[%s0 + $0x30] sm:$0xff]
  %v66 = vld [vmem:[%s0 + $0x38] sm:$0xff]
  %v67 = vld [vmem:[%s1] sm:$0xff]
  %v68 = vld [vmem:[%s3] sm:$0x1]
  %v70 = vlaneseq
  %v71 = vshrl.u32 %v70, 7
  %v72 = vsub.s32 0, %v71
  %v73 = vrot.slane %v68, %v72
  %vm75 = vcmask 64512
  %v77 = vsel %vm75, %v59, 0
  %v80 = vsel %vm75, %v60, 0
  %v83 = vsel %vm75, %v61, 0
  %v86 = vsel %vm75, %v62, 0
  %v89 = vsel %vm75, %v63, 0
  %v92 = vsel %vm75, %v64, 0
  %v95 = vsel %vm75, %v65, 0
  %v98 = vsel %vm75, %v66, 0
  %100 = vmatprep.subr.mxu0 0.0
  %101 = vmatpush1.msra.mxu0 %v67
  %102 = vmatprep.subr.mxu0 0.0
  %103 = vmatpush1.msra.mxu0 0.0
  %104 = vmatprep.subr.mxu0 0.0
  %105 = vmatpush1.msra.mxu0 0.0
  %106 = vmatprep.subr.mxu0 0.0
  %107 = vmatpush1.msra.mxu0 0.0
  %108 = vmatprep.subr.mxu0 0.0
  %109 = vmatpush1.msra.mxu0 0.0
  %110 = vmatprep.subr.mxu0 0.0
  %111 = vmatpush1.msra.mxu0 0.0
  %112 = vmatprep.subr.mxu0 0.0
  %113 = vmatpush1.msra.mxu0 0.0
  %114 = vmatprep.subr.mxu0 0.0
  %115 = vmatpush1.msra.mxu0 0.0
  %116 = vmatprep.subr.mxu0 0.0
  %117 = vmatpush1.msra.mxu0 0.0
  %118 = vmatprep.subr.mxu0 0.0
  %119 = vmatpush1.msra.mxu0 0.0
  %120 = vmatprep.subr.mxu0 0.0
  %121 = vmatpush1.msra.mxu0 0.0
  %122 = vmatprep.subr.mxu0 0.0
  %123 = vmatpush1.msra.mxu0 0.0
  %124 = vmatprep.subr.mxu0 0.0
  %125 = vmatpush1.msra.mxu0 0.0
  %126 = vmatprep.subr.mxu0 0.0
  %127 = vmatpush1.msra.mxu0 0.0
  %128 = vmatprep.subr.mxu0 0.0
  %129 = vmatpush1.msra.mxu0 0.0
  %130 = vmatprep.subr.mxu0 0.0
  %131 = vmatpush1.msra.mxu0 0.0
  %132 = vmatprep.subr.mxu0 0.0
  %133 = vmatpush1.msra.mxu0 0.0
  %134 = vmatprep.subr.mxu0 0.0
  %135 = vmatpush1.msra.mxu0 0.0
  %136 = vmatprep.subr.mxu0 0.0
  %137 = vmatpush1.msra.mxu0 0.0
  %138 = vmatprep.subr.mxu0 0.0
  %139 = vmatpush1.msra.mxu0 0.0
  %140 = vmatprep.subr.mxu0 0.0
  %141 = vmatpush1.msra.mxu0 0.0
  %142 = vmatprep.subr.mxu0 0.0
  %143 = vmatpush1.msra.mxu0 0.0
  %144 = vmatprep.subr.mxu0 0.0
  %145 = vmatpush1.msra.mxu0 0.0
  %146 = vmatprep.subr.mxu0 0.0
  %147 = vmatpush1.msra.mxu0 0.0
  %148 = vmatprep.subr.mxu0 0.0
  %149 = vmatpush1.msra.mxu0 0.0
  %150 = vmatprep.subr.mxu0 0.0
  %151 = vmatpush1.msra.mxu0 0.0
  %152 = vmatprep.subr.mxu0 0.0
  %153 = vmatpush1.msra.mxu0 0.0
  %154 = vmatprep.subr.mxu0 0.0
  %155 = vmatpush1.msra.mxu0 0.0
  %156 = vmatprep.subr.mxu0 0.0
  %157 = vmatpush1.msra.mxu0 0.0
  %158 = vmatprep.subr.mxu0 0.0
  %159 = vmatpush1.msra.mxu0 0.0
  %160 = vmatprep.subr.mxu0 0.0
  %161 = vmatpush1.msra.mxu0 0.0
  %162 = vmatprep.subr.mxu0 0.0
  %163 = vmatpush1.msra.mxu0 0.0
  %164 = vmatprep.mubr.f32.mxu0 0.0
  %165 = vmatmul.mubr.f32.gmra.mrb[0].mxu0 %v77
  %v166 = vpop.f32.mrb[0].mxu0
  %v167 = vadd.f32 %v73, %v166
  %v168 = vpop.f32.mrb[0].mxu0
  %169 = vmatprep.mubr.f32.mxu0 0.0
  %170 = vmatmul.mubr.f32.gmra.mrb[0].mxu0 %v80
  %v171 = vpop.f32.mrb[0].mxu0
  %v172 = vadd.f32 %v73, %v171
  %v173 = vpop.f32.mrb[0].mxu0
  %174 = vmatprep.mubr.f32.mxu0 0.0
  %175 = vmatmul.mubr.f32.gmra.mrb[0].mxu0 %v83
  %v176 = vpop.f32.mrb[0].mxu0
  %v177 = vadd.f32 %v73, %v176
  %v178 = vpop.f32.mrb[0].mxu0
  %179 = vmatprep.mubr.f32.mxu0 0.0
  %180 = vmatmul.mubr.f32.gmra.mrb[0].mxu0 %v86
  %v181 = vpop.f32.mrb[0].mxu0
  %v182 = vadd.f32 %v73, %v181
  %v183 = vpop.f32.mrb[0].mxu0
  %184 = vmatprep.mubr.f32.mxu0 0.0
  %185 = vmatmul.mubr.f32.gmra.mrb[0].mxu0 %v89
  %v186 = vpop.f32.mrb[0].mxu0
  %v187 = vadd.f32 %v73, %v186
  %v188 = vpop.f32.mrb[0].mxu0
  %189 = vmatprep.mubr.f32.mxu0 0.0
  %190 = vmatmul.mubr.f32.gmra.mrb[0].mxu0 %v92
  %v191 = vpop.f32.mrb[0].mxu0
  %v192 = vadd.f32 %v73, %v191
  %v193 = vpop.f32.mrb[0].mxu0
  %194 = vmatprep.mubr.f32.mxu0 0.0
  %195 = vmatmul.mubr.f32.gmra.mrb[0].mxu0 %v95
  %v196 = vpop.f32.mrb[0].mxu0
  %v197 = vadd.f32 %v73, %v196
  %v198 = vpop.f32.mrb[0].mxu0
  %199 = vmatprep.mubr.f32.mxu0 0.0
  %200 = vmatmul.mubr.f32.gmra.mrb[0].mxu0 %v98
  %v201 = vpop.f32.mrb[0].mxu0
  %v202 = vadd.f32 %v73, %v201
  %v203 = vpop.f32.mrb[0].mxu0
  %204 = vdwg.mxu0
  %205 = vst [vmem:[#allocation2] sm:$0xff] %v167
  %206 = vst [vmem:[#allocation2 + $0x8] sm:$0xff] %v172
  %207 = vst [vmem:[#allocation2 + $0x10] sm:$0xff] %v177
  %208 = vst [vmem:[#allocation2 + $0x18] sm:$0xff] %v182
  %209 = vst [vmem:[#allocation2 + $0x20] sm:$0xff] %v187
  %210 = vst [vmem:[#allocation2 + $0x28] sm:$0xff] %v192
  %211 = vst [vmem:[#allocation2 + $0x30] sm:$0xff] %v197
  %212 = vst [vmem:[#allocation2 + $0x38] sm:$0xff] %v202
  %v213 = vld [vmem:[%s2] sm:$0xff]
  %v214 = vld [vmem:[%s2 + $0x8] sm:$0xff]
  %v215 = vld [vmem:[%s2 + $0x10] sm:$0xff]
  %v216 = vld [vmem:[%s2 + $0x18] sm:$0xff]
  %v217 = vld [vmem:[%s7] sm:$0xff]
  %v218 = vld [vmem:[%s8] sm:$0xff]
  %v219 = vld [vmem:[#allocation2] sm:$0xff]
  %vm220 = vcmask 261120
  %v222 = vsel %vm220, %v217, 0
  %224 = vmatprep.subr.mxu0 0.0
  %225 = vmatpush1.msra.mxu0 %v213
  %226 = vmatprep.subr.mxu0 0.0
  %227 = vmatpush1.msra.mxu0 %v214
  %228 = vmatprep.subr.mxu0 0.0
  %229 = vmatpush1.msra.mxu0 %v215
  %230 = vmatprep.subr.mxu0 0.0
  %231 = vmatpush1.msra.mxu0 %v216
  %232 = vmatprep.subr.mxu0 0.0
  %233 = vmatpush1.msra.mxu0 0.0
  %234 = vmatprep.subr.mxu0 0.0
  %235 = vmatpush1.msra.mxu0 0.0
  %236 = vmatprep.subr.mxu0 0.0
  %237 = vmatpush1.msra.mxu0 0.0
  %238 = vmatprep.subr.mxu0 0.0
  %239 = vmatpush1.msra.mxu0 0.0
  %240 = vmatprep.subr.mxu0 0.0
  %241 = vmatpush1.msra.mxu0 0.0
  %242 = vmatprep.subr.mxu0 0.0
  %243 = vmatpush1.msra.mxu0 0.0
  %244 = vmatprep.subr.mxu0 0.0
  %245 = vmatpush1.msra.mxu0 0.0
  %246 = vmatprep.subr.mxu0 0.0
  %247 = vmatpush1.msra.mxu0 0.0
  %248 = vmatprep.subr.mxu0 0.0
  %249 = vmatpush1.msra.mxu0 0.0
  %250 = vmatprep.subr.mxu0 0.0
  %251 = vmatpush1.msra.mxu0 0.0
  %252 = vmatprep.subr.mxu0 0.0
  %253 = vmatpush1.msra.mxu0 0.0
  %254 = vmatprep.subr.mxu0 0.0
  %255 = vmatpush1.msra.mxu0 0.0
  %256 = vmatprep.subr.mxu0 0.0
  %257 = vmatpush1.msra.mxu0 0.0
  %258 = vmatprep.subr.mxu0 0.0
  %259 = vmatpush1.msra.mxu0 0.0
  %260 = vmatprep.subr.mxu0 0.0
  %261 = vmatpush1.msra.mxu0 0.0
  %262 = vmatprep.subr.mxu0 0.0
  %263 = vmatpush1.msra.mxu0 0.0
  %264 = vmatprep.subr.mxu0 0.0
  %265 = vmatpush1.msra.mxu0 0.0
  %266 = vmatprep.subr.mxu0 0.0
  %267 = vmatpush1.msra.mxu0 0.0
  %268 = vmatprep.subr.mxu0 0.0
  %269 = vmatpush1.msra.mxu0 0.0
  %270 = vmatprep.subr.mxu0 0.0
  %271 = vmatpush1.msra.mxu0 0.0
  %272 = vmatprep.subr.mxu0 0.0
  %273 = vmatpush1.msra.mxu0 0.0
  %274 = vmatprep.subr.mxu0 0.0
  %275 = vmatpush1.msra.mxu0 0.0
  %276 = vmatprep.subr.mxu0 0.0
  %277 = vmatpush1.msra.mxu0 0.0
  %278 = vmatprep.subr.mxu0 0.0
  %279 = vmatpush1.msra.mxu0 0.0
  %280 = vmatprep.subr.mxu0 0.0
  %281 = vmatpush1.msra.mxu0 0.0
  %282 = vmatprep.subr.mxu0 0.0
  %283 = vmatpush1.msra.mxu0 0.0
  %284 = vmatprep.subr.mxu0 0.0
  %285 = vmatpush1.msra.mxu0 0.0
  %286 = vmatprep.subr.mxu0 0.0
  %287 = vmatpush1.msra.mxu0 0.0
  %288 = vmatprep.mubr.f32.mxu0 0.0
  %289 = vmatmul.mubr.f32.gmra.mrb[0].mxu0 %v222
  %v290 = vpop.f32.mrb[0].mxu0
  %v291 = vadd.f32 0.0, %v290
  %v292 = vpop.f32.mrb[0].mxu0
  %293 = vdwg.mxu0
  %v294 = vadd.f32 %v219, %v291
  %v295 = vxor.u32 %v294, 2147483648
  %v296 = vmul.f32 %v295, 1.442695
  %v297 = vpow.pop %v296
  %v298 = vadd.f32 %v297, 1.0
  %v299 = vrcp.pop %v298
  %v300 = vmul.f32 1.0, %v299
  %v301 = vtanh.pop %v294
  %303 = vrot.lane.b32.xlu0 %v218, 32
  %v304 = vpop.permute.xlu0 %303
  %v306 = vmul.f32 %v300, %v304
  %308 = vrot.lane.b32.xlu0 %v301, 32
  %v309 = vpop.permute.xlu0 %308
  %v311 = vmul.f32 %v300, %v309
  %313 = vrot.lane.b32.xlu0 %v311, 32
  %v314 = vpop.permute.xlu0 %313
  %v316 = vadd.f32 %v306, %v314
  %v317 = vtanh.pop %v316
  %319 = vrot.lane.b32.xlu0 %v317, 32
  %v320 = vpop.permute.xlu0 %319
  %v322 = vmul.f32 %v300, %v320
  %324 = vrot.lane.b32.xlu0 %v322, 64
  %v325 = vpop.permute.xlu0 %324
  %327 = vst.msk [vmem:[#allocation3] sm:$0xff] %vm220, %v325
  %v328 = vld [vmem:[#allocation2 + $0x8] sm:$0xff]
  %v329 = vsel %vm220, %v325, 0
  %331 = vmatprep.subr.mxu0 0.0
  %332 = vmatpush1.msra.mxu0 %v213
  %333 = vmatprep.subr.mxu0 0.0
  %334 = vmatpush1.msra.mxu0 %v214
  %335 = vmatprep.subr.mxu0 0.0
  %336 = vmatpush1.msra.mxu0 %v215
  %337 = vmatprep.subr.mxu0 0.0
  %338 = vmatpush1.msra.mxu0 %v216
  %339 = vmatprep.subr.mxu0 0.0
  %340 = vmatpush1.msra.mxu0 0.0
  %341 = vmatprep.subr.mxu0 0.0
  %342 = vmatpush1.msra.mxu0 0.0
  %343 = vmatprep.subr.mxu0 0.0
  %344 = vmatpush1.msra.mxu0 0.0
  %345 = vmatprep.subr.mxu0 0.0
  %346 = vmatpush1.msra.mxu0 0.0
  %347 = vmatprep.subr.mxu0 0.0
  %348 = vmatpush1.msra.mxu0 0.0
  %349 = vmatprep.subr.mxu0 0.0
  %350 = vmatpush1.msra.mxu0 0.0
  %351 = vmatprep.subr.mxu0 0.0
  %352 = vmatpush1.msra.mxu0 0.0
  %353 = vmatprep.subr.mxu0 0.0
  %354 = vmatpush1.msra.mxu0 0.0
  %355 = vmatprep.subr.mxu0 0.0
  %356 = vmatpush1.msra.mxu0 0.0
  %357 = vmatprep.subr.mxu0 0.0
  %358 = vmatpush1.msra.mxu0 0.0
  %359 = vmatprep.subr.mxu0 0.0
  %360 = vmatpush1.msra.mxu0 0.0
  %361 = vmatprep.subr.mxu0 0.0
  %362 = vmatpush1.msra.mxu0 0.0
  %363 = vmatprep.subr.mxu0 0.0
  %364 = vmatpush1.msra.mxu0 0.0
  %365 = vmatprep.subr.mxu0 0.0
  %366 = vmatpush1.msra.mxu0 0.0
  %367 = vmatprep.subr.mxu0 0.0
  %368 = vmatpush1.msra.mxu0 0.0
  %369 = vmatprep.subr.mxu0 0.0
  %370 = vmatpush1.msra.mxu0 0.0
  %371 = vmatprep.subr.mxu0 0.0
  %372 = vmatpush1.msra.mxu0 0.0
  %373 = vmatprep.subr.mxu0 0.0
  %374 = vmatpush1.msra.mxu0 0.0
  %375 = vmatprep.subr.mxu0 0.0
  %376 = vmatpush1.msra.mxu0 0.0
  %377 = vmatprep.subr.mxu0 0.0
  %378 = vmatpush1.msra.mxu0 0.0
  %379 = vmatprep.subr.mxu0 0.0
  %380 = vmatpush1.msra.mxu0 0.0
  %381 = vmatprep.subr.mxu0 0.0
  %382 = vmatpush1.msra.mxu0 0.0
  %383 = vmatprep.subr.mxu0 0.0
  %384 = vmatpush1.msra.mxu0 0.0
  %385 = vmatprep.subr.mxu0 0.0
  %386 = vmatpush1.msra.mxu0 0.0
  %387 = vmatprep.subr.mxu0 0.0
  %388 = vmatpush1.msra.mxu0 0.0
  %389 = vmatprep.subr.mxu0 0.0
  %390 = vmatpush1.msra.mxu0 0.0
  %391 = vmatprep.subr.mxu0 0.0
  %392 = vmatpush1.msra.mxu0 0.0
  %393 = vmatprep.subr.mxu0 0.0
  %394 = vmatpush1.msra.mxu0 0.0
  %395 = vmatprep.mubr.f32.mxu0 0.0
  %396 = vmatmul.mubr.f32.gmra.mrb[0].mxu0 %v329
  %v397 = vpop.f32.mrb[0].mxu0
  %v398 = vadd.f32 0.0, %v397
  %v399 = vpop.f32.mrb[0].mxu0
  %400 = vdwg.mxu0
  %v401 = vadd.f32 %v328, %v398
  %v402 = vxor.u32 %v401, 2147483648
  %v403 = vmul.f32 %v402, 1.442695
  %v404 = vpow.pop %v403
  %v405 = vadd.f32 %v404, 1.0
  %v406 = vrcp.pop %v405
  %v407 = vmul.f32 1.0, %v406
  %v408 = vtanh.pop %v401
  %v409 = vmul.f32 %v407, %v316
  %411 = vrot.lane.b32.xlu0 %v408, 32
  %v412 = vpop.permute.xlu0 %411
  %v414 = vmul.f32 %v407, %v412
  %416 = vrot.lane.b32.xlu0 %v414, 32
  %v417 = vpop.permute.xlu0 %416
  %v419 = vadd.f32 %v409, %v417
  %v420 = vtanh.pop %v419
  %422 = vrot.lane.b32.xlu0 %v420, 32
  %v423 = vpop.permute.xlu0 %422
  %v425 = vmul.f32 %v407, %v423
  %427 = vrot.lane.b32.xlu0 %v425, 64
  %v428 = vpop.permute.xlu0 %427
  %430 = vst.msk [vmem:[#allocation3 + $0x8] sm:$0xff] %vm220, %v428
  %v431 = vld [vmem:[#allocation2 + $0x10] sm:$0xff]
  %v432 = vsel %vm220, %v428, 0
  %434 = vmatprep.subr.mxu0 0.0
  %435 = vmatpush1.msra.mxu0 %v213
  %436 = vmatprep.subr.mxu0 0.0
  %437 = vmatpush1.msra.mxu0 %v214
  %438 = vmatprep.subr.mxu0 0.0
  %439 = vmatpush1.msra.mxu0 %v215
  %440 = vmatprep.subr.mxu0 0.0
  %441 = vmatpush1.msra.mxu0 %v216
  %442 = vmatprep.subr.mxu0 0.0
  %443 = vmatpush1.msra.mxu0 0.0
  %444 = vmatprep.subr.mxu0 0.0
  %445 = vmatpush1.msra.mxu0 0.0
  %446 = vmatprep.subr.mxu0 0.0
  %447 = vmatpush1.msra.mxu0 0.0
  %448 = vmatprep.subr.mxu0 0.0
  %449 = vmatpush1.msra.mxu0 0.0
  %450 = vmatprep.subr.mxu0 0.0
  %451 = vmatpush1.msra.mxu0 0.0
  %452 = vmatprep.subr.mxu0 0.0
  %453 = vmatpush1.msra.mxu0 0.0
  %454 = vmatprep.subr.mxu0 0.0
  %455 = vmatpush1.msra.mxu0 0.0
  %456 = vmatprep.subr.mxu0 0.0
  %457 = vmatpush1.msra.mxu0 0.0
  %458 = vmatprep.subr.mxu0 0.0
  %459 = vmatpush1.msra.mxu0 0.0
  %460 = vmatprep.subr.mxu0 0.0
  %461 = vmatpush1.msra.mxu0 0.0
  %462 = vmatprep.subr.mxu0 0.0
  %463 = vmatpush1.msra.mxu0 0.0
  %464 = vmatprep.subr.mxu0 0.0
  %465 = vmatpush1.msra.mxu0 0.0
  %466 = vmatprep.subr.mxu0 0.0
  %467 = vmatpush1.msra.mxu0 0.0
  %468 = vmatprep.subr.mxu0 0.0
  %469 = vmatpush1.msra.mxu0 0.0
  %470 = vmatprep.subr.mxu0 0.0
  %471 = vmatpush1.msra.mxu0 0.0
  %472 = vmatprep.subr.mxu0 0.0
  %473 = vmatpush1.msra.mxu0 0.0
  %474 = vmatprep.subr.mxu0 0.0
  %475 = vmatpush1.msra.mxu0 0.0
  %476 = vmatprep.subr.mxu0 0.0
  %477 = vmatpush1.msra.mxu0 0.0
  %478 = vmatprep.subr.mxu0 0.0
  %479 = vmatpush1.msra.mxu0 0.0
  %480 = vmatprep.subr.mxu0 0.0
  %481 = vmatpush1.msra.mxu0 0.0
  %482 = vmatprep.subr.mxu0 0.0
  %483 = vmatpush1.msra.mxu0 0.0
  %484 = vmatprep.subr.mxu0 0.0
  %485 = vmatpush1.msra.mxu0 0.0
  %486 = vmatprep.subr.mxu0 0.0
  %487 = vmatpush1.msra.mxu0 0.0
  %488 = vmatprep.subr.mxu0 0.0
  %489 = vmatpush1.msra.mxu0 0.0
  %490 = vmatprep.subr.mxu0 0.0
  %491 = vmatpush1.msra.mxu0 0.0
  %492 = vmatprep.subr.mxu0 0.0
  %493 = vmatpush1.msra.mxu0 0.0
  %494 = vmatprep.subr.mxu0 0.0
  %495 = vmatpush1.msra.mxu0 0.0
  %496 = vmatprep.subr.mxu0 0.0
  %497 = vmatpush1.msra.mxu0 0.0
  %498 = vmatprep.mubr.f32.mxu0 0.0
  %499 = vmatmul.mubr.f32.gmra.mrb[0].mxu0 %v432
  %v500 = vpop.f32.mrb[0].mxu0
  %v501 = vadd.f32 0.0, %v500
  %v502 = vpop.f32.mrb[0].mxu0
  %503 = vdwg.mxu0
  %v504 = vadd.f32 %v431, %v501
  %v505 = vxor.u32 %v504, 2147483648
  %v506 = vmul.f32 %v505, 1.442695
  %v507 = vpow.pop %v506
  %v508 = vadd.f32 %v507, 1.0
  %v509 = vrcp.pop %v508
  %v510 = vmul.f32 1.0, %v509
  %v511 = vtanh.pop %v504
  %v512 = vmul.f32 %v510, %v419
  %514 = vrot.lane.b32.xlu0 %v511, 32
  %v515 = vpop.permute.xlu0 %514
  %v517 = vmul.f32 %v510, %v515
  %519 = vrot.lane.b32.xlu0 %v517, 32
  %v520 = vpop.permute.xlu0 %519
  %v522 = vadd.f32 %v512, %v520
  %v523 = vtanh.pop %v522
  %525 = vrot.lane.b32.xlu0 %v523, 32
  %v526 = vpop.permute.xlu0 %525
  %v528 = vmul.f32 %v510, %v526
  %530 = vrot.lane.b32.xlu0 %v528, 64
  %v531 = vpop.permute.xlu0 %530
  %533 = vst.msk [vmem:[#allocation3 + $0x10] sm:$0xff] %vm220, %v531
  %v534 = vld [vmem:[#allocation2 + $0x18] sm:$0xff]
  %v535 = vsel %vm220, %v531, 0
  %537 = vmatprep.subr.mxu0 0.0
  %538 = vmatpush1.msra.mxu0 %v213
  %539 = vmatprep.subr.mxu0 0.0
  %540 = vmatpush1.msra.mxu0 %v214
  %541 = vmatprep.subr.mxu0 0.0
  %542 = vmatpush1.msra.mxu0 %v215
  %543 = vmatprep.subr.mxu0 0.0
  %544 = vmatpush1.msra.mxu0 %v216
  %545 = vmatprep.subr.mxu0 0.0
  %546 = vmatpush1.msra.mxu0 0.0
  %547 = vmatprep.subr.mxu0 0.0
  %548 = vmatpush1.msra.mxu0 0.0
  %549 = vmatprep.subr.mxu0 0.0
  %550 = vmatpush1.msra.mxu0 0.0
  %551 = vmatprep.subr.mxu0 0.0
  %552 = vmatpush1.msra.mxu0 0.0
  %553 = vmatprep.subr.mxu0 0.0
  %554 = vmatpush1.msra.mxu0 0.0
  %555 = vmatprep.subr.mxu0 0.0
  %556 = vmatpush1.msra.mxu0 0.0
  %557 = vmatprep.subr.mxu0 0.0
  %558 = vmatpush1.msra.mxu0 0.0
  %559 = vmatprep.subr.mxu0 0.0
  %560 = vmatpush1.msra.mxu0 0.0
  %561 = vmatprep.subr.mxu0 0.0
  %562 = vmatpush1.msra.mxu0 0.0
  %563 = vmatprep.subr.mxu0 0.0
  %564 = vmatpush1.msra.mxu0 0.0
  %565 = vmatprep.subr.mxu0 0.0
  %566 = vmatpush1.msra.mxu0 0.0
  %567 = vmatprep.subr.mxu0 0.0
  %568 = vmatpush1.msra.mxu0 0.0
  %569 = vmatprep.subr.mxu0 0.0
  %570 = vmatpush1.msra.mxu0 0.0
  %571 = vmatprep.subr.mxu0 0.0
  %572 = vmatpush1.msra.mxu0 0.0
  %573 = vmatprep.subr.mxu0 0.0
  %574 = vmatpush1.msra.mxu0 0.0
  %575 = vmatprep.subr.mxu0 0.0
  %576 = vmatpush1.msra.mxu0 0.0
  %577 = vmatprep.subr.mxu0 0.0
  %578 = vmatpush1.msra.mxu0 0.0
  %579 = vmatprep.subr.mxu0 0.0
  %580 = vmatpush1.msra.mxu0 0.0
  %581 = vmatprep.subr.mxu0 0.0
  %582 = vmatpush1.msra.mxu0 0.0
  %583 = vmatprep.subr.mxu0 0.0
  %584 = vmatpush1.msra.mxu0 0.0
  %585 = vmatprep.subr.mxu0 0.0
  %586 = vmatpush1.msra.mxu0 0.0
  %587 = vmatprep.subr.mxu0 0.0
  %588 = vmatpush1.msra.mxu0 0.0
  %589 = vmatprep.subr.mxu0 0.0
  %590 = vmatpush1.msra.mxu0 0.0
  %591 = vmatprep.subr.mxu0 0.0
  %592 = vmatpush1.msra.mxu0 0.0
  %593 = vmatprep.subr.mxu0 0.0
  %594 = vmatpush1.msra.mxu0 0.0
  %595 = vmatprep.subr.mxu0 0.0
  %596 = vmatpush1.msra.mxu0 0.0
  %597 = vmatprep.subr.mxu0 0.0
  %598 = vmatpush1.msra.mxu0 0.0
  %599 = vmatprep.subr.mxu0 0.0
  %600 = vmatpush1.msra.mxu0 0.0
  %601 = vmatprep.mubr.f32.mxu0 0.0
  %602 = vmatmul.mubr.f32.gmra.mrb[0].mxu0 %v535
  %v603 = vpop.f32.mrb[0].mxu0
  %v604 = vadd.f32 0.0, %v603
  %v605 = vpop.f32.mrb[0].mxu0
  %606 = vdwg.mxu0
  %v607 = vadd.f32 %v534, %v604
  %v608 = vxor.u32 %v607, 2147483648
  %v609 = vmul.f32 %v608, 1.442695
  %v610 = vpow.pop %v609
  %v611 = vadd.f32 %v610, 1.0
  %v612 = vrcp.pop %v611
  %v613 = vmul.f32 1.0, %v612
  %v614 = vtanh.pop %v607
  %v615 = vmul.f32 %v613, %v522
  %617 = vrot.lane.b32.xlu0 %v614, 32
  %v618 = vpop.permute.xlu0 %617
  %v620 = vmul.f32 %v613, %v618
  %622 = vrot.lane.b32.xlu0 %v620, 32
  %v623 = vpop.permute.xlu0 %622
  %v625 = vadd.f32 %v615, %v623
  %v626 = vtanh.pop %v625
  %628 = vrot.lane.b32.xlu0 %v626, 32
  %v629 = vpop.permute.xlu0 %628
  %v631 = vmul.f32 %v613, %v629
  %633 = vrot.lane.b32.xlu0 %v631, 64
  %v634 = vpop.permute.xlu0 %633
  %636 = vst.msk [vmem:[#allocation3 + $0x18] sm:$0xff] %vm220, %v634
  %v637 = vld [vmem:[#allocation2 + $0x20] sm:$0xff]
  %v638 = vsel %vm220, %v634, 0
  %640 = vmatprep.subr.mxu0 0.0
  %641 = vmatpush1.msra.mxu0 %v213
  %642 = vmatprep.subr.mxu0 0.0
  %643 = vmatpush1.msra.mxu0 %v214
  %644 = vmatprep.subr.mxu0 0.0
  %645 = vmatpush1.msra.mxu0 %v215
  %646 = vmatprep.subr.mxu0 0.0
  %647 = vmatpush1.msra.mxu0 %v216
  %648 = vmatprep.subr.mxu0 0.0
  %649 = vmatpush1.msra.mxu0 0.0
  %650 = vmatprep.subr.mxu0 0.0
  %651 = vmatpush1.msra.mxu0 0.0
  %652 = vmatprep.subr.mxu0 0.0
  %653 = vmatpush1.msra.mxu0 0.0
  %654 = vmatprep.subr.mxu0 0.0
  %655 = vmatpush1.msra.mxu0 0.0
  %656 = vmatprep.subr.mxu0 0.0
  %657 = vmatpush1.msra.mxu0 0.0
  %658 = vmatprep.subr.mxu0 0.0
  %659 = vmatpush1.msra.mxu0 0.0
  %660 = vmatprep.subr.mxu0 0.0
  %661 = vmatpush1.msra.mxu0 0.0
  %662 = vmatprep.subr.mxu0 0.0
  %663 = vmatpush1.msra.mxu0 0.0
  %664 = vmatprep.subr.mxu0 0.0
  %665 = vmatpush1.msra.mxu0 0.0
  %666 = vmatprep.subr.mxu0 0.0
  %667 = vmatpush1.msra.mxu0 0.0
  %668 = vmatprep.subr.mxu0 0.0
  %669 = vmatpush1.msra.mxu0 0.0
  %670 = vmatprep.subr.mxu0 0.0
  %671 = vmatpush1.msra.mxu0 0.0
  %672 = vmatprep.subr.mxu0 0.0
  %673 = vmatpush1.msra.mxu0 0.0
  %674 = vmatprep.subr.mxu0 0.0
  %675 = vmatpush1.msra.mxu0 0.0
  %676 = vmatprep.subr.mxu0 0.0
  %677 = vmatpush1.msra.mxu0 0.0
  %678 = vmatprep.subr.mxu0 0.0
  %679 = vmatpush1.msra.mxu0 0.0
  %680 = vmatprep.subr.mxu0 0.0
  %681 = vmatpush1.msra.mxu0 0.0
  %682 = vmatprep.subr.mxu0 0.0
  %683 = vmatpush1.msra.mxu0 0.0
  %684 = vmatprep.subr.mxu0 0.0
  %685 = vmatpush1.msra.mxu0 0.0
  %686 = vmatprep.subr.mxu0 0.0
  %687 = vmatpush1.msra.mxu0 0.0
  %688 = vmatprep.subr.mxu0 0.0
  %689 = vmatpush1.msra.mxu0 0.0
  %690 = vmatprep.subr.mxu0 0.0
  %691 = vmatpush1.msra.mxu0 0.0
  %692 = vmatprep.subr.mxu0 0.0
  %693 = vmatpush1.msra.mxu0 0.0
  %694 = vmatprep.subr.mxu0 0.0
  %695 = vmatpush1.msra.mxu0 0.0
  %696 = vmatprep.subr.mxu0 0.0
  %697 = vmatpush1.msra.mxu0 0.0
  %698 = vmatprep.subr.mxu0 0.0
  %699 = vmatpush1.msra.mxu0 0.0
  %700 = vmatprep.subr.mxu0 0.0
  %701 = vmatpush1.msra.mxu0 0.0
  %702 = vmatprep.subr.mxu0 0.0
  %703 = vmatpush1.msra.mxu0 0.0
  %704 = vmatprep.mubr.f32.mxu0 0.0
  %705 = vmatmul.mubr.f32.gmra.mrb[0].mxu0 %v638
  %v706 = vpop.f32.mrb[0].mxu0
  %v707 = vadd.f32 0.0, %v706
  %v708 = vpop.f32.mrb[0].mxu0
  %709 = vdwg.mxu0
  %v710 = vadd.f32 %v637, %v707
  %v711 = vxor.u32 %v710, 2147483648
  %v712 = vmul.f32 %v711, 1.442695
  %v713 = vpow.pop %v712
  %v714 = vadd.f32 %v713, 1.0
  %v715 = vrcp.pop %v714
  %v716 = vmul.f32 1.0, %v715
  %v717 = vtanh.pop %v710
  %v718 = vmul.f32 %v716, %v625
  %720 = vrot.lane.b32.xlu0 %v717, 32
  %v721 = vpop.permute.xlu0 %720
  %v723 = vmul.f32 %v716, %v721
  %725 = vrot.lane.b32.xlu0 %v723, 32
  %v726 = vpop.permute.xlu0 %725
  %v728 = vadd.f32 %v718, %v726
  %v729 = vtanh.pop %v728
  %731 = vrot.lane.b32.xlu0 %v729, 32
  %v732 = vpop.permute.xlu0 %731
  %v734 = vmul.f32 %v716, %v732
  %736 = vrot.lane.b32.xlu0 %v734, 64
  %v737 = vpop.permute.xlu0 %736
  %739 = vst.msk [vmem:[#allocation3 + $0x20] sm:$0xff] %vm220, %v737
  %v740 = vld [vmem:[#allocation2 + $0x28] sm:$0xff]
  %v741 = vsel %vm220, %v737, 0
  %743 = vmatprep.subr.mxu0 0.0
  %744 = vmatpush1.msra.mxu0 %v213
  %745 = vmatprep.subr.mxu0 0.0
  %746 = vmatpush1.msra.mxu0 %v214
  %747 = vmatprep.subr.mxu0 0.0
  %748 = vmatpush1.msra.mxu0 %v215
  %749 = vmatprep.subr.mxu0 0.0
  %750 = vmatpush1.msra.mxu0 %v216
  %751 = vmatprep.subr.mxu0 0.0
  %752 = vmatpush1.msra.mxu0 0.0
  %753 = vmatprep.subr.mxu0 0.0
  %754 = vmatpush1.msra.mxu0 0.0
  %755 = vmatprep.subr.mxu0 0.0
  %756 = vmatpush1.msra.mxu0 0.0
  %757 = vmatprep.subr.mxu0 0.0
  %758 = vmatpush1.msra.mxu0 0.0
  %759 = vmatprep.subr.mxu0 0.0
  %760 = vmatpush1.msra.mxu0 0.0
  %761 = vmatprep.subr.mxu0 0.0
  %762 = vmatpush1.msra.mxu0 0.0
  %763 = vmatprep.subr.mxu0 0.0
  %764 = vmatpush1.msra.mxu0 0.0
  %765 = vmatprep.subr.mxu0 0.0
  %766 = vmatpush1.msra.mxu0 0.0
  %767 = vmatprep.subr.mxu0 0.0
  %768 = vmatpush1.msra.mxu0 0.0
  %769 = vmatprep.subr.mxu0 0.0
  %770 = vmatpush1.msra.mxu0 0.0
  %771 = vmatprep.subr.mxu0 0.0
  %772 = vmatpush1.msra.mxu0 0.0
  %773 = vmatprep.subr.mxu0 0.0
  %774 = vmatpush1.msra.mxu0 0.0
  %775 = vmatprep.subr.mxu0 0.0
  %776 = vmatpush1.msra.mxu0 0.0
  %777 = vmatprep.subr.mxu0 0.0
  %778 = vmatpush1.msra.mxu0 0.0
  %779 = vmatprep.subr.mxu0 0.0
  %780 = vmatpush1.msra.mxu0 0.0
  %781 = vmatprep.subr.mxu0 0.0
  %782 = vmatpush1.msra.mxu0 0.0
  %783 = vmatprep.subr.mxu0 0.0
  %784 = vmatpush1.msra.mxu0 0.0
  %785 = vmatprep.subr.mxu0 0.0
  %786 = vmatpush1.msra.mxu0 0.0
  %787 = vmatprep.subr.mxu0 0.0
  %788 = vmatpush1.msra.mxu0 0.0
  %789 = vmatprep.subr.mxu0 0.0
  %790 = vmatpush1.msra.mxu0 0.0
  %791 = vmatprep.subr.mxu0 0.0
  %792 = vmatpush1.msra.mxu0 0.0
  %793 = vmatprep.subr.mxu0 0.0
  %794 = vmatpush1.msra.mxu0 0.0
  %795 = vmatprep.subr.mxu0 0.0
  %796 = vmatpush1.msra.mxu0 0.0
  %797 = vmatprep.subr.mxu0 0.0
  %798 = vmatpush1.msra.mxu0 0.0
  %799 = vmatprep.subr.mxu0 0.0
  %800 = vmatpush1.msra.mxu0 0.0
  %801 = vmatprep.subr.mxu0 0.0
  %802 = vmatpush1.msra.mxu0 0.0
  %803 = vmatprep.subr.mxu0 0.0
  %804 = vmatpush1.msra.mxu0 0.0
  %805 = vmatprep.subr.mxu0 0.0
  %806 = vmatpush1.msra.mxu0 0.0
  %807 = vmatprep.mubr.f32.mxu0 0.0
  %808 = vmatmul.mubr.f32.gmra.mrb[0].mxu0 %v741
  %v809 = vpop.f32.mrb[0].mxu0
  %v810 = vadd.f32 0.0, %v809
  %v811 = vpop.f32.mrb[0].mxu0
  %812 = vdwg.mxu0
  %v813 = vadd.f32 %v740, %v810
  %v814 = vxor.u32 %v813, 2147483648
  %v815 = vmul.f32 %v814, 1.442695
  %v816 = vpow.pop %v815
  %v817 = vadd.f32 %v816, 1.0
  %v818 = vrcp.pop %v817
  %v819 = vmul.f32 1.0, %v818
  %v820 = vtanh.pop %v813
  %v821 = vmul.f32 %v819, %v728
  %823 = vrot.lane.b32.xlu0 %v820, 32
  %v824 = vpop.permute.xlu0 %823
  %v826 = vmul.f32 %v819, %v824
  %828 = vrot.lane.b32.xlu0 %v826, 32
  %v829 = vpop.permute.xlu0 %828
  %v831 = vadd.f32 %v821, %v829
  %v832 = vtanh.pop %v831
  %834 = vrot.lane.b32.xlu0 %v832, 32
  %v835 = vpop.permute.xlu0 %834
  %v837 = vmul.f32 %v819, %v835
  %839 = vrot.lane.b32.xlu0 %v837, 64
  %v840 = vpop.permute.xlu0 %839
  %842 = vst.msk [vmem:[#allocation3 + $0x28] sm:$0xff] %vm220, %v840
  %v843 = vld [vmem:[#allocation2 + $0x30] sm:$0xff]
  %v844 = vsel %vm220, %v840, 0
  %846 = vmatprep.subr.mxu0 0.0
  %847 = vmatpush1.msra.mxu0 %v213
  %848 = vmatprep.subr.mxu0 0.0
  %849 = vmatpush1.msra.mxu0 %v214
  %850 = vmatprep.subr.mxu0 0.0
  %851 = vmatpush1.msra.mxu0 %v215
  %852 = vmatprep.subr.mxu0 0.0
  %853 = vmatpush1.msra.mxu0 %v216
  %854 = vmatprep.subr.mxu0 0.0
  %855 = vmatpush1.msra.mxu0 0.0
  %856 = vmatprep.subr.mxu0 0.0
  %857 = vmatpush1.msra.mxu0 0.0
  %858 = vmatprep.subr.mxu0 0.0
  %859 = vmatpush1.msra.mxu0 0.0
  %860 = vmatprep.subr.mxu0 0.0
  %861 = vmatpush1.msra.mxu0 0.0
  %862 = vmatprep.subr.mxu0 0.0
  %863 = vmatpush1.msra.mxu0 0.0
  %864 = vmatprep.subr.mxu0 0.0
  %865 = vmatpush1.msra.mxu0 0.0
  %866 = vmatprep.subr.mxu0 0.0
  %867 = vmatpush1.msra.mxu0 0.0
  %868 = vmatprep.subr.mxu0 0.0
  %869 = vmatpush1.msra.mxu0 0.0
  %870 = vmatprep.subr.mxu0 0.0
  %871 = vmatpush1.msra.mxu0 0.0
  %872 = vmatprep.subr.mxu0 0.0
  %873 = vmatpush1.msra.mxu0 0.0
  %874 = vmatprep.subr.mxu0 0.0
  %875 = vmatpush1.msra.mxu0 0.0
  %876 = vmatprep.subr.mxu0 0.0
  %877 = vmatpush1.msra.mxu0 0.0
  %878 = vmatprep.subr.mxu0 0.0
  %879 = vmatpush1.msra.mxu0 0.0
  %880 = vmatprep.subr.mxu0 0.0
  %881 = vmatpush1.msra.mxu0 0.0
  %882 = vmatprep.subr.mxu0 0.0
  %883 = vmatpush1.msra.mxu0 0.0
  %884 = vmatprep.subr.mxu0 0.0
  %885 = vmatpush1.msra.mxu0 0.0
  %886 = vmatprep.subr.mxu0 0.0
  %887 = vmatpush1.msra.mxu0 0.0
  %888 = vmatprep.subr.mxu0 0.0
  %889 = vmatpush1.msra.mxu0 0.0
  %890 = vmatprep.subr.mxu0 0.0
  %891 = vmatpush1.msra.mxu0 0.0
  %892 = vmatprep.subr.mxu0 0.0
  %893 = vmatpush1.msra.mxu0 0.0
  %894 = vmatprep.subr.mxu0 0.0
  %895 = vmatpush1.msra.mxu0 0.0
  %896 = vmatprep.subr.mxu0 0.0
  %897 = vmatpush1.msra.mxu0 0.0
  %898 = vmatprep.subr.mxu0 0.0
  %899 = vmatpush1.msra.mxu0 0.0
  %900 = vmatprep.subr.mxu0 0.0
  %901 = vmatpush1.msra.mxu0 0.0
  %902 = vmatprep.subr.mxu0 0.0
  %903 = vmatpush1.msra.mxu0 0.0
  %904 = vmatprep.subr.mxu0 0.0
  %905 = vmatpush1.msra.mxu0 0.0
  %906 = vmatprep.subr.mxu0 0.0
  %907 = vmatpush1.msra.mxu0 0.0
  %908 = vmatprep.subr.mxu0 0.0
  %909 = vmatpush1.msra.mxu0 0.0
  %910 = vmatprep.mubr.f32.mxu0 0.0
  %911 = vmatmul.mubr.f32.gmra.mrb[0].mxu0 %v844
  %v912 = vpop.f32.mrb[0].mxu0
  %v913 = vadd.f32 0.0, %v912
  %v914 = vpop.f32.mrb[0].mxu0
  %915 = vdwg.mxu0
  %v916 = vadd.f32 %v843, %v913
  %v917 = vxor.u32 %v916, 2147483648
  %v918 = vmul.f32 %v917, 1.442695
  %v919 = vpow.pop %v918
  %v920 = vadd.f32 %v919, 1.0
  %v921 = vrcp.pop %v920
  %v922 = vmul.f32 1.0, %v921
  %v923 = vtanh.pop %v916
  %v924 = vmul.f32 %v922, %v831
  %926 = vrot.lane.b32.xlu0 %v923, 32
  %v927 = vpop.permute.xlu0 %926
  %v929 = vmul.f32 %v922, %v927
  %931 = vrot.lane.b32.xlu0 %v929, 32
  %v932 = vpop.permute.xlu0 %931
  %v934 = vadd.f32 %v924, %v932
  %v935 = vtanh.pop %v934
  %937 = vrot.lane.b32.xlu0 %v935, 32
  %v938 = vpop.permute.xlu0 %937
  %v940 = vmul.f32 %v922, %v938
  %942 = vrot.lane.b32.xlu0 %v940, 64
  %v943 = vpop.permute.xlu0 %942
  %945 = vst.msk [vmem:[#allocation3 + $0x30] sm:$0xff] %vm220, %v943
  %v946 = vld [vmem:[#allocation2 + $0x38] sm:$0xff]
  %v947 = vsel %vm220, %v943, 0
  %949 = vmatprep.subr.mxu0 0.0
  %950 = vmatpush1.msra.mxu0 %v213
  %951 = vmatprep.subr.mxu0 0.0
  %952 = vmatpush1.msra.mxu0 %v214
  %953 = vmatprep.subr.mxu0 0.0
  %954 = vmatpush1.msra.mxu0 %v215
  %955 = vmatprep.subr.mxu0 0.0
  %956 = vmatpush1.msra.mxu0 %v216
  %957 = vmatprep.subr.mxu0 0.0
  %958 = vmatpush1.msra.mxu0 0.0
  %959 = vmatprep.subr.mxu0 0.0
  %960 = vmatpush1.msra.mxu0 0.0
  %961 = vmatprep.subr.mxu0 0.0
  %962 = vmatpush1.msra.mxu0 0.0
  %963 = vmatprep.subr.mxu0 0.0
  %964 = vmatpush1.msra.mxu0 0.0
  %965 = vmatprep.subr.mxu0 0.0
  %966 = vmatpush1.msra.mxu0 0.0
  %967 = vmatprep.subr.mxu0 0.0
  %968 = vmatpush1.msra.mxu0 0.0
  %969 = vmatprep.subr.mxu0 0.0
  %970 = vmatpush1.msra.mxu0 0.0
  %971 = vmatprep.subr.mxu0 0.0
  %972 = vmatpush1.msra.mxu0 0.0
  %973 = vmatprep.subr.mxu0 0.0
  %974 = vmatpush1.msra.mxu0 0.0
  %975 = vmatprep.subr.mxu0 0.0
  %976 = vmatpush1.msra.mxu0 0.0
  %977 = vmatprep.subr.mxu0 0.0
  %978 = vmatpush1.msra.mxu0 0.0
  %979 = vmatprep.subr.mxu0 0.0
  %980 = vmatpush1.msra.mxu0 0.0
  %981 = vmatprep.subr.mxu0 0.0
  %982 = vmatpush1.msra.mxu0 0.0
  %983 = vmatprep.subr.mxu0 0.0
  %984 = vmatpush1.msra.mxu0 0.0
  %985 = vmatprep.subr.mxu0 0.0
  %986 = vmatpush1.msra.mxu0 0.0
  %987 = vmatprep.subr.mxu0 0.0
  %988 = vmatpush1.msra.mxu0 0.0
  %989 = vmatprep.subr.mxu0 0.0
  %990 = vmatpush1.msra.mxu0 0.0
  %991 = vmatprep.subr.mxu0 0.0
  %992 = vmatpush1.msra.mxu0 0.0
  %993 = vmatprep.subr.mxu0 0.0
  %994 = vmatpush1.msra.mxu0 0.0
  %995 = vmatprep.subr.mxu0 0.0
  %996 = vmatpush1.msra.mxu0 0.0
  %997 = vmatprep.subr.mxu0 0.0
  %998 = vmatpush1.msra.mxu0 0.0
  %999 = vmatprep.subr.mxu0 0.0
  %1000 = vmatpush1.msra.mxu0 0.0
  %1001 = vmatprep.subr.mxu0 0.0
  %1002 = vmatpush1.msra.mxu0 0.0
  %1003 = vmatprep.subr.mxu0 0.0
  %1004 = vmatpush1.msra.mxu0 0.0
  %1005 = vmatprep.subr.mxu0 0.0
  %1006 = vmatpush1.msra.mxu0 0.0
  %1007 = vmatprep.subr.mxu0 0.0
  %1008 = vmatpush1.msra.mxu0 0.0
  %1009 = vmatprep.subr.mxu0 0.0
  %1010 = vmatpush1.msra.mxu0 0.0
  %1011 = vmatprep.subr.mxu0 0.0
  %1012 = vmatpush1.msra.mxu0 0.0
  %1013 = vmatprep.mubr.f32.mxu0 0.0
  %1014 = vmatmul.mubr.f32.gmra.mrb[0].mxu0 %v947
  %v1015 = vpop.f32.mrb[0].mxu0
  %v1016 = vadd.f32 0.0, %v1015
  %v1017 = vpop.f32.mrb[0].mxu0
  %1018 = vdwg.mxu0
  %v1019 = vadd.f32 %v946, %v1016
  %v1020 = vxor.u32 %v1019, 2147483648
  %v1021 = vmul.f32 %v1020, 1.442695
  %v1022 = vpow.pop %v1021
  %v1023 = vadd.f32 %v1022, 1.0
  %v1024 = vrcp.pop %v1023
  %v1025 = vmul.f32 1.0, %v1024
  %v1026 = vtanh.pop %v1019
  %v1027 = vmul.f32 %v1025, %v934
  %1029 = vrot.lane.b32.xlu0 %v1026, 32
  %v1030 = vpop.permute.xlu0 %1029
  %v1032 = vmul.f32 %v1025, %v1030
  %1034 = vrot.lane.b32.xlu0 %v1032, 32
  %v1035 = vpop.permute.xlu0 %1034
  %v1037 = vadd.f32 %v1027, %v1035
  %v1038 = vtanh.pop %v1037
  %1040 = vrot.lane.b32.xlu0 %v1038, 32
  %v1041 = vpop.permute.xlu0 %1040
  %v1043 = vmul.f32 %v1025, %v1041
  %1045 = vrot.lane.b32.xlu0 %v1043, 64
  %v1046 = vpop.permute.xlu0 %1045
  %1048 = vst.msk [vmem:[#allocation3 + $0x38] sm:$0xff] %vm220, %v1046
  %1049 = vst.msk [vmem:[%s18] sm:$0xff] %vm220, %v1046
  %1051 = vrot.lane.b32.xlu0 %v1037, 96
  %v1052 = vpop.permute.xlu0 %1051
  %1054 = vst.msk [vmem:[%s19] sm:$0xff] %vm220, %v1052
  %v1055 = vld [vmem:[#allocation3] sm:$0xff]
  %v1056 = vld [vmem:[#allocation3 + $0x8] sm:$0xff]
  %v1057 = vld [vmem:[#allocation3 + $0x10] sm:$0xff]
  %v1058 = vld [vmem:[#allocation3 + $0x18] sm:$0xff]
  %v1059 = vld [vmem:[#allocation3 + $0x20] sm:$0xff]
  %v1060 = vld [vmem:[#allocation3 + $0x28] sm:$0xff]
  %v1061 = vld [vmem:[#allocation3 + $0x30] sm:$0xff]
  %v1062 = vld [vmem:[#allocation3 + $0x38] sm:$0xff]
  %v1063 = vld [vmem:[%s4] sm:$0xff]
  %v1064 = vld [vmem:[%s4 + $0x8] sm:$0xff]
  %v1065 = vld [vmem:[%s4 + $0x10] sm:$0xff]
  %v1066 = vld [vmem:[%s4 + $0x18] sm:$0xff]
  %v1067 = vld [vmem:[%s6] sm:$0x1]
  %v1069 = vlaneseq
  %v1070 = vshrl.u32 %v1069, 7
  %v1071 = vsub.s32 0, %v1070
  %v1072 = vrot.slane %v1067, %v1071
  %v1075 = vsel %vm220, %v1055, 0
  %v1078 = vsel %vm220, %v1056, 0
  %v1081 = vsel %vm220, %v1057, 0
  %v1084 = vsel %vm220, %v1058, 0
  %v1087 = vsel %vm220, %v1059, 0
  %v1090 = vsel %vm220, %v1060, 0
  %v1093 = vsel %vm220, %v1061, 0
  %v1096 = vsel %vm220, %v1062, 0
  %1098 = vmatprep.subr.mxu0 0.0
  %1099 = vmatpush1.msra.mxu0 %v1063
  %1100 = vmatprep.subr.mxu0 0.0
  %1101 = vmatpush1.msra.mxu0 %v1064
  %1102 = vmatprep.subr.mxu0 0.0
  %1103 = vmatpush1.msra.mxu0 %v1065
  %1104 = vmatprep.subr.mxu0 0.0
  %1105 = vmatpush1.msra.mxu0 %v1066
  %1106 = vmatprep.subr.mxu0 0.0
  %1107 = vmatpush1.msra.mxu0 0.0
  %1108 = vmatprep.subr.mxu0 0.0
  %1109 = vmatpush1.msra.mxu0 0.0
  %1110 = vmatprep.subr.mxu0 0.0
  %1111 = vmatpush1.msra.mxu0 0.0
  %1112 = vmatprep.subr.mxu0 0.0
  %1113 = vmatpush1.msra.mxu0 0.0
  %1114 = vmatprep.subr.mxu0 0.0
  %1115 = vmatpush1.msra.mxu0 0.0
  %1116 = vmatprep.subr.mxu0 0.0
  %1117 = vmatpush1.msra.mxu0 0.0
  %1118 = vmatprep.subr.mxu0 0.0
  %1119 = vmatpush1.msra.mxu0 0.0
  %1120 = vmatprep.subr.mxu0 0.0
  %1121 = vmatpush1.msra.mxu0 0.0
  %1122 = vmatprep.subr.mxu0 0.0
  %1123 = vmatpush1.msra.mxu0 0.0
  %1124 = vmatprep.subr.mxu0 0.0
  %1125 = vmatpush1.msra.mxu0 0.0
  %1126 = vmatprep.subr.mxu0 0.0
  %1127 = vmatpush1.msra.mxu0 0.0
  %1128 = vmatprep.subr.mxu0 0.0
  %1129 = vmatpush1.msra.mxu0 0.0
  %1130 = vmatprep.subr.mxu0 0.0
  %1131 = vmatpush1.msra.mxu0 0.0
  %1132 = vmatprep.subr.mxu0 0.0
  %1133 = vmatpush1.msra.mxu0 0.0
  %1134 = vmatprep.subr.mxu0 0.0
  %1135 = vmatpush1.msra.mxu0 0.0
  %1136 = vmatprep.subr.mxu0 0.0
  %1137 = vmatpush1.msra.mxu0 0.0
  %1138 = vmatprep.subr.mxu0 0.0
  %1139 = vmatpush1.msra.mxu0 0.0
  %1140 = vmatprep.subr.mxu0 0.0
  %1141 = vmatpush1.msra.mxu0 0.0
  %1142 = vmatprep.subr.mxu0 0.0
  %1143 = vmatpush1.msra.mxu0 0.0
  %1144 = vmatprep.subr.mxu0 0.0
  %1145 = vmatpush1.msra.mxu0 0.0
  %1146 = vmatprep.subr.mxu0 0.0
  %1147 = vmatpush1.msra.mxu0 0.0
  %1148 = vmatprep.subr.mxu0 0.0
  %1149 = vmatpush1.msra.mxu0 0.0
  %1150 = vmatprep.subr.mxu0 0.0
  %1151 = vmatpush1.msra.mxu0 0.0
  %1152 = vmatprep.subr.mxu0 0.0
  %1153 = vmatpush1.msra.mxu0 0.0
  %1154 = vmatprep.subr.mxu0 0.0
  %1155 = vmatpush1.msra.mxu0 0.0
  %1156 = vmatprep.subr.mxu0 0.0
  %1157 = vmatpush1.msra.mxu0 0.0
  %1158 = vmatprep.subr.mxu0 0.0
  %1159 = vmatpush1.msra.mxu0 0.0
  %1160 = vmatprep.subr.mxu0 0.0
  %1161 = vmatpush1.msra.mxu0 0.0
  %1162 = vmatprep.mubr.f32.mxu0 0.0
  %1163 = vmatmul.mubr.f32.gmra.mrb[0].mxu0 %v1075
  %v1164 = vpop.f32.mrb[0].mxu0
  %v1165 = vadd.f32 %v1072, %v1164
  %v1166 = vpop.f32.mrb[0].mxu0
  %1167 = vmatprep.mubr.f32.mxu0 0.0
  %1168 = vmatmul.mubr.f32.gmra.mrb[0].mxu0 %v1078
  %v1169 = vpop.f32.mrb[0].mxu0
  %v1170 = vadd.f32 %v1072, %v1169
  %v1171 = vpop.f32.mrb[0].mxu0
  %1172 = vmatprep.mubr.f32.mxu0 0.0
  %1173 = vmatmul.mubr.f32.gmra.mrb[0].mxu0 %v1081
  %v1174 = vpop.f32.mrb[0].mxu0
  %v1175 = vadd.f32 %v1072, %v1174
  %v1176 = vpop.f32.mrb[0].mxu0
  %1177 = vmatprep.mubr.f32.mxu0 0.0
  %1178 = vmatmul.mubr.f32.gmra.mrb[0].mxu0 %v1084
  %v1179 = vpop.f32.mrb[0].mxu0
  %v1180 = vadd.f32 %v1072, %v1179
  %v1181 = vpop.f32.mrb[0].mxu0
  %1182 = vmatprep.mubr.f32.mxu0 0.0
  %1183 = vmatmul.mubr.f32.gmra.mrb[0].mxu0 %v1087
  %v1184 = vpop.f32.mrb[0].mxu0
  %v1185 = vadd.f32 %v1072, %v1184
  %v1186 = vpop.f32.mrb[0].mxu0
  %1187 = vmatprep.mubr.f32.mxu0 0.0
  %1188 = vmatmul.mubr.f32.gmra.mrb[0].mxu0 %v1090
  %v1189 = vpop.f32.mrb[0].mxu0
  %v1190 = vadd.f32 %v1072, %v1189
  %v1191 = vpop.f32.mrb[0].mxu0
  %1192 = vmatprep.mubr.f32.mxu0 0.0
  %1193 = vmatmul.mubr.f32.gmra.mrb[0].mxu0 %v1093
  %v1194 = vpop.f32.mrb[0].mxu0
  %v1195 = vadd.f32 %v1072, %v1194
  %v1196 = vpop.f32.mrb[0].mxu0
  %1197 = vmatprep.mubr.f32.mxu0 0.0
  %1198 = vmatmul.mubr.f32.gmra.mrb[0].mxu0 %v1096
  %v1199 = vpop.f32.mrb[0].mxu0
  %v1200 = vadd.f32 %v1072, %v1199
  %v1201 = vpop.f32.mrb[0].mxu0
  %1202 = vdwg.mxu0
  %1203 = vst [vmem:[#allocation2] sm:$0xff] %v1165
  %1204 = vst [vmem:[#allocation2 + $0x8] sm:$0xff] %v1170
  %1205 = vst [vmem:[#allocation2 + $0x10] sm:$0xff] %v1175
  %1206 = vst [vmem:[#allocation2 + $0x18] sm:$0xff] %v1180
  %1207 = vst [vmem:[#allocation2 + $0x20] sm:$0xff] %v1185
  %1208 = vst [vmem:[#allocation2 + $0x28] sm:$0xff] %v1190
  %1209 = vst [vmem:[#allocation2 + $0x30] sm:$0xff] %v1195
  %1210 = vst [vmem:[#allocation2 + $0x38] sm:$0xff] %v1200
  %v1211 = vld [vmem:[%s5] sm:$0xff]
  %v1212 = vld [vmem:[%s5 + $0x8] sm:$0xff]
  %v1213 = vld [vmem:[%s5 + $0x10] sm:$0xff]
  %v1214 = vld [vmem:[%s5 + $0x18] sm:$0xff]
  %s1215 = scalar_lea.vmem %s7, 8
  %v1216 = vld [vmem:[%s1215] sm:$0xff]
  %s1217 = scalar_lea.vmem %s8, 8
  %v1218 = vld [vmem:[%s1217] sm:$0xff]
  %v1219 = vld [vmem:[#allocation2] sm:$0xff]
  %v1221 = vsel %vm220, %v1216, 0
  %1223 = vmatprep.subr.mxu0 0.0
  %1224 = vmatpush1.msra.mxu0 %v1211
  %1225 = vmatprep.subr.mxu0 0.0
  %1226 = vmatpush1.msra.mxu0 %v1212
  %1227 = vmatprep.subr.mxu0 0.0
  %1228 = vmatpush1.msra.mxu0 %v1213
  %1229 = vmatprep.subr.mxu0 0.0
  %1230 = vmatpush1.msra.mxu0 %v1214
  %1231 = vmatprep.subr.mxu0 0.0
  %1232 = vmatpush1.msra.mxu0 0.0
  %1233 = vmatprep.subr.mxu0 0.0
  %1234 = vmatpush1.msra.mxu0 0.0
  %1235 = vmatprep.subr.mxu0 0.0
  %1236 = vmatpush1.msra.mxu0 0.0
  %1237 = vmatprep.subr.mxu0 0.0
  %1238 = vmatpush1.msra.mxu0 0.0
  %1239 = vmatprep.subr.mxu0 0.0
  %1240 = vmatpush1.msra.mxu0 0.0
  %1241 = vmatprep.subr.mxu0 0.0
  %1242 = vmatpush1.msra.mxu0 0.0
  %1243 = vmatprep.subr.mxu0 0.0
  %1244 = vmatpush1.msra.mxu0 0.0
  %1245 = vmatprep.subr.mxu0 0.0
  %1246 = vmatpush1.msra.mxu0 0.0
  %1247 = vmatprep.subr.mxu0 0.0
  %1248 = vmatpush1.msra.mxu0 0.0
  %1249 = vmatprep.subr.mxu0 0.0
  %1250 = vmatpush1.msra.mxu0 0.0
  %1251 = vmatprep.subr.mxu0 0.0
  %1252 = vmatpush1.msra.mxu0 0.0
  %1253 = vmatprep.subr.mxu0 0.0
  %1254 = vmatpush1.msra.mxu0 0.0
  %1255 = vmatprep.subr.mxu0 0.0
  %1256 = vmatpush1.msra.mxu0 0.0
  %1257 = vmatprep.subr.mxu0 0.0
  %1258 = vmatpush1.msra.mxu0 0.0
  %1259 = vmatprep.subr.mxu0 0.0
  %1260 = vmatpush1.msra.mxu0 0.0
  %1261 = vmatprep.subr.mxu0 0.0
  %1262 = vmatpush1.msra.mxu0 0.0
  %1263 = vmatprep.subr.mxu0 0.0
  %1264 = vmatpush1.msra.mxu0 0.0
  %1265 = vmatprep.subr.mxu0 0.0
  %1266 = vmatpush1.msra.mxu0 0.0
  %1267 = vmatprep.subr.mxu0 0.0
  %1268 = vmatpush1.msra.mxu0 0.0
  %1269 = vmatprep.subr.mxu0 0.0
  %1270 = vmatpush1.msra.mxu0 0.0
  %1271 = vmatprep.subr.mxu0 0.0
  %1272 = vmatpush1.msra.mxu0 0.0
  %1273 = vmatprep.subr.mxu0 0.0
  %1274 = vmatpush1.msra.mxu0 0.0
  %1275 = vmatprep.subr.mxu0 0.0
  %1276 = vmatpush1.msra.mxu0 0.0
  %1277 = vmatprep.subr.mxu0 0.0
  %1278 = vmatpush1.msra.mxu0 0.0
  %1279 = vmatprep.subr.mxu0 0.0
  %1280 = vmatpush1.msra.mxu0 0.0
  %1281 = vmatprep.subr.mxu0 0.0
  %1282 = vmatpush1.msra.mxu0 0.0
  %1283 = vmatprep.subr.mxu0 0.0
  %1284 = vmatpush1.msra.mxu0 0.0
  %1285 = vmatprep.subr.mxu0 0.0
  %1286 = vmatpush1.msra.mxu0 0.0
  %1287 = vmatprep.mubr.f32.mxu0 0.0
  %1288 = vmatmul.mubr.f32.gmra.mrb[0].mxu0 %v1221
  %v1289 = vpop.f32.mrb[0].mxu0
  %v1290 = vadd.f32 0.0, %v1289
  %v1291 = vpop.f32.mrb[0].mxu0
  %1292 = vdwg.mxu0
  %v1293 = vadd.f32 %v1219, %v1290
  %v1294 = vxor.u32 %v1293, 2147483648
  %v1295 = vmul.f32 %v1294, 1.442695
  %v1296 = vpow.pop %v1295
  %v1297 = vadd.f32 %v1296, 1.0
  %v1298 = vrcp.pop %v1297
  %v1299 = vmul.f32 1.0, %v1298
  %v1300 = vtanh.pop %v1293
  %1302 = vrot.lane.b32.xlu0 %v1218, 32
  %v1303 = vpop.permute.xlu0 %1302
  %v1305 = vmul.f32 %v1299, %v1303
  %1307 = vrot.lane.b32.xlu0 %v1300, 32
  %v1308 = vpop.permute.xlu0 %1307
  %v1310 = vmul.f32 %v1299, %v1308
  %1312 = vrot.lane.b32.xlu0 %v1310, 32
  %v1313 = vpop.permute.xlu0 %1312
  %v1315 = vadd.f32 %v1305, %v1313
  %v1316 = vtanh.pop %v1315
  %1318 = vrot.lane.b32.xlu0 %v1316, 32
  %v1319 = vpop.permute.xlu0 %1318
  %v1321 = vmul.f32 %v1299, %v1319
  %1323 = vrot.lane.b32.xlu0 %v1321, 64
  %v1324 = vpop.permute.xlu0 %1323
  %1326 = vst.msk [vmem:[#allocation3] sm:$0xff] %vm220, %v1324
  %v1327 = vld [vmem:[#allocation2 + $0x8] sm:$0xff]
  %v1328 = vsel %vm220, %v1324, 0
  %1330 = vmatprep.subr.mxu0 0.0
  %1331 = vmatpush1.msra.mxu0 %v1211
  %1332 = vmatprep.subr.mxu0 0.0
  %1333 = vmatpush1.msra.mxu0 %v1212
  %1334 = vmatprep.subr.mxu0 0.0
  %1335 = vmatpush1.msra.mxu0 %v1213
  %1336 = vmatprep.subr.mxu0 0.0
  %1337 = vmatpush1.msra.mxu0 %v1214
  %1338 = vmatprep.subr.mxu0 0.0
  %1339 = vmatpush1.msra.mxu0 0.0
  %1340 = vmatprep.subr.mxu0 0.0
  %1341 = vmatpush1.msra.mxu0 0.0
  %1342 = vmatprep.subr.mxu0 0.0
  %1343 = vmatpush1.msra.mxu0 0.0
  %1344 = vmatprep.subr.mxu0 0.0
  %1345 = vmatpush1.msra.mxu0 0.0
  %1346 = vmatprep.subr.mxu0 0.0
  %1347 = vmatpush1.msra.mxu0 0.0
  %1348 = vmatprep.subr.mxu0 0.0
  %1349 = vmatpush1.msra.mxu0 0.0
  %1350 = vmatprep.subr.mxu0 0.0
  %1351 = vmatpush1.msra.mxu0 0.0
  %1352 = vmatprep.subr.mxu0 0.0
  %1353 = vmatpush1.msra.mxu0 0.0
  %1354 = vmatprep.subr.mxu0 0.0
  %1355 = vmatpush1.msra.mxu0 0.0
  %1356 = vmatprep.subr.mxu0 0.0
  %1357 = vmatpush1.msra.mxu0 0.0
  %1358 = vmatprep.subr.mxu0 0.0
  %1359 = vmatpush1.msra.mxu0 0.0
  %1360 = vmatprep.subr.mxu0 0.0
  %1361 = vmatpush1.msra.mxu0 0.0
  %1362 = vmatprep.subr.mxu0 0.0
  %1363 = vmatpush1.msra.mxu0 0.0
  %1364 = vmatprep.subr.mxu0 0.0
  %1365 = vmatpush1.msra.mxu0 0.0
  %1366 = vmatprep.subr.mxu0 0.0
  %1367 = vmatpush1.msra.mxu0 0.0
  %1368 = vmatprep.subr.mxu0 0.0
  %1369 = vmatpush1.msra.mxu0 0.0
  %1370 = vmatprep.subr.mxu0 0.0
  %1371 = vmatpush1.msra.mxu0 0.0
  %1372 = vmatprep.subr.mxu0 0.0
  %1373 = vmatpush1.msra.mxu0 0.0
  %1374 = vmatprep.subr.mxu0 0.0
  %1375 = vmatpush1.msra.mxu0 0.0
  %1376 = vmatprep.subr.mxu0 0.0
  %1377 = vmatpush1.msra.mxu0 0.0
  %1378 = vmatprep.subr.mxu0 0.0
  %1379 = vmatpush1.msra.mxu0 0.0
  %1380 = vmatprep.subr.mxu0 0.0
  %1381 = vmatpush1.msra.mxu0 0.0
  %1382 = vmatprep.subr.mxu0 0.0
  %1383 = vmatpush1.msra.mxu0 0.0
  %1384 = vmatprep.subr.mxu0 0.0
  %1385 = vmatpush1.msra.mxu0 0.0
  %1386 = vmatprep.subr.mxu0 0.0
  %1387 = vmatpush1.msra.mxu0 0.0
  %1388 = vmatprep.subr.mxu0 0.0
  %1389 = vmatpush1.msra.mxu0 0.0
  %1390 = vmatprep.subr.mxu0 0.0
  %1391 = vmatpush1.msra.mxu0 0.0
  %1392 = vmatprep.subr.mxu0 0.0
  %1393 = vmatpush1.msra.mxu0 0.0
  %1394 = vmatprep.mubr.f32.mxu0 0.0
  %1395 = vmatmul.mubr.f32.gmra.mrb[0].mxu0 %v1328
  %v1396 = vpop.f32.mrb[0].mxu0
  %v1397 = vadd.f32 0.0, %v1396
  %v1398 = vpop.f32.mrb[0].mxu0
  %1399 = vdwg.mxu0
  %v1400 = vadd.f32 %v1327, %v1397
  %v1401 = vxor.u32 %v1400, 2147483648
  %v1402 = vmul.f32 %v1401, 1.442695
  %v1403 = vpow.pop %v1402
  %v1404 = vadd.f32 %v1403, 1.0
  %v1405 = vrcp.pop %v1404
  %v1406 = vmul.f32 1.0, %v1405
  %v1407 = vtanh.pop %v1400
  %v1408 = vmul.f32 %v1406, %v1315
  %1410 = vrot.lane.b32.xlu0 %v1407, 32
  %v1411 = vpop.permute.xlu0 %1410
  %v1413 = vmul.f32 %v1406, %v1411
  %1415 = vrot.lane.b32.xlu0 %v1413, 32
  %v1416 = vpop.permute.xlu0 %1415
  %v1418 = vadd.f32 %v1408, %v1416
  %v1419 = vtanh.pop %v1418
  %1421 = vrot.lane.b32.xlu0 %v1419, 32
  %v1422 = vpop.permute.xlu0 %1421
  %v1424 = vmul.f32 %v1406, %v1422
  %1426 = vrot.lane.b32.xlu0 %v1424, 64
  %v1427 = vpop.permute.xlu0 %1426
  %1429 = vst.msk [vmem:[#allocation3 + $0x8] sm:$0xff] %vm220, %v1427
  %v1430 = vld [vmem:[#allocation2 + $0x10] sm:$0xff]
  %v1431 = vsel %vm220, %v1427, 0
  %1433 = vmatprep.subr.mxu0 0.0
  %1434 = vmatpush1.msra.mxu0 %v1211
  %1435 = vmatprep.subr.mxu0 0.0
  %1436 = vmatpush1.msra.mxu0 %v1212
  %1437 = vmatprep.subr.mxu0 0.0
  %1438 = vmatpush1.msra.mxu0 %v1213
  %1439 = vmatprep.subr.mxu0 0.0
  %1440 = vmatpush1.msra.mxu0 %v1214
  %1441 = vmatprep.subr.mxu0 0.0
  %1442 = vmatpush1.msra.mxu0 0.0
  %1443 = vmatprep.subr.mxu0 0.0
  %1444 = vmatpush1.msra.mxu0 0.0
  %1445 = vmatprep.subr.mxu0 0.0
  %1446 = vmatpush1.msra.mxu0 0.0
  %1447 = vmatprep.subr.mxu0 0.0
  %1448 = vmatpush1.msra.mxu0 0.0
  %1449 = vmatprep.subr.mxu0 0.0
  %1450 = vmatpush1.msra.mxu0 0.0
  %1451 = vmatprep.subr.mxu0 0.0
  %1452 = vmatpush1.msra.mxu0 0.0
  %1453 = vmatprep.subr.mxu0 0.0
  %1454 = vmatpush1.msra.mxu0 0.0
  %1455 = vmatprep.subr.mxu0 0.0
  %1456 = vmatpush1.msra.mxu0 0.0
  %1457 = vmatprep.subr.mxu0 0.0
  %1458 = vmatpush1.msra.mxu0 0.0
  %1459 = vmatprep.subr.mxu0 0.0
  %1460 = vmatpush1.msra.mxu0 0.0
  %1461 = vmatprep.subr.mxu0 0.0
  %1462 = vmatpush1.msra.mxu0 0.0
  %1463 = vmatprep.subr.mxu0 0.0
  %1464 = vmatpush1.msra.mxu0 0.0
  %1465 = vmatprep.subr.mxu0 0.0
  %1466 = vmatpush1.msra.mxu0 0.0
  %1467 = vmatprep.subr.mxu0 0.0
  %1468 = vmatpush1.msra.mxu0 0.0
  %1469 = vmatprep.subr.mxu0 0.0
  %1470 = vmatpush1.msra.mxu0 0.0
  %1471 = vmatprep.subr.mxu0 0.0
  %1472 = vmatpush1.msra.mxu0 0.0
  %1473 = vmatprep.subr.mxu0 0.0
  %1474 = vmatpush1.msra.mxu0 0.0
  %1475 = vmatprep.subr.mxu0 0.0
  %1476 = vmatpush1.msra.mxu0 0.0
  %1477 = vmatprep.subr.mxu0 0.0
  %1478 = vmatpush1.msra.mxu0 0.0
  %1479 = vmatprep.subr.mxu0 0.0
  %1480 = vmatpush1.msra.mxu0 0.0
  %1481 = vmatprep.subr.mxu0 0.0
  %1482 = vmatpush1.msra.mxu0 0.0
  %1483 = vmatprep.subr.mxu0 0.0
  %1484 = vmatpush1.msra.mxu0 0.0
  %1485 = vmatprep.subr.mxu0 0.0
  %1486 = vmatpush1.msra.mxu0 0.0
  %1487 = vmatprep.subr.mxu0 0.0
  %1488 = vmatpush1.msra.mxu0 0.0
  %1489 = vmatprep.subr.mxu0 0.0
  %1490 = vmatpush1.msra.mxu0 0.0
  %1491 = vmatprep.subr.mxu0 0.0
  %1492 = vmatpush1.msra.mxu0 0.0
  %1493 = vmatprep.subr.mxu0 0.0
  %1494 = vmatpush1.msra.mxu0 0.0
  %1495 = vmatprep.subr.mxu0 0.0
  %1496 = vmatpush1.msra.mxu0 0.0
  %1497 = vmatprep.mubr.f32.mxu0 0.0
  %1498 = vmatmul.mubr.f32.gmra.mrb[0].mxu0 %v1431
  %v1499 = vpop.f32.mrb[0].mxu0
  %v1500 = vadd.f32 0.0, %v1499
  %v1501 = vpop.f32.mrb[0].mxu0
  %1502 = vdwg.mxu0
  %v1503 = vadd.f32 %v1430, %v1500
  %v1504 = vxor.u32 %v1503, 2147483648
  %v1505 = vmul.f32 %v1504, 1.442695
  %v1506 = vpow.pop %v1505
  %v1507 = vadd.f32 %v1506, 1.0
  %v1508 = vrcp.pop %v1507
  %v1509 = vmul.f32 1.0, %v1508
  %v1510 = vtanh.pop %v1503
  %v1511 = vmul.f32 %v1509, %v1418
  %1513 = vrot.lane.b32.xlu0 %v1510, 32
  %v1514 = vpop.permute.xlu0 %1513
  %v1516 = vmul.f32 %v1509, %v1514
  %1518 = vrot.lane.b32.xlu0 %v1516, 32
  %v1519 = vpop.permute.xlu0 %1518
  %v1521 = vadd.f32 %v1511, %v1519
  %v1522 = vtanh.pop %v1521
  %1524 = vrot.lane.b32.xlu0 %v1522, 32
  %v1525 = vpop.permute.xlu0 %1524
  %v1527 = vmul.f32 %v1509, %v1525
  %1529 = vrot.lane.b32.xlu0 %v1527, 64
  %v1530 = vpop.permute.xlu0 %1529
  %1532 = vst.msk [vmem:[#allocation3 + $0x10] sm:$0xff] %vm220, %v1530
  %v1533 = vld [vmem:[#allocation2 + $0x18] sm:$0xff]
  %v1534 = vsel %vm220, %v1530, 0
  %1536 = vmatprep.subr.mxu0 0.0
  %1537 = vmatpush1.msra.mxu0 %v1211
  %1538 = vmatprep.subr.mxu0 0.0
  %1539 = vmatpush1.msra.mxu0 %v1212
  %1540 = vmatprep.subr.mxu0 0.0
  %1541 = vmatpush1.msra.mxu0 %v1213
  %1542 = vmatprep.subr.mxu0 0.0
  %1543 = vmatpush1.msra.mxu0 %v1214
  %1544 = vmatprep.subr.mxu0 0.0
  %1545 = vmatpush1.msra.mxu0 0.0
  %1546 = vmatprep.subr.mxu0 0.0
  %1547 = vmatpush1.msra.mxu0 0.0
  %1548 = vmatprep.subr.mxu0 0.0
  %1549 = vmatpush1.msra.mxu0 0.0
  %1550 = vmatprep.subr.mxu0 0.0
  %1551 = vmatpush1.msra.mxu0 0.0
  %1552 = vmatprep.subr.mxu0 0.0
  %1553 = vmatpush1.msra.mxu0 0.0
  %1554 = vmatprep.subr.mxu0 0.0
  %1555 = vmatpush1.msra.mxu0 0.0
  %1556 = vmatprep.subr.mxu0 0.0
  %1557 = vmatpush1.msra.mxu0 0.0
  %1558 = vmatprep.subr.mxu0 0.0
  %1559 = vmatpush1.msra.mxu0 0.0
  %1560 = vmatprep.subr.mxu0 0.0
  %1561 = vmatpush1.msra.mxu0 0.0
  %1562 = vmatprep.subr.mxu0 0.0
  %1563 = vmatpush1.msra.mxu0 0.0
  %1564 = vmatprep.subr.mxu0 0.0
  %1565 = vmatpush1.msra.mxu0 0.0
  %1566 = vmatprep.subr.mxu0 0.0
  %1567 = vmatpush1.msra.mxu0 0.0
  %1568 = vmatprep.subr.mxu0 0.0
  %1569 = vmatpush1.msra.mxu0 0.0
  %1570 = vmatprep.subr.mxu0 0.0
  %1571 = vmatpush1.msra.mxu0 0.0
  %1572 = vmatprep.subr.mxu0 0.0
  %1573 = vmatpush1.msra.mxu0 0.0
  %1574 = vmatprep.subr.mxu0 0.0
  %1575 = vmatpush1.msra.mxu0 0.0
  %1576 = vmatprep.subr.mxu0 0.0
  %1577 = vmatpush1.msra.mxu0 0.0
  %1578 = vmatprep.subr.mxu0 0.0
  %1579 = vmatpush1.msra.mxu0 0.0
  %1580 = vmatprep.subr.mxu0 0.0
  %1581 = vmatpush1.msra.mxu0 0.0
  %1582 = vmatprep.subr.mxu0 0.0
  %1583 = vmatpush1.msra.mxu0 0.0
  %1584 = vmatprep.subr.mxu0 0.0
  %1585 = vmatpush1.msra.mxu0 0.0
  %1586 = vmatprep.subr.mxu0 0.0
  %1587 = vmatpush1.msra.mxu0 0.0
  %1588 = vmatprep.subr.mxu0 0.0
  %1589 = vmatpush1.msra.mxu0 0.0
  %1590 = vmatprep.subr.mxu0 0.0
  %1591 = vmatpush1.msra.mxu0 0.0
  %1592 = vmatprep.subr.mxu0 0.0
  %1593 = vmatpush1.msra.mxu0 0.0
  %1594 = vmatprep.subr.mxu0 0.0
  %1595 = vmatpush1.msra.mxu0 0.0
  %1596 = vmatprep.subr.mxu0 0.0
  %1597 = vmatpush1.msra.mxu0 0.0
  %1598 = vmatprep.subr.mxu0 0.0
  %1599 = vmatpush1.msra.mxu0 0.0
  %1600 = vmatprep.mubr.f32.mxu0 0.0
  %1601 = vmatmul.mubr.f32.gmra.mrb[0].mxu0 %v1534
  %v1602 = vpop.f32.mrb[0].mxu0
  %v1603 = vadd.f32 0.0, %v1602
  %v1604 = vpop.f32.mrb[0].mxu0
  %1605 = vdwg.mxu0
  %v1606 = vadd.f32 %v1533, %v1603
  %v1607 = vxor.u32 %v1606, 2147483648
  %v1608 = vmul.f32 %v1607, 1.442695
  %v1609 = vpow.pop %v1608
  %v1610 = vadd.f32 %v1609, 1.0
  %v1611 = vrcp.pop %v1610
  %v1612 = vmul.f32 1.0, %v1611
  %v1613 = vtanh.pop %v1606
  %v1614 = vmul.f32 %v1612, %v1521
  %1616 = vrot.lane.b32.xlu0 %v1613, 32
  %v1617 = vpop.permute.xlu0 %1616
  %v1619 = vmul.f32 %v1612, %v1617
  %1621 = vrot.lane.b32.xlu0 %v1619, 32
  %v1622 = vpop.permute.xlu0 %1621
  %v1624 = vadd.f32 %v1614, %v1622
  %v1625 = vtanh.pop %v1624
  %1627 = vrot.lane.b32.xlu0 %v1625, 32
  %v1628 = vpop.permute.xlu0 %1627
  %v1630 = vmul.f32 %v1612, %v1628
  %1632 = vrot.lane.b32.xlu0 %v1630, 64
  %v1633 = vpop.permute.xlu0 %1632
  %1635 = vst.msk [vmem:[#allocation3 + $0x18] sm:$0xff] %vm220, %v1633
  %v1636 = vld [vmem:[#allocation2 + $0x20] sm:$0xff]
  %v1637 = vsel %vm220, %v1633, 0
  %1639 = vmatprep.subr.mxu0 0.0
  %1640 = vmatpush1.msra.mxu0 %v1211
  %1641 = vmatprep.subr.mxu0 0.0
  %1642 = vmatpush1.msra.mxu0 %v1212
  %1643 = vmatprep.subr.mxu0 0.0
  %1644 = vmatpush1.msra.mxu0 %v1213
  %1645 = vmatprep.subr.mxu0 0.0
  %1646 = vmatpush1.msra.mxu0 %v1214
  %1647 = vmatprep.subr.mxu0 0.0
  %1648 = vmatpush1.msra.mxu0 0.0
  %1649 = vmatprep.subr.mxu0 0.0
  %1650 = vmatpush1.msra.mxu0 0.0
  %1651 = vmatprep.subr.mxu0 0.0
  %1652 = vmatpush1.msra.mxu0 0.0
  %1653 = vmatprep.subr.mxu0 0.0
  %1654 = vmatpush1.msra.mxu0 0.0
  %1655 = vmatprep.subr.mxu0 0.0
  %1656 = vmatpush1.msra.mxu0 0.0
  %1657 = vmatprep.subr.mxu0 0.0
  %1658 = vmatpush1.msra.mxu0 0.0
  %1659 = vmatprep.subr.mxu0 0.0
  %1660 = vmatpush1.msra.mxu0 0.0
  %1661 = vmatprep.subr.mxu0 0.0
  %1662 = vmatpush1.msra.mxu0 0.0
  %1663 = vmatprep.subr.mxu0 0.0
  %1664 = vmatpush1.msra.mxu0 0.0
  %1665 = vmatprep.subr.mxu0 0.0
  %1666 = vmatpush1.msra.mxu0 0.0
  %1667 = vmatprep.subr.mxu0 0.0
  %1668 = vmatpush1.msra.mxu0 0.0
  %1669 = vmatprep.subr.mxu0 0.0
  %1670 = vmatpush1.msra.mxu0 0.0
  %1671 = vmatprep.subr.mxu0 0.0
  %1672 = vmatpush1.msra.mxu0 0.0
  %1673 = vmatprep.subr.mxu0 0.0
  %1674 = vmatpush1.msra.mxu0 0.0
  %1675 = vmatprep.subr.mxu0 0.0
  %1676 = vmatpush1.msra.mxu0 0.0
  %1677 = vmatprep.subr.mxu0 0.0
  %1678 = vmatpush1.msra.mxu0 0.0
  %1679 = vmatprep.subr.mxu0 0.0
  %1680 = vmatpush1.msra.mxu0 0.0
  %1681 = vmatprep.subr.mxu0 0.0
  %1682 = vmatpush1.msra.mxu0 0.0
  %1683 = vmatprep.subr.mxu0 0.0
  %1684 = vmatpush1.msra.mxu0 0.0
  %1685 = vmatprep.subr.mxu0 0.0
  %1686 = vmatpush1.msra.mxu0 0.0
  %1687 = vmatprep.subr.mxu0 0.0
  %1688 = vmatpush1.msra.mxu0 0.0
  %1689 = vmatprep.subr.mxu0 0.0
  %1690 = vmatpush1.msra.mxu0 0.0
  %1691 = vmatprep.subr.mxu0 0.0
  %1692 = vmatpush1.msra.mxu0 0.0
  %1693 = vmatprep.subr.mxu0 0.0
  %1694 = vmatpush1.msra.mxu0 0.0
  %1695 = vmatprep.subr.mxu0 0.0
  %1696 = vmatpush1.msra.mxu0 0.0
  %1697 = vmatprep.subr.mxu0 0.0
  %1698 = vmatpush1.msra.mxu0 0.0
  %1699 = vmatprep.subr.mxu0 0.0
  %1700 = vmatpush1.msra.mxu0 0.0
  %1701 = vmatprep.subr.mxu0 0.0
  %1702 = vmatpush1.msra.mxu0 0.0
  %1703 = vmatprep.mubr.f32.mxu0 0.0
  %1704 = vmatmul.mubr.f32.gmra.mrb[0].mxu0 %v1637
  %v1705 = vpop.f32.mrb[0].mxu0
  %v1706 = vadd.f32 0.0, %v1705
  %v1707 = vpop.f32.mrb[0].mxu0
  %1708 = vdwg.mxu0
  %v1709 = vadd.f32 %v1636, %v1706
  %v1710 = vxor.u32 %v1709, 2147483648
  %v1711 = vmul.f32 %v1710, 1.442695
  %v1712 = vpow.pop %v1711
  %v1713 = vadd.f32 %v1712, 1.0
  %v1714 = vrcp.pop %v1713
  %v1715 = vmul.f32 1.0, %v1714
  %v1716 = vtanh.pop %v1709
  %v1717 = vmul.f32 %v1715, %v1624
  %1719 = vrot.lane.b32.xlu0 %v1716, 32
  %v1720 = vpop.permute.xlu0 %1719
  %v1722 = vmul.f32 %v1715, %v1720
  %1724 = vrot.lane.b32.xlu0 %v1722, 32
  %v1725 = vpop.permute.xlu0 %1724
  %v1727 = vadd.f32 %v1717, %v1725
  %v1728 = vtanh.pop %v1727
  %1730 = vrot.lane.b32.xlu0 %v1728, 32
  %v1731 = vpop.permute.xlu0 %1730
  %v1733 = vmul.f32 %v1715, %v1731
  %1735 = vrot.lane.b32.xlu0 %v1733, 64
  %v1736 = vpop.permute.xlu0 %1735
  %1738 = vst.msk [vmem:[#allocation3 + $0x20] sm:$0xff] %vm220, %v1736
  %v1739 = vld [vmem:[#allocation2 + $0x28] sm:$0xff]
  %v1740 = vsel %vm220, %v1736, 0
  %1742 = vmatprep.subr.mxu0 0.0
  %1743 = vmatpush1.msra.mxu0 %v1211
  %1744 = vmatprep.subr.mxu0 0.0
  %1745 = vmatpush1.msra.mxu0 %v1212
  %1746 = vmatprep.subr.mxu0 0.0
  %1747 = vmatpush1.msra.mxu0 %v1213
  %1748 = vmatprep.subr.mxu0 0.0
  %1749 = vmatpush1.msra.mxu0 %v1214
  %1750 = vmatprep.subr.mxu0 0.0
  %1751 = vmatpush1.msra.mxu0 0.0
  %1752 = vmatprep.subr.mxu0 0.0
  %1753 = vmatpush1.msra.mxu0 0.0
  %1754 = vmatprep.subr.mxu0 0.0
  %1755 = vmatpush1.msra.mxu0 0.0
  %1756 = vmatprep.subr.mxu0 0.0
  %1757 = vmatpush1.msra.mxu0 0.0
  %1758 = vmatprep.subr.mxu0 0.0
  %1759 = vmatpush1.msra.mxu0 0.0
  %1760 = vmatprep.subr.mxu0 0.0
  %1761 = vmatpush1.msra.mxu0 0.0
  %1762 = vmatprep.subr.mxu0 0.0
  %1763 = vmatpush1.msra.mxu0 0.0
  %1764 = vmatprep.subr.mxu0 0.0
  %1765 = vmatpush1.msra.mxu0 0.0
  %1766 = vmatprep.subr.mxu0 0.0
  %1767 = vmatpush1.msra.mxu0 0.0
  %1768 = vmatprep.subr.mxu0 0.0
  %1769 = vmatpush1.msra.mxu0 0.0
  %1770 = vmatprep.subr.mxu0 0.0
  %1771 = vmatpush1.msra.mxu0 0.0
  %1772 = vmatprep.subr.mxu0 0.0
  %1773 = vmatpush1.msra.mxu0 0.0
  %1774 = vmatprep.subr.mxu0 0.0
  %1775 = vmatpush1.msra.mxu0 0.0
  %1776 = vmatprep.subr.mxu0 0.0
  %1777 = vmatpush1.msra.mxu0 0.0
  %1778 = vmatprep.subr.mxu0 0.0
  %1779 = vmatpush1.msra.mxu0 0.0
  %1780 = vmatprep.subr.mxu0 0.0
  %1781 = vmatpush1.msra.mxu0 0.0
  %1782 = vmatprep.subr.mxu0 0.0
  %1783 = vmatpush1.msra.mxu0 0.0
  %1784 = vmatprep.subr.mxu0 0.0
  %1785 = vmatpush1.msra.mxu0 0.0
  %1786 = vmatprep.subr.mxu0 0.0
  %1787 = vmatpush1.msra.mxu0 0.0
  %1788 = vmatprep.subr.mxu0 0.0
  %1789 = vmatpush1.msra.mxu0 0.0
  %1790 = vmatprep.subr.mxu0 0.0
  %1791 = vmatpush1.msra.mxu0 0.0
  %1792 = vmatprep.subr.mxu0 0.0
  %1793 = vmatpush1.msra.mxu0 0.0
  %1794 = vmatprep.subr.mxu0 0.0
  %1795 = vmatpush1.msra.mxu0 0.0
  %1796 = vmatprep.subr.mxu0 0.0
  %1797 = vmatpush1.msra.mxu0 0.0
  %1798 = vmatprep.subr.mxu0 0.0
  %1799 = vmatpush1.msra.mxu0 0.0
  %1800 = vmatprep.subr.mxu0 0.0
  %1801 = vmatpush1.msra.mxu0 0.0
  %1802 = vmatprep.subr.mxu0 0.0
  %1803 = vmatpush1.msra.mxu0 0.0
  %1804 = vmatprep.subr.mxu0 0.0
  %1805 = vmatpush1.msra.mxu0 0.0
  %1806 = vmatprep.mubr.f32.mxu0 0.0
  %1807 = vmatmul.mubr.f32.gmra.mrb[0].mxu0 %v1740
  %v1808 = vpop.f32.mrb[0].mxu0
  %v1809 = vadd.f32 0.0, %v1808
  %v1810 = vpop.f32.mrb[0].mxu0
  %1811 = vdwg.mxu0
  %v1812 = vadd.f32 %v1739, %v1809
  %v1813 = vxor.u32 %v1812, 2147483648
  %v1814 = vmul.f32 %v1813, 1.442695
  %v1815 = vpow.pop %v1814
  %v1816 = vadd.f32 %v1815, 1.0
  %v1817 = vrcp.pop %v1816
  %v1818 = vmul.f32 1.0, %v1817
  %v1819 = vtanh.pop %v1812
  %v1820 = vmul.f32 %v1818, %v1727
  %1822 = vrot.lane.b32.xlu0 %v1819, 32
  %v1823 = vpop.permute.xlu0 %1822
  %v1825 = vmul.f32 %v1818, %v1823
  %1827 = vrot.lane.b32.xlu0 %v1825, 32
  %v1828 = vpop.permute.xlu0 %1827
  %v1830 = vadd.f32 %v1820, %v1828
  %v1831 = vtanh.pop %v1830
  %1833 = vrot.lane.b32.xlu0 %v1831, 32
  %v1834 = vpop.permute.xlu0 %1833
  %v1836 = vmul.f32 %v1818, %v1834
  %1838 = vrot.lane.b32.xlu0 %v1836, 64
  %v1839 = vpop.permute.xlu0 %1838
  %1841 = vst.msk [vmem:[#allocation3 + $0x28] sm:$0xff] %vm220, %v1839
  %v1842 = vld [vmem:[#allocation2 + $0x30] sm:$0xff]
  %v1843 = vsel %vm220, %v1839, 0
  %1845 = vmatprep.subr.mxu0 0.0
  %1846 = vmatpush1.msra.mxu0 %v1211
  %1847 = vmatprep.subr.mxu0 0.0
  %1848 = vmatpush1.msra.mxu0 %v1212
  %1849 = vmatprep.subr.mxu0 0.0
  %1850 = vmatpush1.msra.mxu0 %v1213
  %1851 = vmatprep.subr.mxu0 0.0
  %1852 = vmatpush1.msra.mxu0 %v1214
  %1853 = vmatprep.subr.mxu0 0.0
  %1854 = vmatpush1.msra.mxu0 0.0
  %1855 = vmatprep.subr.mxu0 0.0
  %1856 = vmatpush1.msra.mxu0 0.0
  %1857 = vmatprep.subr.mxu0 0.0
  %1858 = vmatpush1.msra.mxu0 0.0
  %1859 = vmatprep.subr.mxu0 0.0
  %1860 = vmatpush1.msra.mxu0 0.0
  %1861 = vmatprep.subr.mxu0 0.0
  %1862 = vmatpush1.msra.mxu0 0.0
  %1863 = vmatprep.subr.mxu0 0.0
  %1864 = vmatpush1.msra.mxu0 0.0
  %1865 = vmatprep.subr.mxu0 0.0
  %1866 = vmatpush1.msra.mxu0 0.0
  %1867 = vmatprep.subr.mxu0 0.0
  %1868 = vmatpush1.msra.mxu0 0.0
  %1869 = vmatprep.subr.mxu0 0.0
  %1870 = vmatpush1.msra.mxu0 0.0
  %1871 = vmatprep.subr.mxu0 0.0
  %1872 = vmatpush1.msra.mxu0 0.0
  %1873 = vmatprep.subr.mxu0 0.0
  %1874 = vmatpush1.msra.mxu0 0.0
  %1875 = vmatprep.subr.mxu0 0.0
  %1876 = vmatpush1.msra.mxu0 0.0
  %1877 = vmatprep.subr.mxu0 0.0
  %1878 = vmatpush1.msra.mxu0 0.0
  %1879 = vmatprep.subr.mxu0 0.0
  %1880 = vmatpush1.msra.mxu0 0.0
  %1881 = vmatprep.subr.mxu0 0.0
  %1882 = vmatpush1.msra.mxu0 0.0
  %1883 = vmatprep.subr.mxu0 0.0
  %1884 = vmatpush1.msra.mxu0 0.0
  %1885 = vmatprep.subr.mxu0 0.0
  %1886 = vmatpush1.msra.mxu0 0.0
  %1887 = vmatprep.subr.mxu0 0.0
  %1888 = vmatpush1.msra.mxu0 0.0
  %1889 = vmatprep.subr.mxu0 0.0
  %1890 = vmatpush1.msra.mxu0 0.0
  %1891 = vmatprep.subr.mxu0 0.0
  %1892 = vmatpush1.msra.mxu0 0.0
  %1893 = vmatprep.subr.mxu0 0.0
  %1894 = vmatpush1.msra.mxu0 0.0
  %1895 = vmatprep.subr.mxu0 0.0
  %1896 = vmatpush1.msra.mxu0 0.0
  %1897 = vmatprep.subr.mxu0 0.0
  %1898 = vmatpush1.msra.mxu0 0.0
  %1899 = vmatprep.subr.mxu0 0.0
  %1900 = vmatpush1.msra.mxu0 0.0
  %1901 = vmatprep.subr.mxu0 0.0
  %1902 = vmatpush1.msra.mxu0 0.0
  %1903 = vmatprep.subr.mxu0 0.0
  %1904 = vmatpush1.msra.mxu0 0.0
  %1905 = vmatprep.subr.mxu0 0.0
  %1906 = vmatpush1.msra.mxu0 0.0
  %1907 = vmatprep.subr.mxu0 0.0
  %1908 = vmatpush1.msra.mxu0 0.0
  %1909 = vmatprep.mubr.f32.mxu0 0.0
  %1910 = vmatmul.mubr.f32.gmra.mrb[0].mxu0 %v1843
  %v1911 = vpop.f32.mrb[0].mxu0
  %v1912 = vadd.f32 0.0, %v1911
  %v1913 = vpop.f32.mrb[0].mxu0
  %1914 = vdwg.mxu0
  %v1915 = vadd.f32 %v1842, %v1912
  %v1916 = vxor.u32 %v1915, 2147483648
  %v1917 = vmul.f32 %v1916, 1.442695
  %v1918 = vpow.pop %v1917
  %v1919 = vadd.f32 %v1918, 1.0
  %v1920 = vrcp.pop %v1919
  %v1921 = vmul.f32 1.0, %v1920
  %v1922 = vtanh.pop %v1915
  %v1923 = vmul.f32 %v1921, %v1830
  %1925 = vrot.lane.b32.xlu0 %v1922, 32
  %v1926 = vpop.permute.xlu0 %1925
  %v1928 = vmul.f32 %v1921, %v1926
  %1930 = vrot.lane.b32.xlu0 %v1928, 32
  %v1931 = vpop.permute.xlu0 %1930
  %v1933 = vadd.f32 %v1923, %v1931
  %v1934 = vtanh.pop %v1933
  %1936 = vrot.lane.b32.xlu0 %v1934, 32
  %v1937 = vpop.permute.xlu0 %1936
  %v1939 = vmul.f32 %v1921, %v1937
  %1941 = vrot.lane.b32.xlu0 %v1939, 64
  %v1942 = vpop.permute.xlu0 %1941
  %1944 = vst.msk [vmem:[#allocation3 + $0x30] sm:$0xff] %vm220, %v1942
  %v1945 = vld [vmem:[#allocation2 + $0x38] sm:$0xff]
  %v1946 = vsel %vm220, %v1942, 0
  %1948 = vmatprep.subr.mxu0 0.0
  %1949 = vmatpush1.msra.mxu0 %v1211
  %1950 = vmatprep.subr.mxu0 0.0
  %1951 = vmatpush1.msra.mxu0 %v1212
  %1952 = vmatprep.subr.mxu0 0.0
  %1953 = vmatpush1.msra.mxu0 %v1213
  %1954 = vmatprep.subr.mxu0 0.0
  %1955 = vmatpush1.msra.mxu0 %v1214
  %1956 = vmatprep.subr.mxu0 0.0
  %1957 = vmatpush1.msra.mxu0 0.0
  %1958 = vmatprep.subr.mxu0 0.0
  %1959 = vmatpush1.msra.mxu0 0.0
  %1960 = vmatprep.subr.mxu0 0.0
  %1961 = vmatpush1.msra.mxu0 0.0
  %1962 = vmatprep.subr.mxu0 0.0
  %1963 = vmatpush1.msra.mxu0 0.0
  %1964 = vmatprep.subr.mxu0 0.0
  %1965 = vmatpush1.msra.mxu0 0.0
  %1966 = vmatprep.subr.mxu0 0.0
  %1967 = vmatpush1.msra.mxu0 0.0
  %1968 = vmatprep.subr.mxu0 0.0
  %1969 = vmatpush1.msra.mxu0 0.0
  %1970 = vmatprep.subr.mxu0 0.0
  %1971 = vmatpush1.msra.mxu0 0.0
  %1972 = vmatprep.subr.mxu0 0.0
  %1973 = vmatpush1.msra.mxu0 0.0
  %1974 = vmatprep.subr.mxu0 0.0
  %1975 = vmatpush1.msra.mxu0 0.0
  %1976 = vmatprep.subr.mxu0 0.0
  %1977 = vmatpush1.msra.mxu0 0.0
  %1978 = vmatprep.subr.mxu0 0.0
  %1979 = vmatpush1.msra.mxu0 0.0
  %1980 = vmatprep.subr.mxu0 0.0
  %1981 = vmatpush1.msra.mxu0 0.0
  %1982 = vmatprep.subr.mxu0 0.0
  %1983 = vmatpush1.msra.mxu0 0.0
  %1984 = vmatprep.subr.mxu0 0.0
  %1985 = vmatpush1.msra.mxu0 0.0
  %1986 = vmatprep.subr.mxu0 0.0
  %1987 = vmatpush1.msra.mxu0 0.0
  %1988 = vmatprep.subr.mxu0 0.0
  %1989 = vmatpush1.msra.mxu0 0.0
  %1990 = vmatprep.subr.mxu0 0.0
  %1991 = vmatpush1.msra.mxu0 0.0
  %1992 = vmatprep.subr.mxu0 0.0
  %1993 = vmatpush1.msra.mxu0 0.0
  %1994 = vmatprep.subr.mxu0 0.0
  %1995 = vmatpush1.msra.mxu0 0.0
  %1996 = vmatprep.subr.mxu0 0.0
  %1997 = vmatpush1.msra.mxu0 0.0
  %1998 = vmatprep.subr.mxu0 0.0
  %1999 = vmatpush1.msra.mxu0 0.0
  %2000 = vmatprep.subr.mxu0 0.0
  %2001 = vmatpush1.msra.mxu0 0.0
  %2002 = vmatprep.subr.mxu0 0.0
  %2003 = vmatpush1.msra.mxu0 0.0
  %2004 = vmatprep.subr.mxu0 0.0
  %2005 = vmatpush1.msra.mxu0 0.0
  %2006 = vmatprep.subr.mxu0 0.0
  %2007 = vmatpush1.msra.mxu0 0.0
  %2008 = vmatprep.subr.mxu0 0.0
  %2009 = vmatpush1.msra.mxu0 0.0
  %2010 = vmatprep.subr.mxu0 0.0
  %2011 = vmatpush1.msra.mxu0 0.0
  %2012 = vmatprep.mubr.f32.mxu0 0.0
  %2013 = vmatmul.mubr.f32.gmra.mrb[0].mxu0 %v1946
  %v2014 = vpop.f32.mrb[0].mxu0
  %v2015 = vadd.f32 0.0, %v2014
  %v2016 = vpop.f32.mrb[0].mxu0
  %2017 = vdwg.mxu0
  %v2018 = vadd.f32 %v1945, %v2015
  %v2019 = vxor.u32 %v2018, 2147483648
  %v2020 = vmul.f32 %v2019, 1.442695
  %v2021 = vpow.pop %v2020
  %v2022 = vadd.f32 %v2021, 1.0
  %v2023 = vrcp.pop %v2022
  %v2024 = vmul.f32 1.0, %v2023
  %v2025 = vtanh.pop %v2018
  %v2026 = vmul.f32 %v2024, %v1933
  %2028 = vrot.lane.b32.xlu0 %v2025, 32
  %v2029 = vpop.permute.xlu0 %2028
  %v2031 = vmul.f32 %v2024, %v2029
  %2033 = vrot.lane.b32.xlu0 %v2031, 32
  %v2034 = vpop.permute.xlu0 %2033
  %v2036 = vadd.f32 %v2026, %v2034
  %v2037 = vtanh.pop %v2036
  %2039 = vrot.lane.b32.xlu0 %v2037, 32
  %v2040 = vpop.permute.xlu0 %2039
  %v2042 = vmul.f32 %v2024, %v2040
  %2044 = vrot.lane.b32.xlu0 %v2042, 64
  %v2045 = vpop.permute.xlu0 %2044
  %2047 = vst.msk [vmem:[#allocation3 + $0x38] sm:$0xff] %vm220, %v2045
  %s2048 = scalar_lea.vmem %s18, 8
  %2049 = vst.msk [vmem:[%s2048] sm:$0xff] %vm220, %v2045
  %2051 = vrot.lane.b32.xlu0 %v2036, 96
  %v2052 = vpop.permute.xlu0 %2051
  %s2054 = scalar_lea.vmem %s19, 8
  %2055 = vst.msk [vmem:[%s2054] sm:$0xff] %vm220, %v2052
  %v2056 = vld [vmem:[#allocation3] sm:$0xff]
  %v2057 = vld [vmem:[#allocation3 + $0x8] sm:$0xff]
  %v2058 = vld [vmem:[#allocation3 + $0x10] sm:$0xff]
  %v2059 = vld [vmem:[#allocation3 + $0x18] sm:$0xff]
  %v2060 = vld [vmem:[#allocation3 + $0x20] sm:$0xff]
  %v2061 = vld [vmem:[#allocation3 + $0x28] sm:$0xff]
  %v2062 = vld [vmem:[#allocation3 + $0x30] sm:$0xff]
  %v2063 = vld [vmem:[#allocation3 + $0x38] sm:$0xff]
  %v2064 = vld [vmem:[%s9] sm:$0xff]
  %v2065 = vld [vmem:[%s9 + $0x8] sm:$0xff]
  %v2066 = vld [vmem:[%s9 + $0x10] sm:$0xff]
  %v2067 = vld [vmem:[%s9 + $0x18] sm:$0xff]
  %v2068 = vld [vmem:[%s10] sm:$0x1]
  %v2070 = vlaneseq
  %v2071 = vshrl.u32 %v2070, 7
  %v2072 = vsub.s32 0, %v2071
  %v2073 = vrot.slane %v2068, %v2072
  %v2076 = vsel %vm220, %v2056, 0
  %v2079 = vsel %vm220, %v2057, 0
  %v2082 = vsel %vm220, %v2058, 0
  %v2085 = vsel %vm220, %v2059, 0
  %v2088 = vsel %vm220, %v2060, 0
  %v2091 = vsel %vm220, %v2061, 0
  %v2094 = vsel %vm220, %v2062, 0
  %v2097 = vsel %vm220, %v2063, 0
  %2099 = vmatprep.subr.mxu0 0.0
  %2100 = vmatpush1.msra.mxu0 %v2064
  %2101 = vmatprep.subr.mxu0 0.0
  %2102 = vmatpush1.msra.mxu0 %v2065
  %2103 = vmatprep.subr.mxu0 0.0
  %2104 = vmatpush1.msra.mxu0 %v2066
  %2105 = vmatprep.subr.mxu0 0.0
  %2106 = vmatpush1.msra.mxu0 %v2067
  %2107 = vmatprep.subr.mxu0 0.0
  %2108 = vmatpush1.msra.mxu0 0.0
  %2109 = vmatprep.subr.mxu0 0.0
  %2110 = vmatpush1.msra.mxu0 0.0
  %2111 = vmatprep.subr.mxu0 0.0
  %2112 = vmatpush1.msra.mxu0 0.0
  %2113 = vmatprep.subr.mxu0 0.0
  %2114 = vmatpush1.msra.mxu0 0.0
  %2115 = vmatprep.subr.mxu0 0.0
  %2116 = vmatpush1.msra.mxu0 0.0
  %2117 = vmatprep.subr.mxu0 0.0
  %2118 = vmatpush1.msra.mxu0 0.0
  %2119 = vmatprep.subr.mxu0 0.0
  %2120 = vmatpush1.msra.mxu0 0.0
  %2121 = vmatprep.subr.mxu0 0.0
  %2122 = vmatpush1.msra.mxu0 0.0
  %2123 = vmatprep.subr.mxu0 0.0
  %2124 = vmatpush1.msra.mxu0 0.0
  %2125 = vmatprep.subr.mxu0 0.0
  %2126 = vmatpush1.msra.mxu0 0.0
  %2127 = vmatprep.subr.mxu0 0.0
  %2128 = vmatpush1.msra.mxu0 0.0
  %2129 = vmatprep.subr.mxu0 0.0
  %2130 = vmatpush1.msra.mxu0 0.0
  %2131 = vmatprep.subr.mxu0 0.0
  %2132 = vmatpush1.msra.mxu0 0.0
  %2133 = vmatprep.subr.mxu0 0.0
  %2134 = vmatpush1.msra.mxu0 0.0
  %2135 = vmatprep.subr.mxu0 0.0
  %2136 = vmatpush1.msra.mxu0 0.0
  %2137 = vmatprep.subr.mxu0 0.0
  %2138 = vmatpush1.msra.mxu0 0.0
  %2139 = vmatprep.subr.mxu0 0.0
  %2140 = vmatpush1.msra.mxu0 0.0
  %2141 = vmatprep.subr.mxu0 0.0
  %2142 = vmatpush1.msra.mxu0 0.0
  %2143 = vmatprep.subr.mxu0 0.0
  %2144 = vmatpush1.msra.mxu0 0.0
  %2145 = vmatprep.subr.mxu0 0.0
  %2146 = vmatpush1.msra.mxu0 0.0
  %2147 = vmatprep.subr.mxu0 0.0
  %2148 = vmatpush1.msra.mxu0 0.0
  %2149 = vmatprep.subr.mxu0 0.0
  %2150 = vmatpush1.msra.mxu0 0.0
  %2151 = vmatprep.subr.mxu0 0.0
  %2152 = vmatpush1.msra.mxu0 0.0
  %2153 = vmatprep.subr.mxu0 0.0
  %2154 = vmatpush1.msra.mxu0 0.0
  %2155 = vmatprep.subr.mxu0 0.0
  %2156 = vmatpush1.msra.mxu0 0.0
  %2157 = vmatprep.subr.mxu0 0.0
  %2158 = vmatpush1.msra.mxu0 0.0
  %2159 = vmatprep.subr.mxu0 0.0
  %2160 = vmatpush1.msra.mxu0 0.0
  %2161 = vmatprep.subr.mxu0 0.0
  %2162 = vmatpush1.msra.mxu0 0.0
  %2163 = vmatprep.mubr.f32.mxu0 0.0
  %2164 = vmatmul.mubr.f32.gmra.mrb[0].mxu0 %v2076
  %v2165 = vpop.f32.mrb[0].mxu0
  %v2166 = vadd.f32 %v2073, %v2165
  %v2167 = vpop.f32.mrb[0].mxu0
  %2168 = vmatprep.mubr.f32.mxu0 0.0
  %2169 = vmatmul.mubr.f32.gmra.mrb[0].mxu0 %v2079
  %v2170 = vpop.f32.mrb[0].mxu0
  %v2171 = vadd.f32 %v2073, %v2170
  %v2172 = vpop.f32.mrb[0].mxu0
  %2173 = vmatprep.mubr.f32.mxu0 0.0
  %2174 = vmatmul.mubr.f32.gmra.mrb[0].mxu0 %v2082
  %v2175 = vpop.f32.mrb[0].mxu0
  %v2176 = vadd.f32 %v2073, %v2175
  %v2177 = vpop.f32.mrb[0].mxu0
  %2178 = vmatprep.mubr.f32.mxu0 0.0
  %2179 = vmatmul.mubr.f32.gmra.mrb[0].mxu0 %v2085
  %v2180 = vpop.f32.mrb[0].mxu0
  %v2181 = vadd.f32 %v2073, %v2180
  %v2182 = vpop.f32.mrb[0].mxu0
  %2183 = vmatprep.mubr.f32.mxu0 0.0
  %2184 = vmatmul.mubr.f32.gmra.mrb[0].mxu0 %v2088
  %v2185 = vpop.f32.mrb[0].mxu0
  %v2186 = vadd.f32 %v2073, %v2185
  %v2187 = vpop.f32.mrb[0].mxu0
  %2188 = vmatprep.mubr.f32.mxu0 0.0
  %2189 = vmatmul.mubr.f32.gmra.mrb[0].mxu0 %v2091
  %v2190 = vpop.f32.mrb[0].mxu0
  %v2191 = vadd.f32 %v2073, %v2190
  %v2192 = vpop.f32.mrb[0].mxu0
  %2193 = vmatprep.mubr.f32.mxu0 0.0
  %2194 = vmatmul.mubr.f32.gmra.mrb[0].mxu0 %v2094
  %v2195 = vpop.f32.mrb[0].mxu0
  %v2196 = vadd.f32 %v2073, %v2195
  %v2197 = vpop.f32.mrb[0].mxu0
  %2198 = vmatprep.mubr.f32.mxu0 0.0
  %2199 = vmatmul.mubr.f32.gmra.mrb[0].mxu0 %v2097
  %v2200 = vpop.f32.mrb[0].mxu0
  %v2201 = vadd.f32 %v2073, %v2200
  %v2202 = vpop.f32.mrb[0].mxu0
  %2203 = vdwg.mxu0
  %v2204 = vmax.f32 %v2166, 0.0
  %v2205 = vmax.f32 %v2171, 0.0
  %v2206 = vmax.f32 %v2176, 0.0
  %v2207 = vmax.f32 %v2181, 0.0
  %v2208 = vmax.f32 %v2186, 0.0
  %v2209 = vmax.f32 %v2191, 0.0
  %v2210 = vmax.f32 %v2196, 0.0
  %v2211 = vmax.f32 %v2201, 0.0
  %v2212 = vld [vmem:[%s11] sm:$0xff]
  %v2213 = vld [vmem:[%s11 + $0x8] sm:$0xff]
  %v2214 = vld [vmem:[%s11 + $0x10] sm:$0xff]
  %v2215 = vld [vmem:[%s11 + $0x18] sm:$0xff]
  %v2216 = vld [vmem:[%s12] sm:$0x1]
  %v2218 = vlaneseq
  %v2219 = vshrl.u32 %v2218, 7
  %v2220 = vsub.s32 0, %v2219
  %v2221 = vrot.slane %v2216, %v2220
  %v2224 = vsel %vm220, %v2204, 0
  %v2227 = vsel %vm220, %v2205, 0
  %v2230 = vsel %vm220, %v2206, 0
  %v2233 = vsel %vm220, %v2207, 0
  %v2236 = vsel %vm220, %v2208, 0
  %v2239 = vsel %vm220, %v2209, 0
  %v2242 = vsel %vm220, %v2210, 0
  %v2245 = vsel %vm220, %v2211, 0
  %2247 = vmatprep.subr.mxu0 0.0
  %2248 = vmatpush1.msra.mxu0 %v2212
  %2249 = vmatprep.subr.mxu0 0.0
  %2250 = vmatpush1.msra.mxu0 %v2213
  %2251 = vmatprep.subr.mxu0 0.0
  %2252 = vmatpush1.msra.mxu0 %v2214
  %2253 = vmatprep.subr.mxu0 0.0
  %2254 = vmatpush1.msra.mxu0 %v2215
  %2255 = vmatprep.subr.mxu0 0.0
  %2256 = vmatpush1.msra.mxu0 0.0
  %2257 = vmatprep.subr.mxu0 0.0
  %2258 = vmatpush1.msra.mxu0 0.0
  %2259 = vmatprep.subr.mxu0 0.0
  %2260 = vmatpush1.msra.mxu0 0.0
  %2261 = vmatprep.subr.mxu0 0.0
  %2262 = vmatpush1.msra.mxu0 0.0
  %2263 = vmatprep.subr.mxu0 0.0
  %2264 = vmatpush1.msra.mxu0 0.0
  %2265 = vmatprep.subr.mxu0 0.0
  %2266 = vmatpush1.msra.mxu0 0.0
  %2267 = vmatprep.subr.mxu0 0.0
  %2268 = vmatpush1.msra.mxu0 0.0
  %2269 = vmatprep.subr.mxu0 0.0
  %2270 = vmatpush1.msra.mxu0 0.0
  %2271 = vmatprep.subr.mxu0 0.0
  %2272 = vmatpush1.msra.mxu0 0.0
  %2273 = vmatprep.subr.mxu0 0.0
  %2274 = vmatpush1.msra.mxu0 0.0
  %2275 = vmatprep.subr.mxu0 0.0
  %2276 = vmatpush1.msra.mxu0 0.0
  %2277 = vmatprep.subr.mxu0 0.0
  %2278 = vmatpush1.msra.mxu0 0.0
  %2279 = vmatprep.subr.mxu0 0.0
  %2280 = vmatpush1.msra.mxu0 0.0
  %2281 = vmatprep.subr.mxu0 0.0
  %2282 = vmatpush1.msra.mxu0 0.0
  %2283 = vmatprep.subr.mxu0 0.0
  %2284 = vmatpush1.msra.mxu0 0.0
  %2285 = vmatprep.subr.mxu0 0.0
  %2286 = vmatpush1.msra.mxu0 0.0
  %2287 = vmatprep.subr.mxu0 0.0
  %2288 = vmatpush1.msra.mxu0 0.0
  %2289 = vmatprep.subr.mxu0 0.0
  %2290 = vmatpush1.msra.mxu0 0.0
  %2291 = vmatprep.subr.mxu0 0.0
  %2292 = vmatpush1.msra.mxu0 0.0
  %2293 = vmatprep.subr.mxu0 0.0
  %2294 = vmatpush1.msra.mxu0 0.0
  %2295 = vmatprep.subr.mxu0 0.0
  %2296 = vmatpush1.msra.mxu0 0.0
  %2297 = vmatprep.subr.mxu0 0.0
  %2298 = vmatpush1.msra.mxu0 0.0
  %2299 = vmatprep.subr.mxu0 0.0
  %2300 = vmatpush1.msra.mxu0 0.0
  %2301 = vmatprep.subr.mxu0 0.0
  %2302 = vmatpush1.msra.mxu0 0.0
  %2303 = vmatprep.subr.mxu0 0.0
  %2304 = vmatpush1.msra.mxu0 0.0
  %2305 = vmatprep.subr.mxu0 0.0
  %2306 = vmatpush1.msra.mxu0 0.0
  %2307 = vmatprep.subr.mxu0 0.0
  %2308 = vmatpush1.msra.mxu0 0.0
  %2309 = vmatprep.subr.mxu0 0.0
  %2310 = vmatpush1.msra.mxu0 0.0
  %2311 = vmatprep.mubr.f32.mxu0 0.0
  %2312 = vmatmul.mubr.f32.gmra.mrb[0].mxu0 %v2224
  %v2313 = vpop.f32.mrb[0].mxu0
  %v2314 = vadd.f32 %v2221, %v2313
  %v2315 = vpop.f32.mrb[0].mxu0
  %2316 = vmatprep.mubr.f32.mxu0 0.0
  %2317 = vmatmul.mubr.f32.gmra.mrb[0].mxu0 %v2227
  %v2318 = vpop.f32.mrb[0].mxu0
  %v2319 = vadd.f32 %v2221, %v2318
  %v2320 = vpop.f32.mrb[0].mxu0
  %2321 = vmatprep.mubr.f32.mxu0 0.0
  %2322 = vmatmul.mubr.f32.gmra.mrb[0].mxu0 %v2230
  %v2323 = vpop.f32.mrb[0].mxu0
  %v2324 = vadd.f32 %v2221, %v2323
  %v2325 = vpop.f32.mrb[0].mxu0
  %2326 = vmatprep.mubr.f32.mxu0 0.0
  %2327 = vmatmul.mubr.f32.gmra.mrb[0].mxu0 %v2233
  %v2328 = vpop.f32.mrb[0].mxu0
  %v2329 = vadd.f32 %v2221, %v2328
  %v2330 = vpop.f32.mrb[0].mxu0
  %2331 = vmatprep.mubr.f32.mxu0 0.0
  %2332 = vmatmul.mubr.f32.gmra.mrb[0].mxu0 %v2236
  %v2333 = vpop.f32.mrb[0].mxu0
  %v2334 = vadd.f32 %v2221, %v2333
  %v2335 = vpop.f32.mrb[0].mxu0
  %2336 = vmatprep.mubr.f32.mxu0 0.0
  %2337 = vmatmul.mubr.f32.gmra.mrb[0].mxu0 %v2239
  %v2338 = vpop.f32.mrb[0].mxu0
  %v2339 = vadd.f32 %v2221, %v2338
  %v2340 = vpop.f32.mrb[0].mxu0
  %2341 = vmatprep.mubr.f32.mxu0 0.0
  %2342 = vmatmul.mubr.f32.gmra.mrb[0].mxu0 %v2242
  %v2343 = vpop.f32.mrb[0].mxu0
  %v2344 = vadd.f32 %v2221, %v2343
  %v2345 = vpop.f32.mrb[0].mxu0
  %2346 = vmatprep.mubr.f32.mxu0 0.0
  %2347 = vmatmul.mubr.f32.gmra.mrb[0].mxu0 %v2245
  %v2348 = vpop.f32.mrb[0].mxu0
  %v2349 = vadd.f32 %v2221, %v2348
  %v2350 = vpop.f32.mrb[0].mxu0
  %2351 = vdwg.mxu0
  %v2352 = vmax.f32 %v2314, 0.0
  %v2353 = vmax.f32 %v2319, 0.0
  %v2354 = vmax.f32 %v2324, 0.0
  %v2355 = vmax.f32 %v2329, 0.0
  %v2356 = vmax.f32 %v2334, 0.0
  %v2357 = vmax.f32 %v2339, 0.0
  %v2358 = vmax.f32 %v2344, 0.0
  %v2359 = vmax.f32 %v2349, 0.0
  %v2360 = vld [vmem:[%s13] sm:$0xff]
  %v2361 = vld [vmem:[%s13 + $0x8] sm:$0xff]
  %v2362 = vld [vmem:[%s14] sm:$0x1]
  %v2364 = vlaneseq
  %v2365 = vshrl.u32 %v2364, 7
  %v2366 = vsub.s32 0, %v2365
  %v2367 = vrot.slane %v2362, %v2366
  %vm2369 = vcmask 130048
  %v2371 = vsel %vm2369, %v2352, 0
  %v2374 = vsel %vm2369, %v2353, 0
  %v2377 = vsel %vm2369, %v2354, 0
  %v2380 = vsel %vm2369, %v2355, 0
  %v2383 = vsel %vm2369, %v2356, 0
  %v2386 = vsel %vm2369, %v2357, 0
  %v2389 = vsel %vm2369, %v2358, 0
  %v2392 = vsel %vm2369, %v2359, 0
  %2394 = vmatprep.subr.mxu0 0.0
  %2395 = vmatpush1.msra.mxu0 %v2360
  %2396 = vmatprep.subr.mxu0 0.0
  %2397 = vmatpush1.msra.mxu0 %v2361
  %2398 = vmatprep.subr.mxu0 0.0
  %2399 = vmatpush1.msra.mxu0 0.0
  %2400 = vmatprep.subr.mxu0 0.0
  %2401 = vmatpush1.msra.mxu0 0.0
  %2402 = vmatprep.subr.mxu0 0.0
  %2403 = vmatpush1.msra.mxu0 0.0
  %2404 = vmatprep.subr.mxu0 0.0
  %2405 = vmatpush1.msra.mxu0 0.0
  %2406 = vmatprep.subr.mxu0 0.0
  %2407 = vmatpush1.msra.mxu0 0.0
  %2408 = vmatprep.subr.mxu0 0.0
  %2409 = vmatpush1.msra.mxu0 0.0
  %2410 = vmatprep.subr.mxu0 0.0
  %2411 = vmatpush1.msra.mxu0 0.0
  %2412 = vmatprep.subr.mxu0 0.0
  %2413 = vmatpush1.msra.mxu0 0.0
  %2414 = vmatprep.subr.mxu0 0.0
  %2415 = vmatpush1.msra.mxu0 0.0
  %2416 = vmatprep.subr.mxu0 0.0
  %2417 = vmatpush1.msra.mxu0 0.0
  %2418 = vmatprep.subr.mxu0 0.0
  %2419 = vmatpush1.msra.mxu0 0.0
  %2420 = vmatprep.subr.mxu0 0.0
  %2421 = vmatpush1.msra.mxu0 0.0
  %2422 = vmatprep.subr.mxu0 0.0
  %2423 = vmatpush1.msra.mxu0 0.0
  %2424 = vmatprep.subr.mxu0 0.0
  %2425 = vmatpush1.msra.mxu0 0.0
  %2426 = vmatprep.subr.mxu0 0.0
  %2427 = vmatpush1.msra.mxu0 0.0
  %2428 = vmatprep.subr.mxu0 0.0
  %2429 = vmatpush1.msra.mxu0 0.0
  %2430 = vmatprep.subr.mxu0 0.0
  %2431 = vmatpush1.msra.mxu0 0.0
  %2432 = vmatprep.subr.mxu0 0.0
  %2433 = vmatpush1.msra.mxu0 0.0
  %2434 = vmatprep.subr.mxu0 0.0
  %2435 = vmatpush1.msra.mxu0 0.0
  %2436 = vmatprep.subr.mxu0 0.0
  %2437 = vmatpush1.msra.mxu0 0.0
  %2438 = vmatprep.subr.mxu0 0.0
  %2439 = vmatpush1.msra.mxu0 0.0
  %2440 = vmatprep.subr.mxu0 0.0
  %2441 = vmatpush1.msra.mxu0 0.0
  %2442 = vmatprep.subr.mxu0 0.0
  %2443 = vmatpush1.msra.mxu0 0.0
  %2444 = vmatprep.subr.mxu0 0.0
  %2445 = vmatpush1.msra.mxu0 0.0
  %2446 = vmatprep.subr.mxu0 0.0
  %2447 = vmatpush1.msra.mxu0 0.0
  %2448 = vmatprep.subr.mxu0 0.0
  %2449 = vmatpush1.msra.mxu0 0.0
  %2450 = vmatprep.subr.mxu0 0.0
  %2451 = vmatpush1.msra.mxu0 0.0
  %2452 = vmatprep.subr.mxu0 0.0
  %2453 = vmatpush1.msra.mxu0 0.0
  %2454 = vmatprep.subr.mxu0 0.0
  %2455 = vmatpush1.msra.mxu0 0.0
  %2456 = vmatprep.subr.mxu0 0.0
  %2457 = vmatpush1.msra.mxu0 0.0
  %2458 = vmatprep.mubr.f32.mxu0 0.0
  %2459 = vmatmul.mubr.f32.gmra.mrb[0].mxu0 %v2371
  %v2460 = vpop.f32.mrb[0].mxu0
  %v2461 = vadd.f32 %v2367, %v2460
  %v2462 = vpop.f32.mrb[0].mxu0
  %2463 = vmatprep.mubr.f32.mxu0 0.0
  %2464 = vmatmul.mubr.f32.gmra.mrb[0].mxu0 %v2374
  %v2465 = vpop.f32.mrb[0].mxu0
  %v2466 = vadd.f32 %v2367, %v2465
  %v2467 = vpop.f32.mrb[0].mxu0
  %2468 = vmatprep.mubr.f32.mxu0 0.0
  %2469 = vmatmul.mubr.f32.gmra.mrb[0].mxu0 %v2377
  %v2470 = vpop.f32.mrb[0].mxu0
  %v2471 = vadd.f32 %v2367, %v2470
  %v2472 = vpop.f32.mrb[0].mxu0
  %2473 = vmatprep.mubr.f32.mxu0 0.0
  %2474 = vmatmul.mubr.f32.gmra.mrb[0].mxu0 %v2380
  %v2475 = vpop.f32.mrb[0].mxu0
  %v2476 = vadd.f32 %v2367, %v2475
  %v2477 = vpop.f32.mrb[0].mxu0
  %2478 = vmatprep.mubr.f32.mxu0 0.0
  %2479 = vmatmul.mubr.f32.gmra.mrb[0].mxu0 %v2383
  %v2480 = vpop.f32.mrb[0].mxu0
  %v2481 = vadd.f32 %v2367, %v2480
  %v2482 = vpop.f32.mrb[0].mxu0
  %2483 = vmatprep.mubr.f32.mxu0 0.0
  %2484 = vmatmul.mubr.f32.gmra.mrb[0].mxu0 %v2386
  %v2485 = vpop.f32.mrb[0].mxu0
  %v2486 = vadd.f32 %v2367, %v2485
  %v2487 = vpop.f32.mrb[0].mxu0
  %2488 = vmatprep.mubr.f32.mxu0 0.0
  %2489 = vmatmul.mubr.f32.gmra.mrb[0].mxu0 %v2389
  %v2490 = vpop.f32.mrb[0].mxu0
  %v2491 = vadd.f32 %v2367, %v2490
  %v2492 = vpop.f32.mrb[0].mxu0
  %2493 = vmatprep.mubr.f32.mxu0 0.0
  %2494 = vmatmul.mubr.f32.gmra.mrb[0].mxu0 %v2392
  %v2495 = vpop.f32.mrb[0].mxu0
  %v2496 = vadd.f32 %v2367, %v2495
  %v2497 = vpop.f32.mrb[0].mxu0
  %2498 = vdwg.mxu0
  %v2499 = vmax.f32 %v2461, 0.0
  %v2500 = vmax.f32 %v2466, 0.0
  %v2501 = vmax.f32 %v2471, 0.0
  %v2502 = vmax.f32 %v2476, 0.0
  %v2503 = vmax.f32 %v2481, 0.0
  %v2504 = vmax.f32 %v2486, 0.0
  %v2505 = vmax.f32 %v2491, 0.0
  %v2506 = vmax.f32 %v2496, 0.0
  %v2507 = vld [vmem:[%s15] sm:$0xff]
  %v2508 = vld [vmem:[%s16] sm:$0x1]
  %v2510 = vlaneseq
  %v2511 = vshrl.u32 %v2510, 7
  %v2512 = vsub.s32 0, %v2511
  %v2513 = vrot.slane %v2508, %v2512
  %v2516 = vsel %vm75, %v2499, 0
  %v2519 = vsel %vm75, %v2500, 0
  %v2522 = vsel %vm75, %v2501, 0
  %v2525 = vsel %vm75, %v2502, 0
  %v2528 = vsel %vm75, %v2503, 0
  %v2531 = vsel %vm75, %v2504, 0
  %v2534 = vsel %vm75, %v2505, 0
  %v2537 = vsel %vm75, %v2506, 0
  %2539 = vmatprep.subr.mxu0 0.0
  %2540 = vmatpush1.msra.mxu0 %v2507
  %2541 = vmatprep.subr.mxu0 0.0
  %2542 = vmatpush1.msra.mxu0 0.0
  %2543 = vmatprep.subr.mxu0 0.0
  %2544 = vmatpush1.msra.mxu0 0.0
  %2545 = vmatprep.subr.mxu0 0.0
  %2546 = vmatpush1.msra.mxu0 0.0
  %2547 = vmatprep.subr.mxu0 0.0
  %2548 = vmatpush1.msra.mxu0 0.0
  %2549 = vmatprep.subr.mxu0 0.0
  %2550 = vmatpush1.msra.mxu0 0.0
  %2551 = vmatprep.subr.mxu0 0.0
  %2552 = vmatpush1.msra.mxu0 0.0
  %2553 = vmatprep.subr.mxu0 0.0
  %2554 = vmatpush1.msra.mxu0 0.0
  %2555 = vmatprep.subr.mxu0 0.0
  %2556 = vmatpush1.msra.mxu0 0.0
  %2557 = vmatprep.subr.mxu0 0.0
  %2558 = vmatpush1.msra.mxu0 0.0
  %2559 = vmatprep.subr.mxu0 0.0
  %2560 = vmatpush1.msra.mxu0 0.0
  %2561 = vmatprep.subr.mxu0 0.0
  %2562 = vmatpush1.msra.mxu0 0.0
  %2563 = vmatprep.subr.mxu0 0.0
  %2564 = vmatpush1.msra.mxu0 0.0
  %2565 = vmatprep.subr.mxu0 0.0
  %2566 = vmatpush1.msra.mxu0 0.0
  %2567 = vmatprep.subr.mxu0 0.0
  %2568 = vmatpush1.msra.mxu0 0.0
  %2569 = vmatprep.subr.mxu0 0.0
  %2570 = vmatpush1.msra.mxu0 0.0
  %2571 = vmatprep.subr.mxu0 0.0
  %2572 = vmatpush1.msra.mxu0 0.0
  %2573 = vmatprep.subr.mxu0 0.0
  %2574 = vmatpush1.msra.mxu0 0.0
  %2575 = vmatprep.subr.mxu0 0.0
  %2576 = vmatpush1.msra.mxu0 0.0
  %2577 = vmatprep.subr.mxu0 0.0
  %2578 = vmatpush1.msra.mxu0 0.0
  %2579 = vmatprep.subr.mxu0 0.0
  %2580 = vmatpush1.msra.mxu0 0.0
  %2581 = vmatprep.subr.mxu0 0.0
  %2582 = vmatpush1.msra.mxu0 0.0
  %2583 = vmatprep.subr.mxu0 0.0
  %2584 = vmatpush1.msra.mxu0 0.0
  %2585 = vmatprep.subr.mxu0 0.0
  %2586 = vmatpush1.msra.mxu0 0.0
  %2587 = vmatprep.subr.mxu0 0.0
  %2588 = vmatpush1.msra.mxu0 0.0
  %2589 = vmatprep.subr.mxu0 0.0
  %2590 = vmatpush1.msra.mxu0 0.0
  %2591 = vmatprep.subr.mxu0 0.0
  %2592 = vmatpush1.msra.mxu0 0.0
  %2593 = vmatprep.subr.mxu0 0.0
  %2594 = vmatpush1.msra.mxu0 0.0
  %2595 = vmatprep.subr.mxu0 0.0
  %2596 = vmatpush1.msra.mxu0 0.0
  %2597 = vmatprep.subr.mxu0 0.0
  %2598 = vmatpush1.msra.mxu0 0.0
  %2599 = vmatprep.subr.mxu0 0.0
  %2600 = vmatpush1.msra.mxu0 0.0
  %2601 = vmatprep.subr.mxu0 0.0
  %2602 = vmatpush1.msra.mxu0 0.0
  %2603 = vmatprep.mubr.f32.mxu0 0.0
  %2604 = vmatmul.mubr.f32.gmra.mrb[0].mxu0 %v2516
  %v2605 = vpop.f32.mrb[0].mxu0
  %v2606 = vadd.f32 %v2513, %v2605
  %v2607 = vpop.f32.mrb[0].mxu0
  %2608 = vmatprep.mubr.f32.mxu0 0.0
  %2609 = vmatmul.mubr.f32.gmra.mrb[0].mxu0 %v2519
  %v2610 = vpop.f32.mrb[0].mxu0
  %v2611 = vadd.f32 %v2513, %v2610
  %v2612 = vpop.f32.mrb[0].mxu0
  %2613 = vmatprep.mubr.f32.mxu0 0.0
  %2614 = vmatmul.mubr.f32.gmra.mrb[0].mxu0 %v2522
  %v2615 = vpop.f32.mrb[0].mxu0
  %v2616 = vadd.f32 %v2513, %v2615
  %v2617 = vpop.f32.mrb[0].mxu0
  %2618 = vmatprep.mubr.f32.mxu0 0.0
  %2619 = vmatmul.mubr.f32.gmra.mrb[0].mxu0 %v2525
  %v2620 = vpop.f32.mrb[0].mxu0
  %v2621 = vadd.f32 %v2513, %v2620
  %v2622 = vpop.f32.mrb[0].mxu0
  %2623 = vmatprep.mubr.f32.mxu0 0.0
  %2624 = vmatmul.mubr.f32.gmra.mrb[0].mxu0 %v2528
  %v2625 = vpop.f32.mrb[0].mxu0
  %v2626 = vadd.f32 %v2513, %v2625
  %v2627 = vpop.f32.mrb[0].mxu0
  %2628 = vmatprep.mubr.f32.mxu0 0.0
  %2629 = vmatmul.mubr.f32.gmra.mrb[0].mxu0 %v2531
  %v2630 = vpop.f32.mrb[0].mxu0
  %v2631 = vadd.f32 %v2513, %v2630
  %v2632 = vpop.f32.mrb[0].mxu0
  %2633 = vmatprep.mubr.f32.mxu0 0.0
  %2634 = vmatmul.mubr.f32.gmra.mrb[0].mxu0 %v2534
  %v2635 = vpop.f32.mrb[0].mxu0
  %v2636 = vadd.f32 %v2513, %v2635
  %v2637 = vpop.f32.mrb[0].mxu0
  %2638 = vmatprep.mubr.f32.mxu0 0.0
  %2639 = vmatmul.mubr.f32.gmra.mrb[0].mxu0 %v2537
  %v2640 = vpop.f32.mrb[0].mxu0
  %v2641 = vadd.f32 %v2513, %v2640
  %v2642 = vpop.f32.mrb[0].mxu0
  %2643 = vdwg.mxu0
  %2644 = vst [vmem:[%s17] sm:$0xff] %v2606
  %2645 = vst [vmem:[%s17 + $0x8] sm:$0xff] %v2611
  %2646 = vst [vmem:[%s17 + $0x10] sm:$0xff] %v2616
  %2647 = vst [vmem:[%s17 + $0x18] sm:$0xff] %v2621
  %2648 = vst [vmem:[%s17 + $0x20] sm:$0xff] %v2626
  %2649 = vst [vmem:[%s17 + $0x28] sm:$0xff] %v2631
  %2650 = vst [vmem:[%s17 + $0x30] sm:$0xff] %v2636
  %2651 = vst [vmem:[%s17 + $0x38] sm:$0xff] %v2641
  // Predicated region
  $region70: #{lstm_model_forward.1} parent=0 // pred_check
    _
  $region71: #{lstm_model_forward.1} parent=0 // pred_check_branch
    %2653 = sbr.rel (0) target = $region73
  $region72: #{lstm_model_forward.1} parent=0 // pred_region
    _
  $region73: #{lstm_model_forward.1} parent=0 // pred_fallthru
    _
  // Predicated region
  $region74: #{lstm_model_forward.1} parent=0 // pred_check
    _
  $region75: #{lstm_model_forward.1} parent=0 // pred_check_branch
    %2655 = sbr.rel (0) target = $region77
  $region76: #{lstm_model_forward.1} parent=0 // pred_region
    _
  $region77: #{lstm_model_forward.1} parent=0 // pred_fallthru
    _
  // Predicated region
  $region78: #{lstm_model_forward.1} parent=0 // pred_check
    _
  $region79: #{lstm_model_forward.1} parent=0 // pred_check_branch
    %2657 = sbr.rel (0) target = $region81
  $region80: #{lstm_model_forward.1} parent=0 // pred_region
    _
  $region81: #{lstm_model_forward.1} parent=0 // pred_fallthru
    _
  // Predicated region
  $region82: #{lstm_model_forward.1} parent=0 // pred_check
    _
  $region83: #{lstm_model_forward.1} parent=0 // pred_check_branch
    %2659 = sbr.rel (0) target = $region85
  $region84: #{lstm_model_forward.1} parent=0 // pred_region
    _
  $region85: #{lstm_model_forward.1} parent=0 // pred_fallthru
    _
  // Predicated region
  $region86: #{lstm_model_forward.1} parent=0 // pred_check
    _
  $region87: #{lstm_model_forward.1} parent=0 // pred_check_branch
    %2661 = sbr.rel (0) target = $region89
  $region88: #{lstm_model_forward.1} parent=0 // pred_region
    _
  $region89: #{lstm_model_forward.1} parent=0 // pred_fallthru
    _
  // Predicated region
  $region90: #{lstm_model_forward.1} parent=0 // pred_check
    _
  $region91: #{lstm_model_forward.1} parent=0 // pred_check_branch
    %2663 = sbr.rel (0) target = $region93
  $region92: #{lstm_model_forward.1} parent=0 // pred_region
    _
  $region93: #{lstm_model_forward.1} parent=0 // pred_fallthru
    _

</llo_original>
